<compile_context>
chip_gen: v7x
topology: tpu7x:2x2x1
jax: 0.10.0
libtpu: 0.0.40
codegen_flags: <defaults>
</compile_context>

<pallas_src>
import numpy as np

import jax
import jax.numpy as jnp
from jax import lax
from jax.experimental import pallas as pl
from jax.experimental.pallas import tpu as pltpu

_K, _S, _P = 4, 2, 1          # kernel size, stride, padding — shared by all six layers
_LANES = 128                  # TPU lane width; all operands are padded to it

_LAYERS = (
    ("conv",   "e1_w", "e1_b"),
    ("conv",   "e2_w", "e2_b"),
    ("conv",   "e3_w", "e3_b"),
    ("deconv", "d1_w", "d1_b"),
    ("deconv", "d2_w", "d2_b"),
    ("deconv", "d3_w", "d3_b"),
)


# ----------------------------------------------------------------------------
# Fused kernel: six layers, each = 4 bf16 row-gather matmuls -> one deep matmul
# ----------------------------------------------------------------------------
def _fused_kernel(x_ref, a_ref, r_ref, b_ref, o_ref):
    n_layers = a_ref.shape[0]
    x = x_ref[...]                                             # (ROWS, 128) f32
    for l in range(n_layers):
        xb = x.astype(jnp.bfloat16)
        # Four independent 0/1 row-tap gathers (exact in bf16): all pushes can issue
        # before the consumer, no serial MRF-pop + VPU-add chain.
        taps = [
            jnp.dot(r_ref[l * _K + t], xb,
                    preferred_element_type=jnp.float32).astype(jnp.bfloat16)
            for t in range(_K)
        ]
        g = jnp.concatenate(taps, axis=-1)                     # (ROWS, 4*128) bf16
        # One deep matmul per layer: tap accumulation happens inside the systolic array.
        acc = jnp.dot(g, a_ref[l], preferred_element_type=jnp.float32)   # (ROWS, 128)
        acc = acc + b_ref[l]                                   # (1, 128) bias row
        x = jnp.tanh(acc) if l == n_layers - 1 else jnp.maximum(acc, 0.0)
    o_ref[...] = x


# ----------------------------------------------------------------------------
# Host-side geometry helpers (pure numpy, used only at packing time)
# ----------------------------------------------------------------------------
def _out_spatial(kind, size_in):
    if kind == "conv":
        return (size_in + 2 * _P - _K) // _S + 1
    return (size_in - 1) * _S - 2 * _P + _K


def _relation_masks(kind, size_in, size_out):
    """(tap, size_out, size_in) 0/1 masks: output index <-> input index per tap."""
    m = np.zeros((_K, size_out, size_in), np.float32)
    for i in range(_K):
        if kind == "conv":                 # gather: in = stride*out - pad + i
            for o in range(size_out):
                s = _S * o - _P + i
                if 0 <= s < size_in:
                    m[i, o, s] = 1.0
        else:                              # deconv scatter: out = stride*in - pad + i
            for s in range(size_in):
                o = _S * s - _P + i
                if 0 <= o < size_out:
                    m[i, o, s] = 1.0
    return m


# ----------------------------------------------------------------------------
# One-time packing of the parameters into 128-lane-padded bf16 slabs
# ----------------------------------------------------------------------------
def pack_operands(params, batch, height, width):
    """Precompute packed operand slabs. Call once per weight update, not per forward."""
    n = batch
    rows = n * height                      # max n*H along the path (H returns to 16)
    n_layers = len(_LAYERS)

    a_slab = np.zeros((n_layers, _K * _LANES, _LANES), np.float32)
    r_slab = np.zeros((n_layers * _K, rows, rows), np.float32)
    b_slab = np.zeros((n_layers, 1, _LANES), np.float32)

    eye_n = np.eye(n, dtype=np.float32)
    in_c = int(params[_LAYERS[0][1]].shape[1])
    cur_h, cur_w, cur_c = height, width, in_c
    for l, (kind, wname, bname) in enumerate(_LAYERS):
        wgt = np.asarray(params[wname], np.float32)
        bias = np.asarray(params[bname], np.float32)
        if kind == "conv":                 # Conv2d weight (OC, IC, kh, kw)
            oc, ic = int(wgt.shape[0]), int(wgt.shape[1])
            wm = wgt.transpose(2, 3, 1, 0)                     # (kh, kw, ic, oc)
        else:                              # ConvTranspose2d weight (IC, OC, kh, kw)
            ic, oc = int(wgt.shape[0]), int(wgt.shape[1])
            wm = wgt.transpose(2, 3, 0, 1)                     # (kh, kw, ic, oc)
        assert ic == cur_c
        oh, ow = _out_spatial(kind, cur_h), _out_spatial(kind, cur_w)
        assert cur_w * ic <= _LANES and ow * oc <= _LANES
        assert n * cur_h <= rows and n * oh <= rows

        # A_cat: contraction rows = (tap, w, ic), each tap padded to a 128-row block;
        # columns = (ow, oc) padded to 128 lanes. W-tap relation folded with weights.
        col = _relation_masks(kind, cur_w, ow).transpose(0, 2, 1)      # (kw, w, ow)
        a_full = np.einsum("jwv,ijco->iwcvo", col, wm)
        a_full = a_full.reshape(_K, cur_w * ic, ow * oc)
        a_pad = np.zeros((_K, _LANES, _LANES), np.float32)
        a_pad[:, :cur_w * ic, :ow * oc] = a_full
        a_slab[l] = a_pad.reshape(_K * _LANES, _LANES)

        # R_t: (n*OH, n*H) 0/1 H-tap gather (conv) / scatter (deconv) relation,
        # block-diagonal over batch, padded to (rows, rows).
        row = _relation_masks(kind, cur_h, oh)                         # (kh, oh, h)
        for t in range(_K):
            r_slab[l * _K + t, :n * oh, :n * cur_h] = np.kron(eye_n, row[t])

        # bias as a lane-dense (ow, oc) row
        b_slab[l, 0, :ow * oc] = np.tile(bias, ow)

        cur_h, cur_w, cur_c = oh, ow, oc

    assert (cur_h, cur_w, cur_c) == (height, width, in_c)
    return {
        "a": jnp.asarray(a_slab, jnp.bfloat16),   # (6, 512, 128)
        "r": jnp.asarray(r_slab, jnp.bfloat16),   # (24, rows, rows)
        "b": jnp.asarray(b_slab, jnp.float32),    # (6, 1, 128)
    }


# ----------------------------------------------------------------------------
# Forward: pad input into the (rows, 128) layout and run the single fused kernel
# ----------------------------------------------------------------------------
def conv_autoencoder_forward(packed, img):
    a_slab, r_slab, b_slab = packed["a"], packed["r"], packed["b"]
    rows = r_slab.shape[-1]
    n, c, h, w = img.shape

    # NCHW -> rows=(n,h), lanes=(w,c), zero-padded to (rows, 128)
    x2d = img.transpose(0, 2, 3, 1).reshape(n * h, w * c)
    x_pad = jnp.zeros((rows, _LANES), jnp.float32).at[:n * h, :w * c].set(x2d)

    n_layers = a_slab.shape[0]
    flops = n_layers * (2 * _K * rows * rows * _LANES
                        + 2 * rows * (_K * _LANES) * _LANES)
    bytes_accessed = (x_pad.size * x_pad.dtype.itemsize
                      + a_slab.size * a_slab.dtype.itemsize
                      + r_slab.size * r_slab.dtype.itemsize
                      + b_slab.size * b_slab.dtype.itemsize
                      + rows * _LANES * 4)

    vmem = pl.BlockSpec(memory_space=pltpu.MemorySpace.VMEM)
    out2d = pl.pallas_call(
        _fused_kernel,
        out_shape=jax.ShapeDtypeStruct((rows, _LANES), jnp.float32),
        in_specs=[vmem, vmem, vmem, vmem],
        out_specs=vmem,
        cost_estimate=pl.CostEstimate(
            flops=flops,
            transcendentals=rows * _LANES,       # final tanh
            bytes_accessed=bytes_accessed),
    )(x_pad, a_slab, r_slab, b_slab)

    # valid block back to NCHW (autoencoder reproduces the input geometry)
    return out2d[:n * h, :w * c].reshape(n, h, w, c).transpose(0, 3, 1, 2)


# ----------------------------------------------------------------------------
# Parameter init (PyTorch-style uniform; decoder bias has OC entries)
# ----------------------------------------------------------------------------
def init_params(key):
    def uinit(k, shape, fan_in, bias_dim):
        bound = 1.0 / float(fan_in) ** 0.5
        kw_, kb_ = jax.random.split(k)
        w_ = jax.random.uniform(kw_, shape, jnp.float32, -bound, bound)
        b_ = jax.random.uniform(kb_, (bias_dim,), jnp.float32, -bound, bound)
        return w_, b_

    ks = jax.random.split(key, 6)
    p = {}
    # encoder Conv2d: weight (OC, IC, 4, 4), fan_in = IC*k*k, bias OC
    p["e1_w"], p["e1_b"] = uinit(ks[0], (12, 3, 4, 4), 3 * 16, 12)
    p["e2_w"], p["e2_b"] = uinit(ks[1], (24, 12, 4, 4), 12 * 16, 24)
    p["e3_w"], p["e3_b"] = uinit(ks[2], (48, 24, 4, 4), 24 * 16, 48)
    # decoder ConvTranspose2d: weight (IC, OC, 4, 4), fan_in = OC*k*k, bias OC
    p["d1_w"], p["d1_b"] = uinit(ks[3], (48, 24, 4, 4), 24 * 16, 24)
    p["d2_w"], p["d2_b"] = uinit(ks[4], (24, 12, 4, 4), 12 * 16, 12)
    p["d3_w"], p["d3_b"] = uinit(ks[5], (12, 3, 4, 4), 3 * 16, 3)
    return p


# ----------------------------------------------------------------------------
# Pure-JAX reference (lax convs, all f32) for the correctness check
# ----------------------------------------------------------------------------
def _ref_forward(params, img):
    dn = ("NCHW", "OIHW", "NCHW")

    def conv(x, w, b, s, p):
        y = lax.conv_general_dilated(x, w, (s, s), ((p, p), (p, p)), dimension_numbers=dn)
        return y + b[None, :, None, None]

    def deconv(x, w, b, s, p):
        kh = w.shape[2]
        w_eq = jnp.flip(w, axis=(2, 3)).transpose(1, 0, 2, 3)
        y = lax.conv_general_dilated(
            x, w_eq, (1, 1), ((kh - 1 - p,) * 2,) * 2,
            lhs_dilation=(s, s), dimension_numbers=dn)
        return y + b[None, :, None, None]

    x = jax.nn.relu(conv(img, params["e1_w"], params["e1_b"], 2, 1))
    x = jax.nn.relu(conv(x, params["e2_w"], params["e2_b"], 2, 1))
    x = jax.nn.relu(conv(x, params["e3_w"], params["e3_b"], 2, 1))
    x = jax.nn.relu(deconv(x, params["d1_w"], params["d1_b"], 2, 1))
    x = jax.nn.relu(deconv(x, params["d2_w"], params["d2_b"], 2, 1))
    x = jnp.tanh(deconv(x, params["d3_w"], params["d3_b"], 2, 1))
    return x


if __name__ == "__main__":
    key = jax.random.PRNGKey(0)
    pkey, xkey = jax.random.split(key)
    params = init_params(pkey)

    # NCHW input consistent with the module: batch=2, channels=3, spatial=16
    x = jax.random.normal(xkey, (2, 3, 16, 16), jnp.float32)

    # One-time host-side packing (per weight update), then a jitted forward.
    packed = pack_operands(params, batch=2, height=16, width=16)
    fwd = jax.jit(conv_autoencoder_forward)
    out = jax.block_until_ready(fwd(packed, x))

    assert out.shape == (2, 3, 16, 16), out.shape
    assert out.dtype == jnp.float32

    ref = jax.block_until_ready(_ref_forward(params, x))
    # bf16 MXU operands with f32 accumulation vs. all-f32 reference: 2e-2 tolerance.
    if not jnp.allclose(out, ref, atol=2e-2, rtol=2e-2):
        max_err = float(jnp.max(jnp.abs(out - ref)))
        raise AssertionError(
            f"Pallas output does not match JAX reference (max abs err {max_err:.4e})")

    print("KERNEL_OK")
</pallas_src>

<mosaic_0001>
module attributes {stable_mosaic.version = 11 : i64} {
  func.func @_fused_kernel(%arg0: memref<32x128xf32, #tpu.memory_space<vmem>>, %arg1: memref<6x512x128xbf16, #tpu.memory_space<vmem>>, %arg2: memref<24x32x32xbf16, #tpu.memory_space<vmem>>, %arg3: memref<6x1x128xf32, #tpu.memory_space<vmem>>, %arg4: memref<32x128xf32, #tpu.memory_space<vmem>>) attributes {dimension_semantics = [], scalar_prefetch = 0 : i64, scratch_operands = 0 : i64, tpu.core_type = #tpu.core_type<tc>} {
    %c0 = arith.constant 0 : index
    %c0_0 = arith.constant 0 : index
    %0 = vector.load %arg0[%c0, %c0_0] : memref<32x128xf32, #tpu.memory_space<vmem>>, vector<32x128xf32>
    %1 = arith.truncf %0 : vector<32x128xf32> to vector<32x128xbf16>
    %c0_1 = arith.constant 0 : index
    %c0_2 = arith.constant 0 : index
    %c0_3 = arith.constant 0 : index
    %2 = vector.load %arg2[%c0_1, %c0_2, %c0_3] : memref<24x32x32xbf16, #tpu.memory_space<vmem>>, vector<1x32x32xbf16>
    %3 = vector.shape_cast %2 : vector<1x32x32xbf16> to vector<32x32xbf16>
    %cst = arith.constant dense<0.000000e+00> : vector<32x128xf32>
    %4 = tpu.matmul %3, %1, %cst {dimension_numbers = #tpu.dot_dimension_numbers<[1], [0], [0], [1], [0, 0, 1, 1], [], []>} : vector<32x32xbf16>, vector<32x128xbf16>, vector<32x128xf32> -> vector<32x128xf32>
    %5 = arith.truncf %4 : vector<32x128xf32> to vector<32x128xbf16>
    %c1 = arith.constant 1 : index
    %c0_4 = arith.constant 0 : index
    %c0_5 = arith.constant 0 : index
    %6 = vector.load %arg2[%c1, %c0_4, %c0_5] : memref<24x32x32xbf16, #tpu.memory_space<vmem>>, vector<1x32x32xbf16>
    %7 = vector.shape_cast %6 : vector<1x32x32xbf16> to vector<32x32xbf16>
    %cst_6 = arith.constant dense<0.000000e+00> : vector<32x128xf32>
    %8 = tpu.matmul %7, %1, %cst_6 {dimension_numbers = #tpu.dot_dimension_numbers<[1], [0], [0], [1], [0, 0, 1, 1], [], []>} : vector<32x32xbf16>, vector<32x128xbf16>, vector<32x128xf32> -> vector<32x128xf32>
    %9 = arith.truncf %8 : vector<32x128xf32> to vector<32x128xbf16>
    %c2 = arith.constant 2 : index
    %c0_7 = arith.constant 0 : index
    %c0_8 = arith.constant 0 : index
    %10 = vector.load %arg2[%c2, %c0_7, %c0_8] : memref<24x32x32xbf16, #tpu.memory_space<vmem>>, vector<1x32x32xbf16>
    %11 = vector.shape_cast %10 : vector<1x32x32xbf16> to vector<32x32xbf16>
    %cst_9 = arith.constant dense<0.000000e+00> : vector<32x128xf32>
    %12 = tpu.matmul %11, %1, %cst_9 {dimension_numbers = #tpu.dot_dimension_numbers<[1], [0], [0], [1], [0, 0, 1, 1], [], []>} : vector<32x32xbf16>, vector<32x128xbf16>, vector<32x128xf32> -> vector<32x128xf32>
    %13 = arith.truncf %12 : vector<32x128xf32> to vector<32x128xbf16>
    %c3 = arith.constant 3 : index
    %c0_10 = arith.constant 0 : index
    %c0_11 = arith.constant 0 : index
    %14 = vector.load %arg2[%c3, %c0_10, %c0_11] : memref<24x32x32xbf16, #tpu.memory_space<vmem>>, vector<1x32x32xbf16>
    %15 = vector.shape_cast %14 : vector<1x32x32xbf16> to vector<32x32xbf16>
    %cst_12 = arith.constant dense<0.000000e+00> : vector<32x128xf32>
    %16 = tpu.matmul %15, %1, %cst_12 {dimension_numbers = #tpu.dot_dimension_numbers<[1], [0], [0], [1], [0, 0, 1, 1], [], []>} : vector<32x32xbf16>, vector<32x128xbf16>, vector<32x128xf32> -> vector<32x128xf32>
    %17 = arith.truncf %16 : vector<32x128xf32> to vector<32x128xbf16>
    %18 = tpu.concatenate %5, %9, %13, %17 in 1 : vector<32x128xbf16>, vector<32x128xbf16>, vector<32x128xbf16>, vector<32x128xbf16> -> vector<32x512xbf16>
    %c0_13 = arith.constant 0 : index
    %c0_14 = arith.constant 0 : index
    %c0_15 = arith.constant 0 : index
    %19 = vector.load %arg1[%c0_13, %c0_14, %c0_15] : memref<6x512x128xbf16, #tpu.memory_space<vmem>>, vector<1x512x128xbf16>
    %20 = vector.shape_cast %19 : vector<1x512x128xbf16> to vector<512x128xbf16>
    %cst_16 = arith.constant dense<0.000000e+00> : vector<32x128xf32>
    %21 = tpu.matmul %18, %20, %cst_16 {dimension_numbers = #tpu.dot_dimension_numbers<[1], [0], [0], [1], [0, 0, 1, 1], [], []>} : vector<32x512xbf16>, vector<512x128xbf16>, vector<32x128xf32> -> vector<32x128xf32>
    %c0_17 = arith.constant 0 : index
    %c0_18 = arith.constant 0 : index
    %c0_19 = arith.constant 0 : index
    %22 = vector.load %arg3[%c0_17, %c0_18, %c0_19] : memref<6x1x128xf32, #tpu.memory_space<vmem>>, vector<1x1x128xf32>
    %23 = vector.shape_cast %22 : vector<1x1x128xf32> to vector<1x128xf32>
    %24 = vector.broadcast %23 : vector<1x128xf32> to vector<32x128xf32>
    %25 = arith.addf %21, %24 : vector<32x128xf32>
    %cst_20 = arith.constant 0.000000e+00 : f32
    %26 = vector.broadcast %cst_20 : f32 to vector<32x128xf32>
    %27 = arith.maximumf %25, %26 : vector<32x128xf32>
    %28 = arith.truncf %27 : vector<32x128xf32> to vector<32x128xbf16>
    %c4 = arith.constant 4 : index
    %c0_21 = arith.constant 0 : index
    %c0_22 = arith.constant 0 : index
    %29 = vector.load %arg2[%c4, %c0_21, %c0_22] : memref<24x32x32xbf16, #tpu.memory_space<vmem>>, vector<1x32x32xbf16>
    %30 = vector.shape_cast %29 : vector<1x32x32xbf16> to vector<32x32xbf16>
    %cst_23 = arith.constant dense<0.000000e+00> : vector<32x128xf32>
    %31 = tpu.matmul %30, %28, %cst_23 {dimension_numbers = #tpu.dot_dimension_numbers<[1], [0], [0], [1], [0, 0, 1, 1], [], []>} : vector<32x32xbf16>, vector<32x128xbf16>, vector<32x128xf32> -> vector<32x128xf32>
    %32 = arith.truncf %31 : vector<32x128xf32> to vector<32x128xbf16>
    %c5 = arith.constant 5 : index
    %c0_24 = arith.constant 0 : index
    %c0_25 = arith.constant 0 : index
    %33 = vector.load %arg2[%c5, %c0_24, %c0_25] : memref<24x32x32xbf16, #tpu.memory_space<vmem>>, vector<1x32x32xbf16>
    %34 = vector.shape_cast %33 : vector<1x32x32xbf16> to vector<32x32xbf16>
    %cst_26 = arith.constant dense<0.000000e+00> : vector<32x128xf32>
    %35 = tpu.matmul %34, %28, %cst_26 {dimension_numbers = #tpu.dot_dimension_numbers<[1], [0], [0], [1], [0, 0, 1, 1], [], []>} : vector<32x32xbf16>, vector<32x128xbf16>, vector<32x128xf32> -> vector<32x128xf32>
    %36 = arith.truncf %35 : vector<32x128xf32> to vector<32x128xbf16>
    %c6 = arith.constant 6 : index
    %c0_27 = arith.constant 0 : index
    %c0_28 = arith.constant 0 : index
    %37 = vector.load %arg2[%c6, %c0_27, %c0_28] : memref<24x32x32xbf16, #tpu.memory_space<vmem>>, vector<1x32x32xbf16>
    %38 = vector.shape_cast %37 : vector<1x32x32xbf16> to vector<32x32xbf16>
    %cst_29 = arith.constant dense<0.000000e+00> : vector<32x128xf32>
    %39 = tpu.matmul %38, %28, %cst_29 {dimension_numbers = #tpu.dot_dimension_numbers<[1], [0], [0], [1], [0, 0, 1, 1], [], []>} : vector<32x32xbf16>, vector<32x128xbf16>, vector<32x128xf32> -> vector<32x128xf32>
    %40 = arith.truncf %39 : vector<32x128xf32> to vector<32x128xbf16>
    %c7 = arith.constant 7 : index
    %c0_30 = arith.constant 0 : index
    %c0_31 = arith.constant 0 : index
    %41 = vector.load %arg2[%c7, %c0_30, %c0_31] : memref<24x32x32xbf16, #tpu.memory_space<vmem>>, vector<1x32x32xbf16>
    %42 = vector.shape_cast %41 : vector<1x32x32xbf16> to vector<32x32xbf16>
    %cst_32 = arith.constant dense<0.000000e+00> : vector<32x128xf32>
    %43 = tpu.matmul %42, %28, %cst_32 {dimension_numbers = #tpu.dot_dimension_numbers<[1], [0], [0], [1], [0, 0, 1, 1], [], []>} : vector<32x32xbf16>, vector<32x128xbf16>, vector<32x128xf32> -> vector<32x128xf32>
    %44 = arith.truncf %43 : vector<32x128xf32> to vector<32x128xbf16>
    %45 = tpu.concatenate %32, %36, %40, %44 in 1 : vector<32x128xbf16>, vector<32x128xbf16>, vector<32x128xbf16>, vector<32x128xbf16> -> vector<32x512xbf16>
    %c1_33 = arith.constant 1 : index
    %c0_34 = arith.constant 0 : index
    %c0_35 = arith.constant 0 : index
    %46 = vector.load %arg1[%c1_33, %c0_34, %c0_35] : memref<6x512x128xbf16, #tpu.memory_space<vmem>>, vector<1x512x128xbf16>
    %47 = vector.shape_cast %46 : vector<1x512x128xbf16> to vector<512x128xbf16>
    %cst_36 = arith.constant dense<0.000000e+00> : vector<32x128xf32>
    %48 = tpu.matmul %45, %47, %cst_36 {dimension_numbers = #tpu.dot_dimension_numbers<[1], [0], [0], [1], [0, 0, 1, 1], [], []>} : vector<32x512xbf16>, vector<512x128xbf16>, vector<32x128xf32> -> vector<32x128xf32>
    %c1_37 = arith.constant 1 : index
    %c0_38 = arith.constant 0 : index
    %c0_39 = arith.constant 0 : index
    %49 = vector.load %arg3[%c1_37, %c0_38, %c0_39] : memref<6x1x128xf32, #tpu.memory_space<vmem>>, vector<1x1x128xf32>
    %50 = vector.shape_cast %49 : vector<1x1x128xf32> to vector<1x128xf32>
    %51 = vector.broadcast %50 : vector<1x128xf32> to vector<32x128xf32>
    %52 = arith.addf %48, %51 : vector<32x128xf32>
    %cst_40 = arith.constant 0.000000e+00 : f32
    %53 = vector.broadcast %cst_40 : f32 to vector<32x128xf32>
    %54 = arith.maximumf %52, %53 : vector<32x128xf32>
    %55 = arith.truncf %54 : vector<32x128xf32> to vector<32x128xbf16>
    %c8 = arith.constant 8 : index
    %c0_41 = arith.constant 0 : index
    %c0_42 = arith.constant 0 : index
    %56 = vector.load %arg2[%c8, %c0_41, %c0_42] : memref<24x32x32xbf16, #tpu.memory_space<vmem>>, vector<1x32x32xbf16>
    %57 = vector.shape_cast %56 : vector<1x32x32xbf16> to vector<32x32xbf16>
    %cst_43 = arith.constant dense<0.000000e+00> : vector<32x128xf32>
    %58 = tpu.matmul %57, %55, %cst_43 {dimension_numbers = #tpu.dot_dimension_numbers<[1], [0], [0], [1], [0, 0, 1, 1], [], []>} : vector<32x32xbf16>, vector<32x128xbf16>, vector<32x128xf32> -> vector<32x128xf32>
    %59 = arith.truncf %58 : vector<32x128xf32> to vector<32x128xbf16>
    %c9 = arith.constant 9 : index
    %c0_44 = arith.constant 0 : index
    %c0_45 = arith.constant 0 : index
    %60 = vector.load %arg2[%c9, %c0_44, %c0_45] : memref<24x32x32xbf16, #tpu.memory_space<vmem>>, vector<1x32x32xbf16>
    %61 = vector.shape_cast %60 : vector<1x32x32xbf16> to vector<32x32xbf16>
    %cst_46 = arith.constant dense<0.000000e+00> : vector<32x128xf32>
    %62 = tpu.matmul %61, %55, %cst_46 {dimension_numbers = #tpu.dot_dimension_numbers<[1], [0], [0], [1], [0, 0, 1, 1], [], []>} : vector<32x32xbf16>, vector<32x128xbf16>, vector<32x128xf32> -> vector<32x128xf32>
    %63 = arith.truncf %62 : vector<32x128xf32> to vector<32x128xbf16>
    %c10 = arith.constant 10 : index
    %c0_47 = arith.constant 0 : index
    %c0_48 = arith.constant 0 : index
    %64 = vector.load %arg2[%c10, %c0_47, %c0_48] : memref<24x32x32xbf16, #tpu.memory_space<vmem>>, vector<1x32x32xbf16>
    %65 = vector.shape_cast %64 : vector<1x32x32xbf16> to vector<32x32xbf16>
    %cst_49 = arith.constant dense<0.000000e+00> : vector<32x128xf32>
    %66 = tpu.matmul %65, %55, %cst_49 {dimension_numbers = #tpu.dot_dimension_numbers<[1], [0], [0], [1], [0, 0, 1, 1], [], []>} : vector<32x32xbf16>, vector<32x128xbf16>, vector<32x128xf32> -> vector<32x128xf32>
    %67 = arith.truncf %66 : vector<32x128xf32> to vector<32x128xbf16>
    %c11 = arith.constant 11 : index
    %c0_50 = arith.constant 0 : index
    %c0_51 = arith.constant 0 : index
    %68 = vector.load %arg2[%c11, %c0_50, %c0_51] : memref<24x32x32xbf16, #tpu.memory_space<vmem>>, vector<1x32x32xbf16>
    %69 = vector.shape_cast %68 : vector<1x32x32xbf16> to vector<32x32xbf16>
    %cst_52 = arith.constant dense<0.000000e+00> : vector<32x128xf32>
    %70 = tpu.matmul %69, %55, %cst_52 {dimension_numbers = #tpu.dot_dimension_numbers<[1], [0], [0], [1], [0, 0, 1, 1], [], []>} : vector<32x32xbf16>, vector<32x128xbf16>, vector<32x128xf32> -> vector<32x128xf32>
    %71 = arith.truncf %70 : vector<32x128xf32> to vector<32x128xbf16>
    %72 = tpu.concatenate %59, %63, %67, %71 in 1 : vector<32x128xbf16>, vector<32x128xbf16>, vector<32x128xbf16>, vector<32x128xbf16> -> vector<32x512xbf16>
    %c2_53 = arith.constant 2 : index
    %c0_54 = arith.constant 0 : index
    %c0_55 = arith.constant 0 : index
    %73 = vector.load %arg1[%c2_53, %c0_54, %c0_55] : memref<6x512x128xbf16, #tpu.memory_space<vmem>>, vector<1x512x128xbf16>
    %74 = vector.shape_cast %73 : vector<1x512x128xbf16> to vector<512x128xbf16>
    %cst_56 = arith.constant dense<0.000000e+00> : vector<32x128xf32>
    %75 = tpu.matmul %72, %74, %cst_56 {dimension_numbers = #tpu.dot_dimension_numbers<[1], [0], [0], [1], [0, 0, 1, 1], [], []>} : vector<32x512xbf16>, vector<512x128xbf16>, vector<32x128xf32> -> vector<32x128xf32>
    %c2_57 = arith.constant 2 : index
    %c0_58 = arith.constant 0 : index
    %c0_59 = arith.constant 0 : index
    %76 = vector.load %arg3[%c2_57, %c0_58, %c0_59] : memref<6x1x128xf32, #tpu.memory_space<vmem>>, vector<1x1x128xf32>
    %77 = vector.shape_cast %76 : vector<1x1x128xf32> to vector<1x128xf32>
    %78 = vector.broadcast %77 : vector<1x128xf32> to vector<32x128xf32>
    %79 = arith.addf %75, %78 : vector<32x128xf32>
    %cst_60 = arith.constant 0.000000e+00 : f32
    %80 = vector.broadcast %cst_60 : f32 to vector<32x128xf32>
    %81 = arith.maximumf %79, %80 : vector<32x128xf32>
    %82 = arith.truncf %81 : vector<32x128xf32> to vector<32x128xbf16>
    %c12 = arith.constant 12 : index
    %c0_61 = arith.constant 0 : index
    %c0_62 = arith.constant 0 : index
    %83 = vector.load %arg2[%c12, %c0_61, %c0_62] : memref<24x32x32xbf16, #tpu.memory_space<vmem>>, vector<1x32x32xbf16>
    %84 = vector.shape_cast %83 : vector<1x32x32xbf16> to vector<32x32xbf16>
    %cst_63 = arith.constant dense<0.000000e+00> : vector<32x128xf32>
    %85 = tpu.matmul %84, %82, %cst_63 {dimension_numbers = #tpu.dot_dimension_numbers<[1], [0], [0], [1], [0, 0, 1, 1], [], []>} : vector<32x32xbf16>, vector<32x128xbf16>, vector<32x128xf32> -> vector<32x128xf32>
    %86 = arith.truncf %85 : vector<32x128xf32> to vector<32x128xbf16>
    %c13 = arith.constant 13 : index
    %c0_64 = arith.constant 0 : index
    %c0_65 = arith.constant 0 : index
    %87 = vector.load %arg2[%c13, %c0_64, %c0_65] : memref<24x32x32xbf16, #tpu.memory_space<vmem>>, vector<1x32x32xbf16>
    %88 = vector.shape_cast %87 : vector<1x32x32xbf16> to vector<32x32xbf16>
    %cst_66 = arith.constant dense<0.000000e+00> : vector<32x128xf32>
    %89 = tpu.matmul %88, %82, %cst_66 {dimension_numbers = #tpu.dot_dimension_numbers<[1], [0], [0], [1], [0, 0, 1, 1], [], []>} : vector<32x32xbf16>, vector<32x128xbf16>, vector<32x128xf32> -> vector<32x128xf32>
    %90 = arith.truncf %89 : vector<32x128xf32> to vector<32x128xbf16>
    %c14 = arith.constant 14 : index
    %c0_67 = arith.constant 0 : index
    %c0_68 = arith.constant 0 : index
    %91 = vector.load %arg2[%c14, %c0_67, %c0_68] : memref<24x32x32xbf16, #tpu.memory_space<vmem>>, vector<1x32x32xbf16>
    %92 = vector.shape_cast %91 : vector<1x32x32xbf16> to vector<32x32xbf16>
    %cst_69 = arith.constant dense<0.000000e+00> : vector<32x128xf32>
    %93 = tpu.matmul %92, %82, %cst_69 {dimension_numbers = #tpu.dot_dimension_numbers<[1], [0], [0], [1], [0, 0, 1, 1], [], []>} : vector<32x32xbf16>, vector<32x128xbf16>, vector<32x128xf32> -> vector<32x128xf32>
    %94 = arith.truncf %93 : vector<32x128xf32> to vector<32x128xbf16>
    %c15 = arith.constant 15 : index
    %c0_70 = arith.constant 0 : index
    %c0_71 = arith.constant 0 : index
    %95 = vector.load %arg2[%c15, %c0_70, %c0_71] : memref<24x32x32xbf16, #tpu.memory_space<vmem>>, vector<1x32x32xbf16>
    %96 = vector.shape_cast %95 : vector<1x32x32xbf16> to vector<32x32xbf16>
    %cst_72 = arith.constant dense<0.000000e+00> : vector<32x128xf32>
    %97 = tpu.matmul %96, %82, %cst_72 {dimension_numbers = #tpu.dot_dimension_numbers<[1], [0], [0], [1], [0, 0, 1, 1], [], []>} : vector<32x32xbf16>, vector<32x128xbf16>, vector<32x128xf32> -> vector<32x128xf32>
    %98 = arith.truncf %97 : vector<32x128xf32> to vector<32x128xbf16>
    %99 = tpu.concatenate %86, %90, %94, %98 in 1 : vector<32x128xbf16>, vector<32x128xbf16>, vector<32x128xbf16>, vector<32x128xbf16> -> vector<32x512xbf16>
    %c3_73 = arith.constant 3 : index
    %c0_74 = arith.constant 0 : index
    %c0_75 = arith.constant 0 : index
    %100 = vector.load %arg1[%c3_73, %c0_74, %c0_75] : memref<6x512x128xbf16, #tpu.memory_space<vmem>>, vector<1x512x128xbf16>
    %101 = vector.shape_cast %100 : vector<1x512x128xbf16> to vector<512x128xbf16>
    %cst_76 = arith.constant dense<0.000000e+00> : vector<32x128xf32>
    %102 = tpu.matmul %99, %101, %cst_76 {dimension_numbers = #tpu.dot_dimension_numbers<[1], [0], [0], [1], [0, 0, 1, 1], [], []>} : vector<32x512xbf16>, vector<512x128xbf16>, vector<32x128xf32> -> vector<32x128xf32>
    %c3_77 = arith.constant 3 : index
    %c0_78 = arith.constant 0 : index
    %c0_79 = arith.constant 0 : index
    %103 = vector.load %arg3[%c3_77, %c0_78, %c0_79] : memref<6x1x128xf32, #tpu.memory_space<vmem>>, vector<1x1x128xf32>
    %104 = vector.shape_cast %103 : vector<1x1x128xf32> to vector<1x128xf32>
    %105 = vector.broadcast %104 : vector<1x128xf32> to vector<32x128xf32>
    %106 = arith.addf %102, %105 : vector<32x128xf32>
    %cst_80 = arith.constant 0.000000e+00 : f32
    %107 = vector.broadcast %cst_80 : f32 to vector<32x128xf32>
    %108 = arith.maximumf %106, %107 : vector<32x128xf32>
    %109 = arith.truncf %108 : vector<32x128xf32> to vector<32x128xbf16>
    %c16 = arith.constant 16 : index
    %c0_81 = arith.constant 0 : index
    %c0_82 = arith.constant 0 : index
    %110 = vector.load %arg2[%c16, %c0_81, %c0_82] : memref<24x32x32xbf16, #tpu.memory_space<vmem>>, vector<1x32x32xbf16>
    %111 = vector.shape_cast %110 : vector<1x32x32xbf16> to vector<32x32xbf16>
    %cst_83 = arith.constant dense<0.000000e+00> : vector<32x128xf32>
    %112 = tpu.matmul %111, %109, %cst_83 {dimension_numbers = #tpu.dot_dimension_numbers<[1], [0], [0], [1], [0, 0, 1, 1], [], []>} : vector<32x32xbf16>, vector<32x128xbf16>, vector<32x128xf32> -> vector<32x128xf32>
    %113 = arith.truncf %112 : vector<32x128xf32> to vector<32x128xbf16>
    %c17 = arith.constant 17 : index
    %c0_84 = arith.constant 0 : index
    %c0_85 = arith.constant 0 : index
    %114 = vector.load %arg2[%c17, %c0_84, %c0_85] : memref<24x32x32xbf16, #tpu.memory_space<vmem>>, vector<1x32x32xbf16>
    %115 = vector.shape_cast %114 : vector<1x32x32xbf16> to vector<32x32xbf16>
    %cst_86 = arith.constant dense<0.000000e+00> : vector<32x128xf32>
    %116 = tpu.matmul %115, %109, %cst_86 {dimension_numbers = #tpu.dot_dimension_numbers<[1], [0], [0], [1], [0, 0, 1, 1], [], []>} : vector<32x32xbf16>, vector<32x128xbf16>, vector<32x128xf32> -> vector<32x128xf32>
    %117 = arith.truncf %116 : vector<32x128xf32> to vector<32x128xbf16>
    %c18 = arith.constant 18 : index
    %c0_87 = arith.constant 0 : index
    %c0_88 = arith.constant 0 : index
    %118 = vector.load %arg2[%c18, %c0_87, %c0_88] : memref<24x32x32xbf16, #tpu.memory_space<vmem>>, vector<1x32x32xbf16>
    %119 = vector.shape_cast %118 : vector<1x32x32xbf16> to vector<32x32xbf16>
    %cst_89 = arith.constant dense<0.000000e+00> : vector<32x128xf32>
    %120 = tpu.matmul %119, %109, %cst_89 {dimension_numbers = #tpu.dot_dimension_numbers<[1], [0], [0], [1], [0, 0, 1, 1], [], []>} : vector<32x32xbf16>, vector<32x128xbf16>, vector<32x128xf32> -> vector<32x128xf32>
    %121 = arith.truncf %120 : vector<32x128xf32> to vector<32x128xbf16>
    %c19 = arith.constant 19 : index
    %c0_90 = arith.constant 0 : index
    %c0_91 = arith.constant 0 : index
    %122 = vector.load %arg2[%c19, %c0_90, %c0_91] : memref<24x32x32xbf16, #tpu.memory_space<vmem>>, vector<1x32x32xbf16>
    %123 = vector.shape_cast %122 : vector<1x32x32xbf16> to vector<32x32xbf16>
    %cst_92 = arith.constant dense<0.000000e+00> : vector<32x128xf32>
    %124 = tpu.matmul %123, %109, %cst_92 {dimension_numbers = #tpu.dot_dimension_numbers<[1], [0], [0], [1], [0, 0, 1, 1], [], []>} : vector<32x32xbf16>, vector<32x128xbf16>, vector<32x128xf32> -> vector<32x128xf32>
    %125 = arith.truncf %124 : vector<32x128xf32> to vector<32x128xbf16>
    %126 = tpu.concatenate %113, %117, %121, %125 in 1 : vector<32x128xbf16>, vector<32x128xbf16>, vector<32x128xbf16>, vector<32x128xbf16> -> vector<32x512xbf16>
    %c4_93 = arith.constant 4 : index
    %c0_94 = arith.constant 0 : index
    %c0_95 = arith.constant 0 : index
    %127 = vector.load %arg1[%c4_93, %c0_94, %c0_95] : memref<6x512x128xbf16, #tpu.memory_space<vmem>>, vector<1x512x128xbf16>
    %128 = vector.shape_cast %127 : vector<1x512x128xbf16> to vector<512x128xbf16>
    %cst_96 = arith.constant dense<0.000000e+00> : vector<32x128xf32>
    %129 = tpu.matmul %126, %128, %cst_96 {dimension_numbers = #tpu.dot_dimension_numbers<[1], [0], [0], [1], [0, 0, 1, 1], [], []>} : vector<32x512xbf16>, vector<512x128xbf16>, vector<32x128xf32> -> vector<32x128xf32>
    %c4_97 = arith.constant 4 : index
    %c0_98 = arith.constant 0 : index
    %c0_99 = arith.constant 0 : index
    %130 = vector.load %arg3[%c4_97, %c0_98, %c0_99] : memref<6x1x128xf32, #tpu.memory_space<vmem>>, vector<1x1x128xf32>
    %131 = vector.shape_cast %130 : vector<1x1x128xf32> to vector<1x128xf32>
    %132 = vector.broadcast %131 : vector<1x128xf32> to vector<32x128xf32>
    %133 = arith.addf %129, %132 : vector<32x128xf32>
    %cst_100 = arith.constant 0.000000e+00 : f32
    %134 = vector.broadcast %cst_100 : f32 to vector<32x128xf32>
    %135 = arith.maximumf %133, %134 : vector<32x128xf32>
    %136 = arith.truncf %135 : vector<32x128xf32> to vector<32x128xbf16>
    %c20 = arith.constant 20 : index
    %c0_101 = arith.constant 0 : index
    %c0_102 = arith.constant 0 : index
    %137 = vector.load %arg2[%c20, %c0_101, %c0_102] : memref<24x32x32xbf16, #tpu.memory_space<vmem>>, vector<1x32x32xbf16>
    %138 = vector.shape_cast %137 : vector<1x32x32xbf16> to vector<32x32xbf16>
    %cst_103 = arith.constant dense<0.000000e+00> : vector<32x128xf32>
    %139 = tpu.matmul %138, %136, %cst_103 {dimension_numbers = #tpu.dot_dimension_numbers<[1], [0], [0], [1], [0, 0, 1, 1], [], []>} : vector<32x32xbf16>, vector<32x128xbf16>, vector<32x128xf32> -> vector<32x128xf32>
    %140 = arith.truncf %139 : vector<32x128xf32> to vector<32x128xbf16>
    %c21 = arith.constant 21 : index
    %c0_104 = arith.constant 0 : index
    %c0_105 = arith.constant 0 : index
    %141 = vector.load %arg2[%c21, %c0_104, %c0_105] : memref<24x32x32xbf16, #tpu.memory_space<vmem>>, vector<1x32x32xbf16>
    %142 = vector.shape_cast %141 : vector<1x32x32xbf16> to vector<32x32xbf16>
    %cst_106 = arith.constant dense<0.000000e+00> : vector<32x128xf32>
    %143 = tpu.matmul %142, %136, %cst_106 {dimension_numbers = #tpu.dot_dimension_numbers<[1], [0], [0], [1], [0, 0, 1, 1], [], []>} : vector<32x32xbf16>, vector<32x128xbf16>, vector<32x128xf32> -> vector<32x128xf32>
    %144 = arith.truncf %143 : vector<32x128xf32> to vector<32x128xbf16>
    %c22 = arith.constant 22 : index
    %c0_107 = arith.constant 0 : index
    %c0_108 = arith.constant 0 : index
    %145 = vector.load %arg2[%c22, %c0_107, %c0_108] : memref<24x32x32xbf16, #tpu.memory_space<vmem>>, vector<1x32x32xbf16>
    %146 = vector.shape_cast %145 : vector<1x32x32xbf16> to vector<32x32xbf16>
    %cst_109 = arith.constant dense<0.000000e+00> : vector<32x128xf32>
    %147 = tpu.matmul %146, %136, %cst_109 {dimension_numbers = #tpu.dot_dimension_numbers<[1], [0], [0], [1], [0, 0, 1, 1], [], []>} : vector<32x32xbf16>, vector<32x128xbf16>, vector<32x128xf32> -> vector<32x128xf32>
    %148 = arith.truncf %147 : vector<32x128xf32> to vector<32x128xbf16>
    %c23 = arith.constant 23 : index
    %c0_110 = arith.constant 0 : index
    %c0_111 = arith.constant 0 : index
    %149 = vector.load %arg2[%c23, %c0_110, %c0_111] : memref<24x32x32xbf16, #tpu.memory_space<vmem>>, vector<1x32x32xbf16>
    %150 = vector.shape_cast %149 : vector<1x32x32xbf16> to vector<32x32xbf16>
    %cst_112 = arith.constant dense<0.000000e+00> : vector<32x128xf32>
    %151 = tpu.matmul %150, %136, %cst_112 {dimension_numbers = #tpu.dot_dimension_numbers<[1], [0], [0], [1], [0, 0, 1, 1], [], []>} : vector<32x32xbf16>, vector<32x128xbf16>, vector<32x128xf32> -> vector<32x128xf32>
    %152 = arith.truncf %151 : vector<32x128xf32> to vector<32x128xbf16>
    %153 = tpu.concatenate %140, %144, %148, %152 in 1 : vector<32x128xbf16>, vector<32x128xbf16>, vector<32x128xbf16>, vector<32x128xbf16> -> vector<32x512xbf16>
    %c5_113 = arith.constant 5 : index
    %c0_114 = arith.constant 0 : index
    %c0_115 = arith.constant 0 : index
    %154 = vector.load %arg1[%c5_113, %c0_114, %c0_115] : memref<6x512x128xbf16, #tpu.memory_space<vmem>>, vector<1x512x128xbf16>
    %155 = vector.shape_cast %154 : vector<1x512x128xbf16> to vector<512x128xbf16>
    %cst_116 = arith.constant dense<0.000000e+00> : vector<32x128xf32>
    %156 = tpu.matmul %153, %155, %cst_116 {dimension_numbers = #tpu.dot_dimension_numbers<[1], [0], [0], [1], [0, 0, 1, 1], [], []>} : vector<32x512xbf16>, vector<512x128xbf16>, vector<32x128xf32> -> vector<32x128xf32>
    %c5_117 = arith.constant 5 : index
    %c0_118 = arith.constant 0 : index
    %c0_119 = arith.constant 0 : index
    %157 = vector.load %arg3[%c5_117, %c0_118, %c0_119] : memref<6x1x128xf32, #tpu.memory_space<vmem>>, vector<1x1x128xf32>
    %158 = vector.shape_cast %157 : vector<1x1x128xf32> to vector<1x128xf32>
    %159 = vector.broadcast %158 : vector<1x128xf32> to vector<32x128xf32>
    %160 = arith.addf %156, %159 : vector<32x128xf32>
    %161 = math.tanh %160 : vector<32x128xf32>
    %c0_120 = arith.constant 0 : index
    %c0_121 = arith.constant 0 : index
    %162 = vector.load %arg4[%c0_120, %c0_121] : memref<32x128xf32, #tpu.memory_space<vmem>>, vector<32x128xf32>
    tpu.vector_store %arg4[%c0_120, %c0_121], %161 {strides = array<i32>} : memref<32x128xf32, #tpu.memory_space<vmem>>, vector<32x128xf32>,
    return
  }
}

</mosaic_0001>

<llo_original>
// kernel: conv_autoencoder_forward.1
$region0: #{conv_autoencoder_forward.1}
  #allocation0 [shape = 'u32[]', space=smem, size = 0x4, offset = 0x4, fixed_abs, tag = 'smem constant byte address 0x4 - core index']
  #allocation1 [shape = 'u32[144,128]{1,0:T(1,128)}', space=vmem, size = 0x12000, scoped, tag = 'internal scratch']
  %s0 = inlined_call_operand.vmem [shape: f32[32,128], index: 0, kind: input, shape index: {}]
  %s1 = inlined_call_operand.hbm [shape: bf16[6,512,128], index: 1, kind: input, shape index: {}]
  %s2 = inlined_call_operand.vmem [shape: bf16[24,32,32], index: 2, kind: input, shape index: {}]
  %s3 = inlined_call_operand.vmem [shape: f32[6,1,128], index: 3, kind: input, shape index: {}]
  %s4 = inlined_call_operand.vmem [shape: f32[32,128], index: 4, kind: output, shape index: {}]
  %s5 = sld [smem:[#allocation0]]
  $region30: #{conv_autoencoder_forward.1} parent=0
    _
  %s7 = ssub.s32 1, %s5
  %s8 = scalar_select 0, %s7, %s5
  $region1: #{conv_autoencoder_forward.1} parent=0
    #allocation2 [shape = 'u8[786432]{0}', space=vmem, size = 0xc0000, scoped, tag = 'input window, operand 1, single buffered']
    #allocation3 [shape = 's32[1]{0}', space=sflag, size = 0x4, scoped, tag = 'scoped memory for conv_autoencoder_forward.1']
    %9 = vsyncpa [#allocation3], 0
    // Predicated region
    $region2: #{conv_autoencoder_forward.1} parent=1 // pred_check
      _
    $region3: #{conv_autoencoder_forward.1} parent=1 // pred_check_branch
      %11 = sbr.rel (0) target = $region5
    $region4: #{conv_autoencoder_forward.1} parent=1 // pred_region
      _
    $region5: #{conv_autoencoder_forward.1} parent=1 // pred_fallthru
      _
    // Predicated region
    $region6: #{conv_autoencoder_forward.1} parent=1 // pred_check
      _
    $region7: #{conv_autoencoder_forward.1} parent=1 // pred_check_branch
      %13 = sbr.rel (0) target = $region9
    $region8: #{conv_autoencoder_forward.1} parent=1 // pred_region
      %s15 = ssub.s32 24576, 24576
      %16 = vsyncadd [#allocation3], %s15
      %s17 = sshll.u32 [#allocation2], 4
      %s18 = int_to_ptr.vmem [resolvable:$true] %s17
      %23 = dma.hbm_to_vmem [thread:$0]  %s1, 24576, %s18, [#allocation3], 64, 64, 4
    $region9: #{conv_autoencoder_forward.1} parent=1 // pred_fallthru
      _
    // Predicated region
    $region10: #{conv_autoencoder_forward.1} parent=1 // pred_check
      _
    $region11: #{conv_autoencoder_forward.1} parent=1 // pred_check_branch
      %25 = sbr.rel (0) target = $region13
    $region12: #{conv_autoencoder_forward.1} parent=1 // pred_region
      _
    $region13: #{conv_autoencoder_forward.1} parent=1 // pred_fallthru
      _
    // Predicated region
    $region14: #{conv_autoencoder_forward.1} parent=1 // pred_check
      _
    $region15: #{conv_autoencoder_forward.1} parent=1 // pred_check_branch
      %27 = sbr.rel (0) target = $region17
    $region16: #{conv_autoencoder_forward.1} parent=1 // pred_region
      _
    $region17: #{conv_autoencoder_forward.1} parent=1 // pred_fallthru
      _
    // Predicated region
    $region18: #{conv_autoencoder_forward.1} parent=1 // pred_check
      _
    $region19: #{conv_autoencoder_forward.1} parent=1 // pred_check_branch
      %29 = sbr.rel (0) target = $region21
    $region20: #{conv_autoencoder_forward.1} parent=1 // pred_region
      %30 = dma.done [#allocation3], 24576
    $region21: #{conv_autoencoder_forward.1} parent=1 // pred_fallthru
      _
    %v32 = vld [vmem:[%s0] sm:$0xff]
    %v33 = vld [vmem:[%s0 + $0x8] sm:$0xff]
    %v34 = vld [vmem:[%s0 + $0x10] sm:$0xff]
    %v35 = vld [vmem:[%s0 + $0x18] sm:$0xff]
    %v36 = vpack.c.bf16 %v33, %v32
    %v37 = vpack.c.bf16 %v35, %v34
    %v38 = vld [vmem:[%s2] sm:$0xf]
    %v39 = vld [vmem:[%s2 + $0x4] sm:$0xf]
    %v40 = vld [vmem:[%s2 + $0x8] sm:$0xf]
    %v41 = vld [vmem:[%s2 + $0xc] sm:$0xf]
    %v46 = vunpack.c.l.b16 %v38
    %v47 = vunpack.c.l.b16 %v39
    %v48 = vunpack.c.l.b16 %v40
    %v49 = vunpack.c.l.b16 %v41
    %v50 = vpack.c.b16 %v47, %v46
    %v51 = vpack.c.b16 %v49, %v48
    %vm52 = vcmask 261120
    %v54 = vsel %vm52, %v50, 0
    %v57 = vsel %vm52, %v51, 0
    %59 = vmatprep.subr.bf16.mxu0 0
    %60 = vmatpush1.bf16.msra.mxu0 %v36
    %61 = vmatprep.subr.bf16.mxu0 0
    %62 = vmatpush1.bf16.msra.mxu0 %v37
    %63 = vmatprep.subr.bf16.mxu0 0
    %64 = vmatpush1.bf16.msra.mxu0 0
    %65 = vmatprep.subr.bf16.mxu0 0
    %66 = vmatpush1.bf16.msra.mxu0 0
    %67 = vmatprep.subr.bf16.mxu0 0
    %68 = vmatpush1.bf16.msra.mxu0 0
    %69 = vmatprep.subr.bf16.mxu0 0
    %70 = vmatpush1.bf16.msra.mxu0 0
    %71 = vmatprep.subr.bf16.mxu0 0
    %72 = vmatpush1.bf16.msra.mxu0 0
    %73 = vmatprep.subr.bf16.mxu0 0
    %74 = vmatpush1.bf16.msra.mxu0 0
    %75 = vmatprep.subr.bf16.mxu0 0
    %76 = vmatpush1.bf16.msra.mxu0 0
    %77 = vmatprep.subr.bf16.mxu0 0
    %78 = vmatpush1.bf16.msra.mxu0 0
    %79 = vmatprep.subr.bf16.mxu0 0
    %80 = vmatpush1.bf16.msra.mxu0 0
    %81 = vmatprep.subr.bf16.mxu0 0
    %82 = vmatpush1.bf16.msra.mxu0 0
    %83 = vmatprep.subr.bf16.mxu0 0
    %84 = vmatpush1.bf16.msra.mxu0 0
    %85 = vmatprep.subr.bf16.mxu0 0
    %86 = vmatpush1.bf16.msra.mxu0 0
    %87 = vmatprep.subr.bf16.mxu0 0
    %88 = vmatpush1.bf16.msra.mxu0 0
    %89 = vmatprep.subr.bf16.mxu0 0
    %90 = vmatpush1.bf16.msra.mxu0 0
    %91 = vmatprep.mubr.bf16.mxu0 0
    %92 = vmatmul.mubr.bf16.gmra.mrb[0].mxu0 %v54
    %v93 = vpop.f32.mrb[0].mxu0
    %v94 = vadd.f32 0.0, %v93
    %v95 = vpop.f32.mrb[0].mxu0
    %v96 = vpop.f32.mrb[0].mxu0
    %v97 = vadd.f32 0.0, %v96
    %v98 = vpop.f32.mrb[0].mxu0
    %99 = vmatprep.mubr.bf16.mxu0 0
    %100 = vmatmul.mubr.bf16.gmra.mrb[0].mxu0 %v57
    %v101 = vpop.f32.mrb[0].mxu0
    %v102 = vadd.f32 0.0, %v101
    %v103 = vpop.f32.mrb[0].mxu0
    %v104 = vpop.f32.mrb[0].mxu0
    %v105 = vadd.f32 0.0, %v104
    %v106 = vpop.f32.mrb[0].mxu0
    %107 = vdwg.mxu0
    %v108 = vpack.c.bf16 %v97, %v94
    %v109 = vpack.c.bf16 %v105, %v102
    %s110 = scalar_lea.vmem %s2, 16
    %v111 = vld [vmem:[%s110] sm:$0xf]
    %v112 = vld [vmem:[%s110 + $0x4] sm:$0xf]
    %v113 = vld [vmem:[%s110 + $0x8] sm:$0xf]
    %v114 = vld [vmem:[%s110 + $0xc] sm:$0xf]
    %v119 = vunpack.c.l.b16 %v111
    %v120 = vunpack.c.l.b16 %v112
    %v121 = vunpack.c.l.b16 %v113
    %v122 = vunpack.c.l.b16 %v114
    %v123 = vpack.c.b16 %v120, %v119
    %v124 = vpack.c.b16 %v122, %v121
    %v126 = vsel %vm52, %v123, 0
    %v129 = vsel %vm52, %v124, 0
    %131 = vmatprep.subr.bf16.mxu0 0
    %132 = vmatpush1.bf16.msra.mxu0 %v36
    %133 = vmatprep.subr.bf16.mxu0 0
    %134 = vmatpush1.bf16.msra.mxu0 %v37
    %135 = vmatprep.subr.bf16.mxu0 0
    %136 = vmatpush1.bf16.msra.mxu0 0
    %137 = vmatprep.subr.bf16.mxu0 0
    %138 = vmatpush1.bf16.msra.mxu0 0
    %139 = vmatprep.subr.bf16.mxu0 0
    %140 = vmatpush1.bf16.msra.mxu0 0
    %141 = vmatprep.subr.bf16.mxu0 0
    %142 = vmatpush1.bf16.msra.mxu0 0
    %143 = vmatprep.subr.bf16.mxu0 0
    %144 = vmatpush1.bf16.msra.mxu0 0
    %145 = vmatprep.subr.bf16.mxu0 0
    %146 = vmatpush1.bf16.msra.mxu0 0
    %147 = vmatprep.subr.bf16.mxu0 0
    %148 = vmatpush1.bf16.msra.mxu0 0
    %149 = vmatprep.subr.bf16.mxu0 0
    %150 = vmatpush1.bf16.msra.mxu0 0
    %151 = vmatprep.subr.bf16.mxu0 0
    %152 = vmatpush1.bf16.msra.mxu0 0
    %153 = vmatprep.subr.bf16.mxu0 0
    %154 = vmatpush1.bf16.msra.mxu0 0
    %155 = vmatprep.subr.bf16.mxu0 0
    %156 = vmatpush1.bf16.msra.mxu0 0
    %157 = vmatprep.subr.bf16.mxu0 0
    %158 = vmatpush1.bf16.msra.mxu0 0
    %159 = vmatprep.subr.bf16.mxu0 0
    %160 = vmatpush1.bf16.msra.mxu0 0
    %161 = vmatprep.subr.bf16.mxu0 0
    %162 = vmatpush1.bf16.msra.mxu0 0
    %163 = vmatprep.mubr.bf16.mxu0 0
    %164 = vmatmul.mubr.bf16.gmra.mrb[0].mxu0 %v126
    %v165 = vpop.f32.mrb[0].mxu0
    %v166 = vadd.f32 0.0, %v165
    %v167 = vpop.f32.mrb[0].mxu0
    %v168 = vpop.f32.mrb[0].mxu0
    %v169 = vadd.f32 0.0, %v168
    %v170 = vpop.f32.mrb[0].mxu0
    %171 = vmatprep.mubr.bf16.mxu0 0
    %172 = vmatmul.mubr.bf16.gmra.mrb[0].mxu0 %v129
    %v173 = vpop.f32.mrb[0].mxu0
    %v174 = vadd.f32 0.0, %v173
    %v175 = vpop.f32.mrb[0].mxu0
    %v176 = vpop.f32.mrb[0].mxu0
    %v177 = vadd.f32 0.0, %v176
    %v178 = vpop.f32.mrb[0].mxu0
    %179 = vdwg.mxu0
    %v180 = vpack.c.bf16 %v169, %v166
    %v181 = vpack.c.bf16 %v177, %v174
    %s182 = scalar_lea.vmem %s2, 32
    %v183 = vld [vmem:[%s182] sm:$0xf]
    %v184 = vld [vmem:[%s182 + $0x4] sm:$0xf]
    %v185 = vld [vmem:[%s182 + $0x8] sm:$0xf]
    %v186 = vld [vmem:[%s182 + $0xc] sm:$0xf]
    %v191 = vunpack.c.l.b16 %v183
    %v192 = vunpack.c.l.b16 %v184
    %v193 = vunpack.c.l.b16 %v185
    %v194 = vunpack.c.l.b16 %v186
    %v195 = vpack.c.b16 %v192, %v191
    %v196 = vpack.c.b16 %v194, %v193
    %v198 = vsel %vm52, %v195, 0
    %v201 = vsel %vm52, %v196, 0
    %203 = vmatprep.subr.bf16.mxu0 0
    %204 = vmatpush1.bf16.msra.mxu0 %v36
    %205 = vmatprep.subr.bf16.mxu0 0
    %206 = vmatpush1.bf16.msra.mxu0 %v37
    %207 = vmatprep.subr.bf16.mxu0 0
    %208 = vmatpush1.bf16.msra.mxu0 0
    %209 = vmatprep.subr.bf16.mxu0 0
    %210 = vmatpush1.bf16.msra.mxu0 0
    %211 = vmatprep.subr.bf16.mxu0 0
    %212 = vmatpush1.bf16.msra.mxu0 0
    %213 = vmatprep.subr.bf16.mxu0 0
    %214 = vmatpush1.bf16.msra.mxu0 0
    %215 = vmatprep.subr.bf16.mxu0 0
    %216 = vmatpush1.bf16.msra.mxu0 0
    %217 = vmatprep.subr.bf16.mxu0 0
    %218 = vmatpush1.bf16.msra.mxu0 0
    %219 = vmatprep.subr.bf16.mxu0 0
    %220 = vmatpush1.bf16.msra.mxu0 0
    %221 = vmatprep.subr.bf16.mxu0 0
    %222 = vmatpush1.bf16.msra.mxu0 0
    %223 = vmatprep.subr.bf16.mxu0 0
    %224 = vmatpush1.bf16.msra.mxu0 0
    %225 = vmatprep.subr.bf16.mxu0 0
    %226 = vmatpush1.bf16.msra.mxu0 0
    %227 = vmatprep.subr.bf16.mxu0 0
    %228 = vmatpush1.bf16.msra.mxu0 0
    %229 = vmatprep.subr.bf16.mxu0 0
    %230 = vmatpush1.bf16.msra.mxu0 0
    %231 = vmatprep.subr.bf16.mxu0 0
    %232 = vmatpush1.bf16.msra.mxu0 0
    %233 = vmatprep.subr.bf16.mxu0 0
    %234 = vmatpush1.bf16.msra.mxu0 0
    %235 = vmatprep.mubr.bf16.mxu0 0
    %236 = vmatmul.mubr.bf16.gmra.mrb[0].mxu0 %v198
    %v237 = vpop.f32.mrb[0].mxu0
    %v238 = vadd.f32 0.0, %v237
    %v239 = vpop.f32.mrb[0].mxu0
    %v240 = vpop.f32.mrb[0].mxu0
    %v241 = vadd.f32 0.0, %v240
    %v242 = vpop.f32.mrb[0].mxu0
    %243 = vmatprep.mubr.bf16.mxu0 0
    %244 = vmatmul.mubr.bf16.gmra.mrb[0].mxu0 %v201
    %v245 = vpop.f32.mrb[0].mxu0
    %v246 = vadd.f32 0.0, %v245
    %v247 = vpop.f32.mrb[0].mxu0
    %v248 = vpop.f32.mrb[0].mxu0
    %v249 = vadd.f32 0.0, %v248
    %v250 = vpop.f32.mrb[0].mxu0
    %251 = vdwg.mxu0
    %v252 = vpack.c.bf16 %v241, %v238
    %v253 = vpack.c.bf16 %v249, %v246
    %s254 = scalar_lea.vmem %s2, 48
    %v255 = vld [vmem:[%s254] sm:$0xf]
    %v256 = vld [vmem:[%s254 + $0x4] sm:$0xf]
    %v257 = vld [vmem:[%s254 + $0x8] sm:$0xf]
    %v258 = vld [vmem:[%s254 + $0xc] sm:$0xf]
    %v263 = vunpack.c.l.b16 %v255
    %v264 = vunpack.c.l.b16 %v256
    %v265 = vunpack.c.l.b16 %v257
    %v266 = vunpack.c.l.b16 %v258
    %v267 = vpack.c.b16 %v264, %v263
    %v268 = vpack.c.b16 %v266, %v265
    %v270 = vsel %vm52, %v267, 0
    %v273 = vsel %vm52, %v268, 0
    %275 = vmatprep.subr.bf16.mxu0 0
    %276 = vmatpush1.bf16.msra.mxu0 %v36
    %277 = vmatprep.subr.bf16.mxu0 0
    %278 = vmatpush1.bf16.msra.mxu0 %v37
    %279 = vmatprep.subr.bf16.mxu0 0
    %280 = vmatpush1.bf16.msra.mxu0 0
    %281 = vmatprep.subr.bf16.mxu0 0
    %282 = vmatpush1.bf16.msra.mxu0 0
    %283 = vmatprep.subr.bf16.mxu0 0
    %284 = vmatpush1.bf16.msra.mxu0 0
    %285 = vmatprep.subr.bf16.mxu0 0
    %286 = vmatpush1.bf16.msra.mxu0 0
    %287 = vmatprep.subr.bf16.mxu0 0
    %288 = vmatpush1.bf16.msra.mxu0 0
    %289 = vmatprep.subr.bf16.mxu0 0
    %290 = vmatpush1.bf16.msra.mxu0 0
    %291 = vmatprep.subr.bf16.mxu0 0
    %292 = vmatpush1.bf16.msra.mxu0 0
    %293 = vmatprep.subr.bf16.mxu0 0
    %294 = vmatpush1.bf16.msra.mxu0 0
    %295 = vmatprep.subr.bf16.mxu0 0
    %296 = vmatpush1.bf16.msra.mxu0 0
    %297 = vmatprep.subr.bf16.mxu0 0
    %298 = vmatpush1.bf16.msra.mxu0 0
    %299 = vmatprep.subr.bf16.mxu0 0
    %300 = vmatpush1.bf16.msra.mxu0 0
    %301 = vmatprep.subr.bf16.mxu0 0
    %302 = vmatpush1.bf16.msra.mxu0 0
    %303 = vmatprep.subr.bf16.mxu0 0
    %304 = vmatpush1.bf16.msra.mxu0 0
    %305 = vmatprep.subr.bf16.mxu0 0
    %306 = vmatpush1.bf16.msra.mxu0 0
    %307 = vmatprep.mubr.bf16.mxu0 0
    %308 = vmatmul.mubr.bf16.gmra.mrb[0].mxu0 %v270
    %v309 = vpop.f32.mrb[0].mxu0
    %v310 = vadd.f32 0.0, %v309
    %v311 = vpop.f32.mrb[0].mxu0
    %v312 = vpop.f32.mrb[0].mxu0
    %v313 = vadd.f32 0.0, %v312
    %v314 = vpop.f32.mrb[0].mxu0
    %315 = vmatprep.mubr.bf16.mxu0 0
    %316 = vmatmul.mubr.bf16.gmra.mrb[0].mxu0 %v273
    %v317 = vpop.f32.mrb[0].mxu0
    %v318 = vadd.f32 0.0, %v317
    %v319 = vpop.f32.mrb[0].mxu0
    %v320 = vpop.f32.mrb[0].mxu0
    %v321 = vadd.f32 0.0, %v320
    %v322 = vpop.f32.mrb[0].mxu0
    %323 = vdwg.mxu0
    %v324 = vpack.c.bf16 %v313, %v310
    %v325 = vpack.c.bf16 %v321, %v318
    %v326 = vld [vmem:[#allocation2] sm:$0xf]
    %v327 = vld [vmem:[#allocation2 + $0x4] sm:$0xf]
    %v328 = vld [vmem:[#allocation2 + $0x8] sm:$0xf]
    %v329 = vld [vmem:[#allocation2 + $0xc] sm:$0xf]
    %v330 = vld [vmem:[#allocation2 + $0x10] sm:$0xf]
    %v331 = vld [vmem:[#allocation2 + $0x14] sm:$0xf]
    %v332 = vld [vmem:[#allocation2 + $0x18] sm:$0xf]
    %v333 = vld [vmem:[#allocation2 + $0x1c] sm:$0xf]
    %v334 = vld [vmem:[#allocation2 + $0x20] sm:$0xf]
    %v335 = vld [vmem:[#allocation2 + $0x24] sm:$0xf]
    %v336 = vld [vmem:[#allocation2 + $0x28] sm:$0xf]
    %v337 = vld [vmem:[#allocation2 + $0x2c] sm:$0xf]
    %v338 = vld [vmem:[#allocation2 + $0x30] sm:$0xf]
    %v339 = vld [vmem:[#allocation2 + $0x34] sm:$0xf]
    %v340 = vld [vmem:[#allocation2 + $0x38] sm:$0xf]
    %v341 = vld [vmem:[#allocation2 + $0x3c] sm:$0xf]
    %v342 = vld [vmem:[#allocation2 + $0x40] sm:$0xf]
    %v343 = vld [vmem:[#allocation2 + $0x44] sm:$0xf]
    %v344 = vld [vmem:[#allocation2 + $0x48] sm:$0xf]
    %v345 = vld [vmem:[#allocation2 + $0x4c] sm:$0xf]
    %v346 = vld [vmem:[#allocation2 + $0x50] sm:$0xf]
    %v347 = vld [vmem:[#allocation2 + $0x54] sm:$0xf]
    %v348 = vld [vmem:[#allocation2 + $0x58] sm:$0xf]
    %v349 = vld [vmem:[#allocation2 + $0x5c] sm:$0xf]
    %v350 = vld [vmem:[#allocation2 + $0x60] sm:$0xf]
    %v351 = vld [vmem:[#allocation2 + $0x64] sm:$0xf]
    %v352 = vld [vmem:[#allocation2 + $0x68] sm:$0xf]
    %v353 = vld [vmem:[#allocation2 + $0x6c] sm:$0xf]
    %v354 = vld [vmem:[#allocation2 + $0x70] sm:$0xf]
    %v355 = vld [vmem:[#allocation2 + $0x74] sm:$0xf]
    %v356 = vld [vmem:[#allocation2 + $0x78] sm:$0xf]
    %v357 = vld [vmem:[#allocation2 + $0x7c] sm:$0xf]
    %v358 = vld [vmem:[#allocation2 + $0x80] sm:$0xf]
    %v359 = vld [vmem:[#allocation2 + $0x84] sm:$0xf]
    %v360 = vld [vmem:[#allocation2 + $0x88] sm:$0xf]
    %v361 = vld [vmem:[#allocation2 + $0x8c] sm:$0xf]
    %v362 = vld [vmem:[#allocation2 + $0x90] sm:$0xf]
    %v363 = vld [vmem:[#allocation2 + $0x94] sm:$0xf]
    %v364 = vld [vmem:[#allocation2 + $0x98] sm:$0xf]
    %v365 = vld [vmem:[#allocation2 + $0x9c] sm:$0xf]
    %v366 = vld [vmem:[#allocation2 + $0xa0] sm:$0xf]
    %v367 = vld [vmem:[#allocation2 + $0xa4] sm:$0xf]
    %v368 = vld [vmem:[#allocation2 + $0xa8] sm:$0xf]
    %v369 = vld [vmem:[#allocation2 + $0xac] sm:$0xf]
    %v370 = vld [vmem:[#allocation2 + $0xb0] sm:$0xf]
    %v371 = vld [vmem:[#allocation2 + $0xb4] sm:$0xf]
    %v372 = vld [vmem:[#allocation2 + $0xb8] sm:$0xf]
    %v373 = vld [vmem:[#allocation2 + $0xbc] sm:$0xf]
    %v374 = vld [vmem:[#allocation2 + $0xc0] sm:$0xf]
    %v375 = vld [vmem:[#allocation2 + $0xc4] sm:$0xf]
    %v376 = vld [vmem:[#allocation2 + $0xc8] sm:$0xf]
    %v377 = vld [vmem:[#allocation2 + $0xcc] sm:$0xf]
    %v378 = vld [vmem:[#allocation2 + $0xd0] sm:$0xf]
    %v379 = vld [vmem:[#allocation2 + $0xd4] sm:$0xf]
    %v380 = vld [vmem:[#allocation2 + $0xd8] sm:$0xf]
    %v381 = vld [vmem:[#allocation2 + $0xdc] sm:$0xf]
    %v382 = vld [vmem:[#allocation2 + $0xe0] sm:$0xf]
    %v383 = vld [vmem:[#allocation2 + $0xe4] sm:$0xf]
    %v384 = vld [vmem:[#allocation2 + $0xe8] sm:$0xf]
    %v385 = vld [vmem:[#allocation2 + $0xec] sm:$0xf]
    %v386 = vld [vmem:[#allocation2 + $0xf0] sm:$0xf]
    %v387 = vld [vmem:[#allocation2 + $0xf4] sm:$0xf]
    %v388 = vld [vmem:[#allocation2 + $0xf8] sm:$0xf]
    %v389 = vld [vmem:[#allocation2 + $0xfc] sm:$0xf]
    %v390 = vld [vmem:[%s3] sm:$0x1]
    %v392 = vlaneseq
    %v393 = vshrl.u32 %v392, 7
    %v394 = vsub.s32 0, %v393
    %v395 = vrot.slane %v390, %v394
    %v461 = vunpack.c.l.b16 %v326
    %v462 = vunpack.c.l.b16 %v327
    %v463 = vunpack.c.l.b16 %v328
    %v464 = vunpack.c.l.b16 %v329
    %v465 = vunpack.c.l.b16 %v330
    %v466 = vunpack.c.l.b16 %v331
    %v467 = vunpack.c.l.b16 %v332
    %v468 = vunpack.c.l.b16 %v333
    %v469 = vunpack.c.l.b16 %v334
    %v470 = vunpack.c.l.b16 %v335
    %v471 = vunpack.c.l.b16 %v336
    %v472 = vunpack.c.l.b16 %v337
    %v473 = vunpack.c.l.b16 %v338
    %v474 = vunpack.c.l.b16 %v339
    %v475 = vunpack.c.l.b16 %v340
    %v476 = vunpack.c.l.b16 %v341
    %v477 = vunpack.c.l.b16 %v342
    %v478 = vunpack.c.l.b16 %v343
    %v479 = vunpack.c.l.b16 %v344
    %v480 = vunpack.c.l.b16 %v345
    %v481 = vunpack.c.l.b16 %v346
    %v482 = vunpack.c.l.b16 %v347
    %v483 = vunpack.c.l.b16 %v348
    %v484 = vunpack.c.l.b16 %v349
    %v485 = vunpack.c.l.b16 %v350
    %v486 = vunpack.c.l.b16 %v351
    %v487 = vunpack.c.l.b16 %v352
    %v488 = vunpack.c.l.b16 %v353
    %v489 = vunpack.c.l.b16 %v354
    %v490 = vunpack.c.l.b16 %v355
    %v491 = vunpack.c.l.b16 %v356
    %v492 = vunpack.c.l.b16 %v357
    %v493 = vunpack.c.l.b16 %v358
    %v494 = vunpack.c.l.b16 %v359
    %v495 = vunpack.c.l.b16 %v360
    %v496 = vunpack.c.l.b16 %v361
    %v497 = vunpack.c.l.b16 %v362
    %v498 = vunpack.c.l.b16 %v363
    %v499 = vunpack.c.l.b16 %v364
    %v500 = vunpack.c.l.b16 %v365
    %v501 = vunpack.c.l.b16 %v366
    %v502 = vunpack.c.l.b16 %v367
    %v503 = vunpack.c.l.b16 %v368
    %v504 = vunpack.c.l.b16 %v369
    %v505 = vunpack.c.l.b16 %v370
    %v506 = vunpack.c.l.b16 %v371
    %v507 = vunpack.c.l.b16 %v372
    %v508 = vunpack.c.l.b16 %v373
    %v509 = vunpack.c.l.b16 %v374
    %v510 = vunpack.c.l.b16 %v375
    %v511 = vunpack.c.l.b16 %v376
    %v512 = vunpack.c.l.b16 %v377
    %v513 = vunpack.c.l.b16 %v378
    %v514 = vunpack.c.l.b16 %v379
    %v515 = vunpack.c.l.b16 %v380
    %v516 = vunpack.c.l.b16 %v381
    %v517 = vunpack.c.l.b16 %v382
    %v518 = vunpack.c.l.b16 %v383
    %v519 = vunpack.c.l.b16 %v384
    %v520 = vunpack.c.l.b16 %v385
    %v521 = vunpack.c.l.b16 %v386
    %v522 = vunpack.c.l.b16 %v387
    %v523 = vunpack.c.l.b16 %v388
    %v524 = vunpack.c.l.b16 %v389
    %v525 = vpack.c.b16 %v462, %v461
    %v526 = vpack.c.b16 %v464, %v463
    %v527 = vpack.c.b16 %v466, %v465
    %v528 = vpack.c.b16 %v468, %v467
    %v529 = vpack.c.b16 %v470, %v469
    %v530 = vpack.c.b16 %v472, %v471
    %v531 = vpack.c.b16 %v474, %v473
    %v532 = vpack.c.b16 %v476, %v475
    %v533 = vpack.c.b16 %v478, %v477
    %v534 = vpack.c.b16 %v480, %v479
    %v535 = vpack.c.b16 %v482, %v481
    %v536 = vpack.c.b16 %v484, %v483
    %v537 = vpack.c.b16 %v486, %v485
    %v538 = vpack.c.b16 %v488, %v487
    %v539 = vpack.c.b16 %v490, %v489
    %v540 = vpack.c.b16 %v492, %v491
    %v541 = vpack.c.b16 %v494, %v493
    %v542 = vpack.c.b16 %v496, %v495
    %v543 = vpack.c.b16 %v498, %v497
    %v544 = vpack.c.b16 %v500, %v499
    %v545 = vpack.c.b16 %v502, %v501
    %v546 = vpack.c.b16 %v504, %v503
    %v547 = vpack.c.b16 %v506, %v505
    %v548 = vpack.c.b16 %v508, %v507
    %v549 = vpack.c.b16 %v510, %v509
    %v550 = vpack.c.b16 %v512, %v511
    %v551 = vpack.c.b16 %v514, %v513
    %v552 = vpack.c.b16 %v516, %v515
    %v553 = vpack.c.b16 %v518, %v517
    %v554 = vpack.c.b16 %v520, %v519
    %v555 = vpack.c.b16 %v522, %v521
    %v556 = vpack.c.b16 %v524, %v523
    %589 = vmatprep.subr.bf16.mxu0 0
    %590 = vmatpush1.bf16.msra.mxu0 %v525
    %591 = vmatprep.subr.bf16.mxu0 0
    %592 = vmatpush1.bf16.msra.mxu0 %v526
    %593 = vmatprep.subr.bf16.mxu0 0
    %594 = vmatpush1.bf16.msra.mxu0 %v527
    %595 = vmatprep.subr.bf16.mxu0 0
    %596 = vmatpush1.bf16.msra.mxu0 %v528
    %597 = vmatprep.subr.bf16.mxu0 0
    %598 = vmatpush1.bf16.msra.mxu0 %v529
    %599 = vmatprep.subr.bf16.mxu0 0
    %600 = vmatpush1.bf16.msra.mxu0 %v530
    %601 = vmatprep.subr.bf16.mxu0 0
    %602 = vmatpush1.bf16.msra.mxu0 %v531
    %603 = vmatprep.subr.bf16.mxu0 0
    %604 = vmatpush1.bf16.msra.mxu0 %v532
    %605 = vmatprep.subr.bf16.mxu0 0
    %606 = vmatpush1.bf16.msra.mxu0 %v533
    %607 = vmatprep.subr.bf16.mxu0 0
    %608 = vmatpush1.bf16.msra.mxu0 %v534
    %609 = vmatprep.subr.bf16.mxu0 0
    %610 = vmatpush1.bf16.msra.mxu0 %v535
    %611 = vmatprep.subr.bf16.mxu0 0
    %612 = vmatpush1.bf16.msra.mxu0 %v536
    %613 = vmatprep.subr.bf16.mxu0 0
    %614 = vmatpush1.bf16.msra.mxu0 %v537
    %615 = vmatprep.subr.bf16.mxu0 0
    %616 = vmatpush1.bf16.msra.mxu0 %v538
    %617 = vmatprep.subr.bf16.mxu0 0
    %618 = vmatpush1.bf16.msra.mxu0 %v539
    %619 = vmatprep.subr.bf16.mxu0 0
    %620 = vmatpush1.bf16.msra.mxu0 %v540
    %621 = vmatprep.mubr.bf16.mxu0 %v180
    %622 = vmatmul.mubr.bf16.gmra.mrb[0].mxu0 %v108
    %v623 = vpop.f32.mrb[0].mxu0
    %v624 = vadd.f32 %v395, %v623
    %v625 = vpop.f32.mrb[0].mxu0
    %v626 = vpop.f32.mrb[0].mxu0
    %v627 = vadd.f32 %v395, %v626
    %v628 = vpop.f32.mrb[0].mxu0
    %629 = vmatprep.mubr.bf16.mxu0 %v181
    %630 = vmatmul.mubr.bf16.gmra.mrb[0].mxu0 %v109
    %v631 = vpop.f32.mrb[0].mxu0
    %v632 = vadd.f32 %v395, %v631
    %v633 = vpop.f32.mrb[0].mxu0
    %v634 = vpop.f32.mrb[0].mxu0
    %v635 = vadd.f32 %v395, %v634
    %v636 = vpop.f32.mrb[0].mxu0
    %637 = vdwg.mxu0
    %638 = vmatprep.subr.bf16.mxu0 0
    %639 = vmatpush1.bf16.msra.mxu0 %v541
    %640 = vmatprep.subr.bf16.mxu0 0
    %641 = vmatpush1.bf16.msra.mxu0 %v542
    %642 = vmatprep.subr.bf16.mxu0 0
    %643 = vmatpush1.bf16.msra.mxu0 %v543
    %644 = vmatprep.subr.bf16.mxu0 0
    %645 = vmatpush1.bf16.msra.mxu0 %v544
    %646 = vmatprep.subr.bf16.mxu0 0
    %647 = vmatpush1.bf16.msra.mxu0 %v545
    %648 = vmatprep.subr.bf16.mxu0 0
    %649 = vmatpush1.bf16.msra.mxu0 %v546
    %650 = vmatprep.subr.bf16.mxu0 0
    %651 = vmatpush1.bf16.msra.mxu0 %v547
    %652 = vmatprep.subr.bf16.mxu0 0
    %653 = vmatpush1.bf16.msra.mxu0 %v548
    %654 = vmatprep.subr.bf16.mxu0 0
    %655 = vmatpush1.bf16.msra.mxu0 %v549
    %656 = vmatprep.subr.bf16.mxu0 0
    %657 = vmatpush1.bf16.msra.mxu0 %v550
    %658 = vmatprep.subr.bf16.mxu0 0
    %659 = vmatpush1.bf16.msra.mxu0 %v551
    %660 = vmatprep.subr.bf16.mxu0 0
    %661 = vmatpush1.bf16.msra.mxu0 %v552
    %662 = vmatprep.subr.bf16.mxu0 0
    %663 = vmatpush1.bf16.msra.mxu0 %v553
    %664 = vmatprep.subr.bf16.mxu0 0
    %665 = vmatpush1.bf16.msra.mxu0 %v554
    %666 = vmatprep.subr.bf16.mxu0 0
    %667 = vmatpush1.bf16.msra.mxu0 %v555
    %668 = vmatprep.subr.bf16.mxu0 0
    %669 = vmatpush1.bf16.msra.mxu0 %v556
    %670 = vmatprep.mubr.bf16.mxu0 %v324
    %671 = vmatmul.mubr.bf16.gmra.mrb[0].mxu0 %v252
    %v672 = vpop.f32.mrb[0].mxu0
    %v673 = vadd.f32 %v624, %v672
    %v674 = vpop.f32.mrb[0].mxu0
    %v675 = vpop.f32.mrb[0].mxu0
    %v676 = vadd.f32 %v627, %v675
    %v677 = vpop.f32.mrb[0].mxu0
    %678 = vmatprep.mubr.bf16.mxu0 %v325
    %679 = vmatmul.mubr.bf16.gmra.mrb[0].mxu0 %v253
    %v680 = vpop.f32.mrb[0].mxu0
    %v681 = vadd.f32 %v632, %v680
    %v682 = vpop.f32.mrb[0].mxu0
    %v683 = vpop.f32.mrb[0].mxu0
    %v684 = vadd.f32 %v635, %v683
    %v685 = vpop.f32.mrb[0].mxu0
    %686 = vdwg.mxu0
    %v687 = vmax.f32 %v673, 0.0
    %v688 = vmax.f32 %v676, 0.0
    %v689 = vmax.f32 %v681, 0.0
    %v690 = vmax.f32 %v684, 0.0
    %v691 = vpack.c.bf16 %v688, %v687
    %v692 = vpack.c.bf16 %v690, %v689
    %s693 = scalar_lea.vmem %s2, 64
    %v694 = vld [vmem:[%s693] sm:$0xf]
    %v695 = vld [vmem:[%s693 + $0x4] sm:$0xf]
    %v696 = vld [vmem:[%s693 + $0x8] sm:$0xf]
    %v697 = vld [vmem:[%s693 + $0xc] sm:$0xf]
    %v702 = vunpack.c.l.b16 %v694
    %v703 = vunpack.c.l.b16 %v695
    %v704 = vunpack.c.l.b16 %v696
    %v705 = vunpack.c.l.b16 %v697
    %v706 = vpack.c.b16 %v703, %v702
    %v707 = vpack.c.b16 %v705, %v704
    %v709 = vsel %vm52, %v706, 0
    %v712 = vsel %vm52, %v707, 0
    %714 = vmatprep.subr.bf16.mxu0 0
    %715 = vmatpush1.bf16.msra.mxu0 %v691
    %716 = vmatprep.subr.bf16.mxu0 0
    %717 = vmatpush1.bf16.msra.mxu0 %v692
    %718 = vmatprep.subr.bf16.mxu0 0
    %719 = vmatpush1.bf16.msra.mxu0 0
    %720 = vmatprep.subr.bf16.mxu0 0
    %721 = vmatpush1.bf16.msra.mxu0 0
    %722 = vmatprep.subr.bf16.mxu0 0
    %723 = vmatpush1.bf16.msra.mxu0 0
    %724 = vmatprep.subr.bf16.mxu0 0
    %725 = vmatpush1.bf16.msra.mxu0 0
    %726 = vmatprep.subr.bf16.mxu0 0
    %727 = vmatpush1.bf16.msra.mxu0 0
    %728 = vmatprep.subr.bf16.mxu0 0
    %729 = vmatpush1.bf16.msra.mxu0 0
    %730 = vmatprep.subr.bf16.mxu0 0
    %731 = vmatpush1.bf16.msra.mxu0 0
    %732 = vmatprep.subr.bf16.mxu0 0
    %733 = vmatpush1.bf16.msra.mxu0 0
    %734 = vmatprep.subr.bf16.mxu0 0
    %735 = vmatpush1.bf16.msra.mxu0 0
    %736 = vmatprep.subr.bf16.mxu0 0
    %737 = vmatpush1.bf16.msra.mxu0 0
    %738 = vmatprep.subr.bf16.mxu0 0
    %739 = vmatpush1.bf16.msra.mxu0 0
    %740 = vmatprep.subr.bf16.mxu0 0
    %741 = vmatpush1.bf16.msra.mxu0 0
    %742 = vmatprep.subr.bf16.mxu0 0
    %743 = vmatpush1.bf16.msra.mxu0 0
    %744 = vmatprep.subr.bf16.mxu0 0
    %745 = vmatpush1.bf16.msra.mxu0 0
    %746 = vmatprep.mubr.bf16.mxu0 0
    %747 = vmatmul.mubr.bf16.gmra.mrb[0].mxu0 %v709
    %v748 = vpop.f32.mrb[0].mxu0
    %v749 = vadd.f32 0.0, %v748
    %v750 = vpop.f32.mrb[0].mxu0
    %v751 = vpop.f32.mrb[0].mxu0
    %v752 = vadd.f32 0.0, %v751
    %v753 = vpop.f32.mrb[0].mxu0
    %754 = vmatprep.mubr.bf16.mxu0 0
    %755 = vmatmul.mubr.bf16.gmra.mrb[0].mxu0 %v712
    %v756 = vpop.f32.mrb[0].mxu0
    %v757 = vadd.f32 0.0, %v756
    %v758 = vpop.f32.mrb[0].mxu0
    %v759 = vpop.f32.mrb[0].mxu0
    %v760 = vadd.f32 0.0, %v759
    %v761 = vpop.f32.mrb[0].mxu0
    %762 = vdwg.mxu0
    %v763 = vpack.c.bf16 %v752, %v749
    %v764 = vpack.c.bf16 %v760, %v757
    %s765 = scalar_lea.vmem %s2, 80
    %v766 = vld [vmem:[%s765] sm:$0xf]
    %v767 = vld [vmem:[%s765 + $0x4] sm:$0xf]
    %v768 = vld [vmem:[%s765 + $0x8] sm:$0xf]
    %v769 = vld [vmem:[%s765 + $0xc] sm:$0xf]
    %v774 = vunpack.c.l.b16 %v766
    %v775 = vunpack.c.l.b16 %v767
    %v776 = vunpack.c.l.b16 %v768
    %v777 = vunpack.c.l.b16 %v769
    %v778 = vpack.c.b16 %v775, %v774
    %v779 = vpack.c.b16 %v777, %v776
    %v781 = vsel %vm52, %v778, 0
    %v784 = vsel %vm52, %v779, 0
    %786 = vmatprep.subr.bf16.mxu0 0
    %787 = vmatpush1.bf16.msra.mxu0 %v691
    %788 = vmatprep.subr.bf16.mxu0 0
    %789 = vmatpush1.bf16.msra.mxu0 %v692
    %790 = vmatprep.subr.bf16.mxu0 0
    %791 = vmatpush1.bf16.msra.mxu0 0
    %792 = vmatprep.subr.bf16.mxu0 0
    %793 = vmatpush1.bf16.msra.mxu0 0
    %794 = vmatprep.subr.bf16.mxu0 0
    %795 = vmatpush1.bf16.msra.mxu0 0
    %796 = vmatprep.subr.bf16.mxu0 0
    %797 = vmatpush1.bf16.msra.mxu0 0
    %798 = vmatprep.subr.bf16.mxu0 0
    %799 = vmatpush1.bf16.msra.mxu0 0
    %800 = vmatprep.subr.bf16.mxu0 0
    %801 = vmatpush1.bf16.msra.mxu0 0
    %802 = vmatprep.subr.bf16.mxu0 0
    %803 = vmatpush1.bf16.msra.mxu0 0
    %804 = vmatprep.subr.bf16.mxu0 0
    %805 = vmatpush1.bf16.msra.mxu0 0
    %806 = vmatprep.subr.bf16.mxu0 0
    %807 = vmatpush1.bf16.msra.mxu0 0
    %808 = vmatprep.subr.bf16.mxu0 0
    %809 = vmatpush1.bf16.msra.mxu0 0
    %810 = vmatprep.subr.bf16.mxu0 0
    %811 = vmatpush1.bf16.msra.mxu0 0
    %812 = vmatprep.subr.bf16.mxu0 0
    %813 = vmatpush1.bf16.msra.mxu0 0
    %814 = vmatprep.subr.bf16.mxu0 0
    %815 = vmatpush1.bf16.msra.mxu0 0
    %816 = vmatprep.subr.bf16.mxu0 0
    %817 = vmatpush1.bf16.msra.mxu0 0
    %818 = vmatprep.mubr.bf16.mxu0 0
    %819 = vmatmul.mubr.bf16.gmra.mrb[0].mxu0 %v781
    %v820 = vpop.f32.mrb[0].mxu0
    %v821 = vadd.f32 0.0, %v820
    %v822 = vpop.f32.mrb[0].mxu0
    %v823 = vpop.f32.mrb[0].mxu0
    %v824 = vadd.f32 0.0, %v823
    %v825 = vpop.f32.mrb[0].mxu0
    %826 = vmatprep.mubr.bf16.mxu0 0
    %827 = vmatmul.mubr.bf16.gmra.mrb[0].mxu0 %v784
    %v828 = vpop.f32.mrb[0].mxu0
    %v829 = vadd.f32 0.0, %v828
    %v830 = vpop.f32.mrb[0].mxu0
    %v831 = vpop.f32.mrb[0].mxu0
    %v832 = vadd.f32 0.0, %v831
    %v833 = vpop.f32.mrb[0].mxu0
    %834 = vdwg.mxu0
    %v835 = vpack.c.bf16 %v824, %v821
    %v836 = vpack.c.bf16 %v832, %v829
    %s837 = scalar_lea.vmem %s2, 96
    %v838 = vld [vmem:[%s837] sm:$0xf]
    %v839 = vld [vmem:[%s837 + $0x4] sm:$0xf]
    %v840 = vld [vmem:[%s837 + $0x8] sm:$0xf]
    %v841 = vld [vmem:[%s837 + $0xc] sm:$0xf]
    %v846 = vunpack.c.l.b16 %v838
    %v847 = vunpack.c.l.b16 %v839
    %v848 = vunpack.c.l.b16 %v840
    %v849 = vunpack.c.l.b16 %v841
    %v850 = vpack.c.b16 %v847, %v846
    %v851 = vpack.c.b16 %v849, %v848
    %v853 = vsel %vm52, %v850, 0
    %v856 = vsel %vm52, %v851, 0
    %858 = vmatprep.subr.bf16.mxu0 0
    %859 = vmatpush1.bf16.msra.mxu0 %v691
    %860 = vmatprep.subr.bf16.mxu0 0
    %861 = vmatpush1.bf16.msra.mxu0 %v692
    %862 = vmatprep.subr.bf16.mxu0 0
    %863 = vmatpush1.bf16.msra.mxu0 0
    %864 = vmatprep.subr.bf16.mxu0 0
    %865 = vmatpush1.bf16.msra.mxu0 0
    %866 = vmatprep.subr.bf16.mxu0 0
    %867 = vmatpush1.bf16.msra.mxu0 0
    %868 = vmatprep.subr.bf16.mxu0 0
    %869 = vmatpush1.bf16.msra.mxu0 0
    %870 = vmatprep.subr.bf16.mxu0 0
    %871 = vmatpush1.bf16.msra.mxu0 0
    %872 = vmatprep.subr.bf16.mxu0 0
    %873 = vmatpush1.bf16.msra.mxu0 0
    %874 = vmatprep.subr.bf16.mxu0 0
    %875 = vmatpush1.bf16.msra.mxu0 0
    %876 = vmatprep.subr.bf16.mxu0 0
    %877 = vmatpush1.bf16.msra.mxu0 0
    %878 = vmatprep.subr.bf16.mxu0 0
    %879 = vmatpush1.bf16.msra.mxu0 0
    %880 = vmatprep.subr.bf16.mxu0 0
    %881 = vmatpush1.bf16.msra.mxu0 0
    %882 = vmatprep.subr.bf16.mxu0 0
    %883 = vmatpush1.bf16.msra.mxu0 0
    %884 = vmatprep.subr.bf16.mxu0 0
    %885 = vmatpush1.bf16.msra.mxu0 0
    %886 = vmatprep.subr.bf16.mxu0 0
    %887 = vmatpush1.bf16.msra.mxu0 0
    %888 = vmatprep.subr.bf16.mxu0 0
    %889 = vmatpush1.bf16.msra.mxu0 0
    %890 = vmatprep.mubr.bf16.mxu0 0
    %891 = vmatmul.mubr.bf16.gmra.mrb[0].mxu0 %v853
    %v892 = vpop.f32.mrb[0].mxu0
    %v893 = vadd.f32 0.0, %v892
    %v894 = vpop.f32.mrb[0].mxu0
    %v895 = vpop.f32.mrb[0].mxu0
    %v896 = vadd.f32 0.0, %v895
    %v897 = vpop.f32.mrb[0].mxu0
    %898 = vmatprep.mubr.bf16.mxu0 0
    %899 = vmatmul.mubr.bf16.gmra.mrb[0].mxu0 %v856
    %v900 = vpop.f32.mrb[0].mxu0
    %v901 = vadd.f32 0.0, %v900
    %v902 = vpop.f32.mrb[0].mxu0
    %v903 = vpop.f32.mrb[0].mxu0
    %v904 = vadd.f32 0.0, %v903
    %v905 = vpop.f32.mrb[0].mxu0
    %906 = vdwg.mxu0
    %v907 = vpack.c.bf16 %v896, %v893
    %v908 = vpack.c.bf16 %v904, %v901
    %s909 = scalar_lea.vmem %s2, 112
    %v910 = vld [vmem:[%s909] sm:$0xf]
    %v911 = vld [vmem:[%s909 + $0x4] sm:$0xf]
    %v912 = vld [vmem:[%s909 + $0x8] sm:$0xf]
    %v913 = vld [vmem:[%s909 + $0xc] sm:$0xf]
    %v918 = vunpack.c.l.b16 %v910
    %v919 = vunpack.c.l.b16 %v911
    %v920 = vunpack.c.l.b16 %v912
    %v921 = vunpack.c.l.b16 %v913
    %v922 = vpack.c.b16 %v919, %v918
    %v923 = vpack.c.b16 %v921, %v920
    %v925 = vsel %vm52, %v922, 0
    %v928 = vsel %vm52, %v923, 0
    %930 = vmatprep.subr.bf16.mxu0 0
    %931 = vmatpush1.bf16.msra.mxu0 %v691
    %932 = vmatprep.subr.bf16.mxu0 0
    %933 = vmatpush1.bf16.msra.mxu0 %v692
    %934 = vmatprep.subr.bf16.mxu0 0
    %935 = vmatpush1.bf16.msra.mxu0 0
    %936 = vmatprep.subr.bf16.mxu0 0
    %937 = vmatpush1.bf16.msra.mxu0 0
    %938 = vmatprep.subr.bf16.mxu0 0
    %939 = vmatpush1.bf16.msra.mxu0 0
    %940 = vmatprep.subr.bf16.mxu0 0
    %941 = vmatpush1.bf16.msra.mxu0 0
    %942 = vmatprep.subr.bf16.mxu0 0
    %943 = vmatpush1.bf16.msra.mxu0 0
    %944 = vmatprep.subr.bf16.mxu0 0
    %945 = vmatpush1.bf16.msra.mxu0 0
    %946 = vmatprep.subr.bf16.mxu0 0
    %947 = vmatpush1.bf16.msra.mxu0 0
    %948 = vmatprep.subr.bf16.mxu0 0
    %949 = vmatpush1.bf16.msra.mxu0 0
    %950 = vmatprep.subr.bf16.mxu0 0
    %951 = vmatpush1.bf16.msra.mxu0 0
    %952 = vmatprep.subr.bf16.mxu0 0
    %953 = vmatpush1.bf16.msra.mxu0 0
    %954 = vmatprep.subr.bf16.mxu0 0
    %955 = vmatpush1.bf16.msra.mxu0 0
    %956 = vmatprep.subr.bf16.mxu0 0
    %957 = vmatpush1.bf16.msra.mxu0 0
    %958 = vmatprep.subr.bf16.mxu0 0
    %959 = vmatpush1.bf16.msra.mxu0 0
    %960 = vmatprep.subr.bf16.mxu0 0
    %961 = vmatpush1.bf16.msra.mxu0 0
    %962 = vmatprep.mubr.bf16.mxu0 0
    %963 = vmatmul.mubr.bf16.gmra.mrb[0].mxu0 %v925
    %v964 = vpop.f32.mrb[0].mxu0
    %v965 = vadd.f32 0.0, %v964
    %v966 = vpop.f32.mrb[0].mxu0
    %v967 = vpop.f32.mrb[0].mxu0
    %v968 = vadd.f32 0.0, %v967
    %v969 = vpop.f32.mrb[0].mxu0
    %970 = vmatprep.mubr.bf16.mxu0 0
    %971 = vmatmul.mubr.bf16.gmra.mrb[0].mxu0 %v928
    %v972 = vpop.f32.mrb[0].mxu0
    %v973 = vadd.f32 0.0, %v972
    %v974 = vpop.f32.mrb[0].mxu0
    %v975 = vpop.f32.mrb[0].mxu0
    %v976 = vadd.f32 0.0, %v975
    %v977 = vpop.f32.mrb[0].mxu0
    %978 = vdwg.mxu0
    %v979 = vpack.c.bf16 %v968, %v965
    %v980 = vpack.c.bf16 %v976, %v973
    %s981 = scalar_lea.vmem [#allocation2], 256
    %v982 = vld [vmem:[%s981] sm:$0xf]
    %v983 = vld [vmem:[%s981 + $0x4] sm:$0xf]
    %v984 = vld [vmem:[%s981 + $0x8] sm:$0xf]
    %v985 = vld [vmem:[%s981 + $0xc] sm:$0xf]
    %v986 = vld [vmem:[%s981 + $0x10] sm:$0xf]
    %v987 = vld [vmem:[%s981 + $0x14] sm:$0xf]
    %v988 = vld [vmem:[%s981 + $0x18] sm:$0xf]
    %v989 = vld [vmem:[%s981 + $0x1c] sm:$0xf]
    %v990 = vld [vmem:[%s981 + $0x20] sm:$0xf]
    %v991 = vld [vmem:[%s981 + $0x24] sm:$0xf]
    %v992 = vld [vmem:[%s981 + $0x28] sm:$0xf]
    %v993 = vld [vmem:[%s981 + $0x2c] sm:$0xf]
    %v994 = vld [vmem:[%s981 + $0x30] sm:$0xf]
    %v995 = vld [vmem:[%s981 + $0x34] sm:$0xf]
    %v996 = vld [vmem:[%s981 + $0x38] sm:$0xf]
    %v997 = vld [vmem:[%s981 + $0x3c] sm:$0xf]
    %v998 = vld [vmem:[%s981 + $0x40] sm:$0xf]
    %v999 = vld [vmem:[%s981 + $0x44] sm:$0xf]
    %v1000 = vld [vmem:[%s981 + $0x48] sm:$0xf]
    %v1001 = vld [vmem:[%s981 + $0x4c] sm:$0xf]
    %v1002 = vld [vmem:[%s981 + $0x50] sm:$0xf]
    %v1003 = vld [vmem:[%s981 + $0x54] sm:$0xf]
    %v1004 = vld [vmem:[%s981 + $0x58] sm:$0xf]
    %v1005 = vld [vmem:[%s981 + $0x5c] sm:$0xf]
    %v1006 = vld [vmem:[%s981 + $0x60] sm:$0xf]
    %v1007 = vld [vmem:[%s981 + $0x64] sm:$0xf]
    %v1008 = vld [vmem:[%s981 + $0x68] sm:$0xf]
    %v1009 = vld [vmem:[%s981 + $0x6c] sm:$0xf]
    %v1010 = vld [vmem:[%s981 + $0x70] sm:$0xf]
    %v1011 = vld [vmem:[%s981 + $0x74] sm:$0xf]
    %v1012 = vld [vmem:[%s981 + $0x78] sm:$0xf]
    %v1013 = vld [vmem:[%s981 + $0x7c] sm:$0xf]
    %v1014 = vld [vmem:[%s981 + $0x80] sm:$0xf]
    %v1015 = vld [vmem:[%s981 + $0x84] sm:$0xf]
    %v1016 = vld [vmem:[%s981 + $0x88] sm:$0xf]
    %v1017 = vld [vmem:[%s981 + $0x8c] sm:$0xf]
    %v1018 = vld [vmem:[%s981 + $0x90] sm:$0xf]
    %v1019 = vld [vmem:[%s981 + $0x94] sm:$0xf]
    %v1020 = vld [vmem:[%s981 + $0x98] sm:$0xf]
    %v1021 = vld [vmem:[%s981 + $0x9c] sm:$0xf]
    %v1022 = vld [vmem:[%s981 + $0xa0] sm:$0xf]
    %v1023 = vld [vmem:[%s981 + $0xa4] sm:$0xf]
    %v1024 = vld [vmem:[%s981 + $0xa8] sm:$0xf]
    %v1025 = vld [vmem:[%s981 + $0xac] sm:$0xf]
    %v1026 = vld [vmem:[%s981 + $0xb0] sm:$0xf]
    %v1027 = vld [vmem:[%s981 + $0xb4] sm:$0xf]
    %v1028 = vld [vmem:[%s981 + $0xb8] sm:$0xf]
    %v1029 = vld [vmem:[%s981 + $0xbc] sm:$0xf]
    %v1030 = vld [vmem:[%s981 + $0xc0] sm:$0xf]
    %v1031 = vld [vmem:[%s981 + $0xc4] sm:$0xf]
    %v1032 = vld [vmem:[%s981 + $0xc8] sm:$0xf]
    %v1033 = vld [vmem:[%s981 + $0xcc] sm:$0xf]
    %v1034 = vld [vmem:[%s981 + $0xd0] sm:$0xf]
    %v1035 = vld [vmem:[%s981 + $0xd4] sm:$0xf]
    %v1036 = vld [vmem:[%s981 + $0xd8] sm:$0xf]
    %v1037 = vld [vmem:[%s981 + $0xdc] sm:$0xf]
    %v1038 = vld [vmem:[%s981 + $0xe0] sm:$0xf]
    %v1039 = vld [vmem:[%s981 + $0xe4] sm:$0xf]
    %v1040 = vld [vmem:[%s981 + $0xe8] sm:$0xf]
    %v1041 = vld [vmem:[%s981 + $0xec] sm:$0xf]
    %v1042 = vld [vmem:[%s981 + $0xf0] sm:$0xf]
    %v1043 = vld [vmem:[%s981 + $0xf4] sm:$0xf]
    %v1044 = vld [vmem:[%s981 + $0xf8] sm:$0xf]
    %v1045 = vld [vmem:[%s981 + $0xfc] sm:$0xf]
    %s1046 = scalar_lea.vmem %s3, 1
    %v1047 = vld [vmem:[%s1046] sm:$0x1]
    %v1049 = vlaneseq
    %v1050 = vshrl.u32 %v1049, 7
    %v1051 = vsub.s32 0, %v1050
    %v1052 = vrot.slane %v1047, %v1051
    %v1118 = vunpack.c.l.b16 %v982
    %v1119 = vunpack.c.l.b16 %v983
    %v1120 = vunpack.c.l.b16 %v984
    %v1121 = vunpack.c.l.b16 %v985
    %v1122 = vunpack.c.l.b16 %v986
    %v1123 = vunpack.c.l.b16 %v987
    %v1124 = vunpack.c.l.b16 %v988
    %v1125 = vunpack.c.l.b16 %v989
    %v1126 = vunpack.c.l.b16 %v990
    %v1127 = vunpack.c.l.b16 %v991
    %v1128 = vunpack.c.l.b16 %v992
    %v1129 = vunpack.c.l.b16 %v993
    %v1130 = vunpack.c.l.b16 %v994
    %v1131 = vunpack.c.l.b16 %v995
    %v1132 = vunpack.c.l.b16 %v996
    %v1133 = vunpack.c.l.b16 %v997
    %v1134 = vunpack.c.l.b16 %v998
    %v1135 = vunpack.c.l.b16 %v999
    %v1136 = vunpack.c.l.b16 %v1000
    %v1137 = vunpack.c.l.b16 %v1001
    %v1138 = vunpack.c.l.b16 %v1002
    %v1139 = vunpack.c.l.b16 %v1003
    %v1140 = vunpack.c.l.b16 %v1004
    %v1141 = vunpack.c.l.b16 %v1005
    %v1142 = vunpack.c.l.b16 %v1006
    %v1143 = vunpack.c.l.b16 %v1007
    %v1144 = vunpack.c.l.b16 %v1008
    %v1145 = vunpack.c.l.b16 %v1009
    %v1146 = vunpack.c.l.b16 %v1010
    %v1147 = vunpack.c.l.b16 %v1011
    %v1148 = vunpack.c.l.b16 %v1012
    %v1149 = vunpack.c.l.b16 %v1013
    %v1150 = vunpack.c.l.b16 %v1014
    %v1151 = vunpack.c.l.b16 %v1015
    %v1152 = vunpack.c.l.b16 %v1016
    %v1153 = vunpack.c.l.b16 %v1017
    %v1154 = vunpack.c.l.b16 %v1018
    %v1155 = vunpack.c.l.b16 %v1019
    %v1156 = vunpack.c.l.b16 %v1020
    %v1157 = vunpack.c.l.b16 %v1021
    %v1158 = vunpack.c.l.b16 %v1022
    %v1159 = vunpack.c.l.b16 %v1023
    %v1160 = vunpack.c.l.b16 %v1024
    %v1161 = vunpack.c.l.b16 %v1025
    %v1162 = vunpack.c.l.b16 %v1026
    %v1163 = vunpack.c.l.b16 %v1027
    %v1164 = vunpack.c.l.b16 %v1028
    %v1165 = vunpack.c.l.b16 %v1029
    %v1166 = vunpack.c.l.b16 %v1030
    %v1167 = vunpack.c.l.b16 %v1031
    %v1168 = vunpack.c.l.b16 %v1032
    %v1169 = vunpack.c.l.b16 %v1033
    %v1170 = vunpack.c.l.b16 %v1034
    %v1171 = vunpack.c.l.b16 %v1035
    %v1172 = vunpack.c.l.b16 %v1036
    %v1173 = vunpack.c.l.b16 %v1037
    %v1174 = vunpack.c.l.b16 %v1038
    %v1175 = vunpack.c.l.b16 %v1039
    %v1176 = vunpack.c.l.b16 %v1040
    %v1177 = vunpack.c.l.b16 %v1041
    %v1178 = vunpack.c.l.b16 %v1042
    %v1179 = vunpack.c.l.b16 %v1043
    %v1180 = vunpack.c.l.b16 %v1044
    %v1181 = vunpack.c.l.b16 %v1045
    %v1182 = vpack.c.b16 %v1119, %v1118
    %v1183 = vpack.c.b16 %v1121, %v1120
    %v1184 = vpack.c.b16 %v1123, %v1122
    %v1185 = vpack.c.b16 %v1125, %v1124
    %v1186 = vpack.c.b16 %v1127, %v1126
    %v1187 = vpack.c.b16 %v1129, %v1128
    %v1188 = vpack.c.b16 %v1131, %v1130
    %v1189 = vpack.c.b16 %v1133, %v1132
    %v1190 = vpack.c.b16 %v1135, %v1134
    %v1191 = vpack.c.b16 %v1137, %v1136
    %v1192 = vpack.c.b16 %v1139, %v1138
    %v1193 = vpack.c.b16 %v1141, %v1140
    %v1194 = vpack.c.b16 %v1143, %v1142
    %v1195 = vpack.c.b16 %v1145, %v1144
    %v1196 = vpack.c.b16 %v1147, %v1146
    %v1197 = vpack.c.b16 %v1149, %v1148
    %v1198 = vpack.c.b16 %v1151, %v1150
    %v1199 = vpack.c.b16 %v1153, %v1152
    %v1200 = vpack.c.b16 %v1155, %v1154
    %v1201 = vpack.c.b16 %v1157, %v1156
    %v1202 = vpack.c.b16 %v1159, %v1158
    %v1203 = vpack.c.b16 %v1161, %v1160
    %v1204 = vpack.c.b16 %v1163, %v1162
    %v1205 = vpack.c.b16 %v1165, %v1164
    %v1206 = vpack.c.b16 %v1167, %v1166
    %v1207 = vpack.c.b16 %v1169, %v1168
    %v1208 = vpack.c.b16 %v1171, %v1170
    %v1209 = vpack.c.b16 %v1173, %v1172
    %v1210 = vpack.c.b16 %v1175, %v1174
    %v1211 = vpack.c.b16 %v1177, %v1176
    %v1212 = vpack.c.b16 %v1179, %v1178
    %v1213 = vpack.c.b16 %v1181, %v1180
    %1246 = vmatprep.subr.bf16.mxu0 0
    %1247 = vmatpush1.bf16.msra.mxu0 %v1182
    %1248 = vmatprep.subr.bf16.mxu0 0
    %1249 = vmatpush1.bf16.msra.mxu0 %v1183
    %1250 = vmatprep.subr.bf16.mxu0 0
    %1251 = vmatpush1.bf16.msra.mxu0 %v1184
    %1252 = vmatprep.subr.bf16.mxu0 0
    %1253 = vmatpush1.bf16.msra.mxu0 %v1185
    %1254 = vmatprep.subr.bf16.mxu0 0
    %1255 = vmatpush1.bf16.msra.mxu0 %v1186
    %1256 = vmatprep.subr.bf16.mxu0 0
    %1257 = vmatpush1.bf16.msra.mxu0 %v1187
    %1258 = vmatprep.subr.bf16.mxu0 0
    %1259 = vmatpush1.bf16.msra.mxu0 %v1188
    %1260 = vmatprep.subr.bf16.mxu0 0
    %1261 = vmatpush1.bf16.msra.mxu0 %v1189
    %1262 = vmatprep.subr.bf16.mxu0 0
    %1263 = vmatpush1.bf16.msra.mxu0 %v1190
    %1264 = vmatprep.subr.bf16.mxu0 0
    %1265 = vmatpush1.bf16.msra.mxu0 %v1191
    %1266 = vmatprep.subr.bf16.mxu0 0
    %1267 = vmatpush1.bf16.msra.mxu0 %v1192
    %1268 = vmatprep.subr.bf16.mxu0 0
    %1269 = vmatpush1.bf16.msra.mxu0 %v1193
    %1270 = vmatprep.subr.bf16.mxu0 0
    %1271 = vmatpush1.bf16.msra.mxu0 %v1194
    %1272 = vmatprep.subr.bf16.mxu0 0
    %1273 = vmatpush1.bf16.msra.mxu0 %v1195
    %1274 = vmatprep.subr.bf16.mxu0 0
    %1275 = vmatpush1.bf16.msra.mxu0 %v1196
    %1276 = vmatprep.subr.bf16.mxu0 0
    %1277 = vmatpush1.bf16.msra.mxu0 %v1197
    %1278 = vmatprep.mubr.bf16.mxu0 %v835
    %1279 = vmatmul.mubr.bf16.gmra.mrb[0].mxu0 %v763
    %v1280 = vpop.f32.mrb[0].mxu0
    %v1281 = vadd.f32 %v1052, %v1280
    %v1282 = vpop.f32.mrb[0].mxu0
    %v1283 = vpop.f32.mrb[0].mxu0
    %v1284 = vadd.f32 %v1052, %v1283
    %v1285 = vpop.f32.mrb[0].mxu0
    %1286 = vmatprep.mubr.bf16.mxu0 %v836
    %1287 = vmatmul.mubr.bf16.gmra.mrb[0].mxu0 %v764
    %v1288 = vpop.f32.mrb[0].mxu0
    %v1289 = vadd.f32 %v1052, %v1288
    %v1290 = vpop.f32.mrb[0].mxu0
    %v1291 = vpop.f32.mrb[0].mxu0
    %v1292 = vadd.f32 %v1052, %v1291
    %v1293 = vpop.f32.mrb[0].mxu0
    %1294 = vdwg.mxu0
    %1295 = vmatprep.subr.bf16.mxu0 0
    %1296 = vmatpush1.bf16.msra.mxu0 %v1198
    %1297 = vmatprep.subr.bf16.mxu0 0
    %1298 = vmatpush1.bf16.msra.mxu0 %v1199
    %1299 = vmatprep.subr.bf16.mxu0 0
    %1300 = vmatpush1.bf16.msra.mxu0 %v1200
    %1301 = vmatprep.subr.bf16.mxu0 0
    %1302 = vmatpush1.bf16.msra.mxu0 %v1201
    %1303 = vmatprep.subr.bf16.mxu0 0
    %1304 = vmatpush1.bf16.msra.mxu0 %v1202
    %1305 = vmatprep.subr.bf16.mxu0 0
    %1306 = vmatpush1.bf16.msra.mxu0 %v1203
    %1307 = vmatprep.subr.bf16.mxu0 0
    %1308 = vmatpush1.bf16.msra.mxu0 %v1204
    %1309 = vmatprep.subr.bf16.mxu0 0
    %1310 = vmatpush1.bf16.msra.mxu0 %v1205
    %1311 = vmatprep.subr.bf16.mxu0 0
    %1312 = vmatpush1.bf16.msra.mxu0 %v1206
    %1313 = vmatprep.subr.bf16.mxu0 0
    %1314 = vmatpush1.bf16.msra.mxu0 %v1207
    %1315 = vmatprep.subr.bf16.mxu0 0
    %1316 = vmatpush1.bf16.msra.mxu0 %v1208
    %1317 = vmatprep.subr.bf16.mxu0 0
    %1318 = vmatpush1.bf16.msra.mxu0 %v1209
    %1319 = vmatprep.subr.bf16.mxu0 0
    %1320 = vmatpush1.bf16.msra.mxu0 %v1210
    %1321 = vmatprep.subr.bf16.mxu0 0
    %1322 = vmatpush1.bf16.msra.mxu0 %v1211
    %1323 = vmatprep.subr.bf16.mxu0 0
    %1324 = vmatpush1.bf16.msra.mxu0 %v1212
    %1325 = vmatprep.subr.bf16.mxu0 0
    %1326 = vmatpush1.bf16.msra.mxu0 %v1213
    %1327 = vmatprep.mubr.bf16.mxu0 %v979
    %1328 = vmatmul.mubr.bf16.gmra.mrb[0].mxu0 %v907
    %v1329 = vpop.f32.mrb[0].mxu0
    %v1330 = vadd.f32 %v1281, %v1329
    %v1331 = vpop.f32.mrb[0].mxu0
    %v1332 = vpop.f32.mrb[0].mxu0
    %v1333 = vadd.f32 %v1284, %v1332
    %v1334 = vpop.f32.mrb[0].mxu0
    %1335 = vmatprep.mubr.bf16.mxu0 %v980
    %1336 = vmatmul.mubr.bf16.gmra.mrb[0].mxu0 %v908
    %v1337 = vpop.f32.mrb[0].mxu0
    %v1338 = vadd.f32 %v1289, %v1337
    %v1339 = vpop.f32.mrb[0].mxu0
    %v1340 = vpop.f32.mrb[0].mxu0
    %v1341 = vadd.f32 %v1292, %v1340
    %v1342 = vpop.f32.mrb[0].mxu0
    %1343 = vdwg.mxu0
    %v1344 = vmax.f32 %v1330, 0.0
    %v1345 = vmax.f32 %v1333, 0.0
    %v1346 = vmax.f32 %v1338, 0.0
    %v1347 = vmax.f32 %v1341, 0.0
    %v1348 = vpack.c.bf16 %v1345, %v1344
    %v1349 = vpack.c.bf16 %v1347, %v1346
    %s1350 = scalar_lea.vmem %s2, 128
    %v1351 = vld [vmem:[%s1350] sm:$0xf]
    %v1352 = vld [vmem:[%s1350 + $0x4] sm:$0xf]
    %v1353 = vld [vmem:[%s1350 + $0x8] sm:$0xf]
    %v1354 = vld [vmem:[%s1350 + $0xc] sm:$0xf]
    %v1359 = vunpack.c.l.b16 %v1351
    %v1360 = vunpack.c.l.b16 %v1352
    %v1361 = vunpack.c.l.b16 %v1353
    %v1362 = vunpack.c.l.b16 %v1354
    %v1363 = vpack.c.b16 %v1360, %v1359
    %v1364 = vpack.c.b16 %v1362, %v1361
    %v1366 = vsel %vm52, %v1363, 0
    %v1369 = vsel %vm52, %v1364, 0
    %1371 = vmatprep.subr.bf16.mxu0 0
    %1372 = vmatpush1.bf16.msra.mxu0 %v1348
    %1373 = vmatprep.subr.bf16.mxu0 0
    %1374 = vmatpush1.bf16.msra.mxu0 %v1349
    %1375 = vmatprep.subr.bf16.mxu0 0
    %1376 = vmatpush1.bf16.msra.mxu0 0
    %1377 = vmatprep.subr.bf16.mxu0 0
    %1378 = vmatpush1.bf16.msra.mxu0 0
    %1379 = vmatprep.subr.bf16.mxu0 0
    %1380 = vmatpush1.bf16.msra.mxu0 0
    %1381 = vmatprep.subr.bf16.mxu0 0
    %1382 = vmatpush1.bf16.msra.mxu0 0
    %1383 = vmatprep.subr.bf16.mxu0 0
    %1384 = vmatpush1.bf16.msra.mxu0 0
    %1385 = vmatprep.subr.bf16.mxu0 0
    %1386 = vmatpush1.bf16.msra.mxu0 0
    %1387 = vmatprep.subr.bf16.mxu0 0
    %1388 = vmatpush1.bf16.msra.mxu0 0
    %1389 = vmatprep.subr.bf16.mxu0 0
    %1390 = vmatpush1.bf16.msra.mxu0 0
    %1391 = vmatprep.subr.bf16.mxu0 0
    %1392 = vmatpush1.bf16.msra.mxu0 0
    %1393 = vmatprep.subr.bf16.mxu0 0
    %1394 = vmatpush1.bf16.msra.mxu0 0
    %1395 = vmatprep.subr.bf16.mxu0 0
    %1396 = vmatpush1.bf16.msra.mxu0 0
    %1397 = vmatprep.subr.bf16.mxu0 0
    %1398 = vmatpush1.bf16.msra.mxu0 0
    %1399 = vmatprep.subr.bf16.mxu0 0
    %1400 = vmatpush1.bf16.msra.mxu0 0
    %1401 = vmatprep.subr.bf16.mxu0 0
    %1402 = vmatpush1.bf16.msra.mxu0 0
    %1403 = vmatprep.mubr.bf16.mxu0 0
    %1404 = vmatmul.mubr.bf16.gmra.mrb[0].mxu0 %v1366
    %v1405 = vpop.f32.mrb[0].mxu0
    %v1406 = vadd.f32 0.0, %v1405
    %v1407 = vpop.f32.mrb[0].mxu0
    %v1408 = vpop.f32.mrb[0].mxu0
    %v1409 = vadd.f32 0.0, %v1408
    %v1410 = vpop.f32.mrb[0].mxu0
    %1411 = vmatprep.mubr.bf16.mxu0 0
    %1412 = vmatmul.mubr.bf16.gmra.mrb[0].mxu0 %v1369
    %v1413 = vpop.f32.mrb[0].mxu0
    %v1414 = vadd.f32 0.0, %v1413
    %v1415 = vpop.f32.mrb[0].mxu0
    %v1416 = vpop.f32.mrb[0].mxu0
    %v1417 = vadd.f32 0.0, %v1416
    %v1418 = vpop.f32.mrb[0].mxu0
    %1419 = vdwg.mxu0
    %v1420 = vpack.c.bf16 %v1409, %v1406
    %v1421 = vpack.c.bf16 %v1417, %v1414
    %s1422 = scalar_lea.vmem %s2, 144
    %v1423 = vld [vmem:[%s1422] sm:$0xf]
    %v1424 = vld [vmem:[%s1422 + $0x4] sm:$0xf]
    %v1425 = vld [vmem:[%s1422 + $0x8] sm:$0xf]
    %v1426 = vld [vmem:[%s1422 + $0xc] sm:$0xf]
    %v1431 = vunpack.c.l.b16 %v1423
    %v1432 = vunpack.c.l.b16 %v1424
    %v1433 = vunpack.c.l.b16 %v1425
    %v1434 = vunpack.c.l.b16 %v1426
    %v1435 = vpack.c.b16 %v1432, %v1431
    %v1436 = vpack.c.b16 %v1434, %v1433
    %v1438 = vsel %vm52, %v1435, 0
    %v1441 = vsel %vm52, %v1436, 0
    %1443 = vmatprep.subr.bf16.mxu0 0
    %1444 = vmatpush1.bf16.msra.mxu0 %v1348
    %1445 = vmatprep.subr.bf16.mxu0 0
    %1446 = vmatpush1.bf16.msra.mxu0 %v1349
    %1447 = vmatprep.subr.bf16.mxu0 0
    %1448 = vmatpush1.bf16.msra.mxu0 0
    %1449 = vmatprep.subr.bf16.mxu0 0
    %1450 = vmatpush1.bf16.msra.mxu0 0
    %1451 = vmatprep.subr.bf16.mxu0 0
    %1452 = vmatpush1.bf16.msra.mxu0 0
    %1453 = vmatprep.subr.bf16.mxu0 0
    %1454 = vmatpush1.bf16.msra.mxu0 0
    %1455 = vmatprep.subr.bf16.mxu0 0
    %1456 = vmatpush1.bf16.msra.mxu0 0
    %1457 = vmatprep.subr.bf16.mxu0 0
    %1458 = vmatpush1.bf16.msra.mxu0 0
    %1459 = vmatprep.subr.bf16.mxu0 0
    %1460 = vmatpush1.bf16.msra.mxu0 0
    %1461 = vmatprep.subr.bf16.mxu0 0
    %1462 = vmatpush1.bf16.msra.mxu0 0
    %1463 = vmatprep.subr.bf16.mxu0 0
    %1464 = vmatpush1.bf16.msra.mxu0 0
    %1465 = vmatprep.subr.bf16.mxu0 0
    %1466 = vmatpush1.bf16.msra.mxu0 0
    %1467 = vmatprep.subr.bf16.mxu0 0
    %1468 = vmatpush1.bf16.msra.mxu0 0
    %1469 = vmatprep.subr.bf16.mxu0 0
    %1470 = vmatpush1.bf16.msra.mxu0 0
    %1471 = vmatprep.subr.bf16.mxu0 0
    %1472 = vmatpush1.bf16.msra.mxu0 0
    %1473 = vmatprep.subr.bf16.mxu0 0
    %1474 = vmatpush1.bf16.msra.mxu0 0
    %1475 = vmatprep.mubr.bf16.mxu0 0
    %1476 = vmatmul.mubr.bf16.gmra.mrb[0].mxu0 %v1438
    %v1477 = vpop.f32.mrb[0].mxu0
    %v1478 = vadd.f32 0.0, %v1477
    %v1479 = vpop.f32.mrb[0].mxu0
    %v1480 = vpop.f32.mrb[0].mxu0
    %v1481 = vadd.f32 0.0, %v1480
    %v1482 = vpop.f32.mrb[0].mxu0
    %1483 = vmatprep.mubr.bf16.mxu0 0
    %1484 = vmatmul.mubr.bf16.gmra.mrb[0].mxu0 %v1441
    %v1485 = vpop.f32.mrb[0].mxu0
    %v1486 = vadd.f32 0.0, %v1485
    %v1487 = vpop.f32.mrb[0].mxu0
    %v1488 = vpop.f32.mrb[0].mxu0
    %v1489 = vadd.f32 0.0, %v1488
    %v1490 = vpop.f32.mrb[0].mxu0
    %1491 = vdwg.mxu0
    %v1492 = vpack.c.bf16 %v1481, %v1478
    %v1493 = vpack.c.bf16 %v1489, %v1486
    %s1494 = scalar_lea.vmem %s2, 160
    %v1495 = vld [vmem:[%s1494] sm:$0xf]
    %v1496 = vld [vmem:[%s1494 + $0x4] sm:$0xf]
    %v1497 = vld [vmem:[%s1494 + $0x8] sm:$0xf]
    %v1498 = vld [vmem:[%s1494 + $0xc] sm:$0xf]
    %v1503 = vunpack.c.l.b16 %v1495
    %v1504 = vunpack.c.l.b16 %v1496
    %v1505 = vunpack.c.l.b16 %v1497
    %v1506 = vunpack.c.l.b16 %v1498
    %v1507 = vpack.c.b16 %v1504, %v1503
    %v1508 = vpack.c.b16 %v1506, %v1505
    %v1510 = vsel %vm52, %v1507, 0
    %v1513 = vsel %vm52, %v1508, 0
    %1515 = vmatprep.subr.bf16.mxu0 0
    %1516 = vmatpush1.bf16.msra.mxu0 %v1348
    %1517 = vmatprep.subr.bf16.mxu0 0
    %1518 = vmatpush1.bf16.msra.mxu0 %v1349
    %1519 = vmatprep.subr.bf16.mxu0 0
    %1520 = vmatpush1.bf16.msra.mxu0 0
    %1521 = vmatprep.subr.bf16.mxu0 0
    %1522 = vmatpush1.bf16.msra.mxu0 0
    %1523 = vmatprep.subr.bf16.mxu0 0
    %1524 = vmatpush1.bf16.msra.mxu0 0
    %1525 = vmatprep.subr.bf16.mxu0 0
    %1526 = vmatpush1.bf16.msra.mxu0 0
    %1527 = vmatprep.subr.bf16.mxu0 0
    %1528 = vmatpush1.bf16.msra.mxu0 0
    %1529 = vmatprep.subr.bf16.mxu0 0
    %1530 = vmatpush1.bf16.msra.mxu0 0
    %1531 = vmatprep.subr.bf16.mxu0 0
    %1532 = vmatpush1.bf16.msra.mxu0 0
    %1533 = vmatprep.subr.bf16.mxu0 0
    %1534 = vmatpush1.bf16.msra.mxu0 0
    %1535 = vmatprep.subr.bf16.mxu0 0
    %1536 = vmatpush1.bf16.msra.mxu0 0
    %1537 = vmatprep.subr.bf16.mxu0 0
    %1538 = vmatpush1.bf16.msra.mxu0 0
    %1539 = vmatprep.subr.bf16.mxu0 0
    %1540 = vmatpush1.bf16.msra.mxu0 0
    %1541 = vmatprep.subr.bf16.mxu0 0
    %1542 = vmatpush1.bf16.msra.mxu0 0
    %1543 = vmatprep.subr.bf16.mxu0 0
    %1544 = vmatpush1.bf16.msra.mxu0 0
    %1545 = vmatprep.subr.bf16.mxu0 0
    %1546 = vmatpush1.bf16.msra.mxu0 0
    %1547 = vmatprep.mubr.bf16.mxu0 0
    %1548 = vmatmul.mubr.bf16.gmra.mrb[0].mxu0 %v1510
    %v1549 = vpop.f32.mrb[0].mxu0
    %v1550 = vadd.f32 0.0, %v1549
    %v1551 = vpop.f32.mrb[0].mxu0
    %v1552 = vpop.f32.mrb[0].mxu0
    %v1553 = vadd.f32 0.0, %v1552
    %v1554 = vpop.f32.mrb[0].mxu0
    %1555 = vmatprep.mubr.bf16.mxu0 0
    %1556 = vmatmul.mubr.bf16.gmra.mrb[0].mxu0 %v1513
    %v1557 = vpop.f32.mrb[0].mxu0
    %v1558 = vadd.f32 0.0, %v1557
    %v1559 = vpop.f32.mrb[0].mxu0
    %v1560 = vpop.f32.mrb[0].mxu0
    %v1561 = vadd.f32 0.0, %v1560
    %v1562 = vpop.f32.mrb[0].mxu0
    %1563 = vdwg.mxu0
    %v1564 = vpack.c.bf16 %v1553, %v1550
    %v1565 = vpack.c.bf16 %v1561, %v1558
    %s1566 = scalar_lea.vmem %s2, 176
    %v1567 = vld [vmem:[%s1566] sm:$0xf]
    %v1568 = vld [vmem:[%s1566 + $0x4] sm:$0xf]
    %v1569 = vld [vmem:[%s1566 + $0x8] sm:$0xf]
    %v1570 = vld [vmem:[%s1566 + $0xc] sm:$0xf]
    %v1575 = vunpack.c.l.b16 %v1567
    %v1576 = vunpack.c.l.b16 %v1568
    %v1577 = vunpack.c.l.b16 %v1569
    %v1578 = vunpack.c.l.b16 %v1570
    %v1579 = vpack.c.b16 %v1576, %v1575
    %v1580 = vpack.c.b16 %v1578, %v1577
    %v1582 = vsel %vm52, %v1579, 0
    %v1585 = vsel %vm52, %v1580, 0
    %1587 = vmatprep.subr.bf16.mxu0 0
    %1588 = vmatpush1.bf16.msra.mxu0 %v1348
    %1589 = vmatprep.subr.bf16.mxu0 0
    %1590 = vmatpush1.bf16.msra.mxu0 %v1349
    %1591 = vmatprep.subr.bf16.mxu0 0
    %1592 = vmatpush1.bf16.msra.mxu0 0
    %1593 = vmatprep.subr.bf16.mxu0 0
    %1594 = vmatpush1.bf16.msra.mxu0 0
    %1595 = vmatprep.subr.bf16.mxu0 0
    %1596 = vmatpush1.bf16.msra.mxu0 0
    %1597 = vmatprep.subr.bf16.mxu0 0
    %1598 = vmatpush1.bf16.msra.mxu0 0
    %1599 = vmatprep.subr.bf16.mxu0 0
    %1600 = vmatpush1.bf16.msra.mxu0 0
    %1601 = vmatprep.subr.bf16.mxu0 0
    %1602 = vmatpush1.bf16.msra.mxu0 0
    %1603 = vmatprep.subr.bf16.mxu0 0
    %1604 = vmatpush1.bf16.msra.mxu0 0
    %1605 = vmatprep.subr.bf16.mxu0 0
    %1606 = vmatpush1.bf16.msra.mxu0 0
    %1607 = vmatprep.subr.bf16.mxu0 0
    %1608 = vmatpush1.bf16.msra.mxu0 0
    %1609 = vmatprep.subr.bf16.mxu0 0
    %1610 = vmatpush1.bf16.msra.mxu0 0
    %1611 = vmatprep.subr.bf16.mxu0 0
    %1612 = vmatpush1.bf16.msra.mxu0 0
    %1613 = vmatprep.subr.bf16.mxu0 0
    %1614 = vmatpush1.bf16.msra.mxu0 0
    %1615 = vmatprep.subr.bf16.mxu0 0
    %1616 = vmatpush1.bf16.msra.mxu0 0
    %1617 = vmatprep.subr.bf16.mxu0 0
    %1618 = vmatpush1.bf16.msra.mxu0 0
    %1619 = vmatprep.mubr.bf16.mxu0 0
    %1620 = vmatmul.mubr.bf16.gmra.mrb[0].mxu0 %v1582
    %v1621 = vpop.f32.mrb[0].mxu0
    %v1622 = vadd.f32 0.0, %v1621
    %v1623 = vpop.f32.mrb[0].mxu0
    %v1624 = vpop.f32.mrb[0].mxu0
    %v1625 = vadd.f32 0.0, %v1624
    %v1626 = vpop.f32.mrb[0].mxu0
    %1627 = vmatprep.mubr.bf16.mxu0 0
    %1628 = vmatmul.mubr.bf16.gmra.mrb[0].mxu0 %v1585
    %v1629 = vpop.f32.mrb[0].mxu0
    %v1630 = vadd.f32 0.0, %v1629
    %v1631 = vpop.f32.mrb[0].mxu0
    %v1632 = vpop.f32.mrb[0].mxu0
    %v1633 = vadd.f32 0.0, %v1632
    %v1634 = vpop.f32.mrb[0].mxu0
    %1635 = vdwg.mxu0
    %v1636 = vpack.c.bf16 %v1625, %v1622
    %v1637 = vpack.c.bf16 %v1633, %v1630
    %s1638 = scalar_lea.vmem [#allocation2], 512
    %v1639 = vld [vmem:[%s1638] sm:$0xf]
    %v1640 = vld [vmem:[%s1638 + $0x4] sm:$0xf]
    %v1641 = vld [vmem:[%s1638 + $0x8] sm:$0xf]
    %v1642 = vld [vmem:[%s1638 + $0xc] sm:$0xf]
    %v1643 = vld [vmem:[%s1638 + $0x10] sm:$0xf]
    %v1644 = vld [vmem:[%s1638 + $0x14] sm:$0xf]
    %v1645 = vld [vmem:[%s1638 + $0x18] sm:$0xf]
    %v1646 = vld [vmem:[%s1638 + $0x1c] sm:$0xf]
    %v1647 = vld [vmem:[%s1638 + $0x20] sm:$0xf]
    %v1648 = vld [vmem:[%s1638 + $0x24] sm:$0xf]
    %v1649 = vld [vmem:[%s1638 + $0x28] sm:$0xf]
    %v1650 = vld [vmem:[%s1638 + $0x2c] sm:$0xf]
    %v1651 = vld [vmem:[%s1638 + $0x30] sm:$0xf]
    %v1652 = vld [vmem:[%s1638 + $0x34] sm:$0xf]
    %v1653 = vld [vmem:[%s1638 + $0x38] sm:$0xf]
    %v1654 = vld [vmem:[%s1638 + $0x3c] sm:$0xf]
    %v1655 = vld [vmem:[%s1638 + $0x40] sm:$0xf]
    %v1656 = vld [vmem:[%s1638 + $0x44] sm:$0xf]
    %v1657 = vld [vmem:[%s1638 + $0x48] sm:$0xf]
    %v1658 = vld [vmem:[%s1638 + $0x4c] sm:$0xf]
    %v1659 = vld [vmem:[%s1638 + $0x50] sm:$0xf]
    %v1660 = vld [vmem:[%s1638 + $0x54] sm:$0xf]
    %v1661 = vld [vmem:[%s1638 + $0x58] sm:$0xf]
    %v1662 = vld [vmem:[%s1638 + $0x5c] sm:$0xf]
    %v1663 = vld [vmem:[%s1638 + $0x60] sm:$0xf]
    %v1664 = vld [vmem:[%s1638 + $0x64] sm:$0xf]
    %v1665 = vld [vmem:[%s1638 + $0x68] sm:$0xf]
    %v1666 = vld [vmem:[%s1638 + $0x6c] sm:$0xf]
    %v1667 = vld [vmem:[%s1638 + $0x70] sm:$0xf]
    %v1668 = vld [vmem:[%s1638 + $0x74] sm:$0xf]
    %v1669 = vld [vmem:[%s1638 + $0x78] sm:$0xf]
    %v1670 = vld [vmem:[%s1638 + $0x7c] sm:$0xf]
    %v1671 = vld [vmem:[%s1638 + $0x80] sm:$0xf]
    %v1672 = vld [vmem:[%s1638 + $0x84] sm:$0xf]
    %v1673 = vld [vmem:[%s1638 + $0x88] sm:$0xf]
    %v1674 = vld [vmem:[%s1638 + $0x8c] sm:$0xf]
    %v1675 = vld [vmem:[%s1638 + $0x90] sm:$0xf]
    %v1676 = vld [vmem:[%s1638 + $0x94] sm:$0xf]
    %v1677 = vld [vmem:[%s1638 + $0x98] sm:$0xf]
    %v1678 = vld [vmem:[%s1638 + $0x9c] sm:$0xf]
    %v1679 = vld [vmem:[%s1638 + $0xa0] sm:$0xf]
    %v1680 = vld [vmem:[%s1638 + $0xa4] sm:$0xf]
    %v1681 = vld [vmem:[%s1638 + $0xa8] sm:$0xf]
    %v1682 = vld [vmem:[%s1638 + $0xac] sm:$0xf]
    %v1683 = vld [vmem:[%s1638 + $0xb0] sm:$0xf]
    %v1684 = vld [vmem:[%s1638 + $0xb4] sm:$0xf]
    %v1685 = vld [vmem:[%s1638 + $0xb8] sm:$0xf]
    %v1686 = vld [vmem:[%s1638 + $0xbc] sm:$0xf]
    %v1687 = vld [vmem:[%s1638 + $0xc0] sm:$0xf]
    %v1688 = vld [vmem:[%s1638 + $0xc4] sm:$0xf]
    %v1689 = vld [vmem:[%s1638 + $0xc8] sm:$0xf]
    %v1690 = vld [vmem:[%s1638 + $0xcc] sm:$0xf]
    %v1691 = vld [vmem:[%s1638 + $0xd0] sm:$0xf]
    %v1692 = vld [vmem:[%s1638 + $0xd4] sm:$0xf]
    %v1693 = vld [vmem:[%s1638 + $0xd8] sm:$0xf]
    %v1694 = vld [vmem:[%s1638 + $0xdc] sm:$0xf]
    %v1695 = vld [vmem:[%s1638 + $0xe0] sm:$0xf]
    %v1696 = vld [vmem:[%s1638 + $0xe4] sm:$0xf]
    %v1697 = vld [vmem:[%s1638 + $0xe8] sm:$0xf]
    %v1698 = vld [vmem:[%s1638 + $0xec] sm:$0xf]
    %v1699 = vld [vmem:[%s1638 + $0xf0] sm:$0xf]
    %v1700 = vld [vmem:[%s1638 + $0xf4] sm:$0xf]
    %v1701 = vld [vmem:[%s1638 + $0xf8] sm:$0xf]
    %v1702 = vld [vmem:[%s1638 + $0xfc] sm:$0xf]
    %s1703 = scalar_lea.vmem %s3, 2
    %v1704 = vld [vmem:[%s1703] sm:$0x1]
    %v1706 = vlaneseq
    %v1707 = vshrl.u32 %v1706, 7
    %v1708 = vsub.s32 0, %v1707
    %v1709 = vrot.slane %v1704, %v1708
    %v1775 = vunpack.c.l.b16 %v1639
    %v1776 = vunpack.c.l.b16 %v1640
    %v1777 = vunpack.c.l.b16 %v1641
    %v1778 = vunpack.c.l.b16 %v1642
    %v1779 = vunpack.c.l.b16 %v1643
    %v1780 = vunpack.c.l.b16 %v1644
    %v1781 = vunpack.c.l.b16 %v1645
    %v1782 = vunpack.c.l.b16 %v1646
    %v1783 = vunpack.c.l.b16 %v1647
    %v1784 = vunpack.c.l.b16 %v1648
    %v1785 = vunpack.c.l.b16 %v1649
    %v1786 = vunpack.c.l.b16 %v1650
    %v1787 = vunpack.c.l.b16 %v1651
    %v1788 = vunpack.c.l.b16 %v1652
    %v1789 = vunpack.c.l.b16 %v1653
    %v1790 = vunpack.c.l.b16 %v1654
    %v1791 = vunpack.c.l.b16 %v1655
    %v1792 = vunpack.c.l.b16 %v1656
    %v1793 = vunpack.c.l.b16 %v1657
    %v1794 = vunpack.c.l.b16 %v1658
    %v1795 = vunpack.c.l.b16 %v1659
    %v1796 = vunpack.c.l.b16 %v1660
    %v1797 = vunpack.c.l.b16 %v1661
    %v1798 = vunpack.c.l.b16 %v1662
    %v1799 = vunpack.c.l.b16 %v1663
    %v1800 = vunpack.c.l.b16 %v1664
    %v1801 = vunpack.c.l.b16 %v1665
    %v1802 = vunpack.c.l.b16 %v1666
    %v1803 = vunpack.c.l.b16 %v1667
    %v1804 = vunpack.c.l.b16 %v1668
    %v1805 = vunpack.c.l.b16 %v1669
    %v1806 = vunpack.c.l.b16 %v1670
    %v1807 = vunpack.c.l.b16 %v1671
    %v1808 = vunpack.c.l.b16 %v1672
    %v1809 = vunpack.c.l.b16 %v1673
    %v1810 = vunpack.c.l.b16 %v1674
    %v1811 = vunpack.c.l.b16 %v1675
    %v1812 = vunpack.c.l.b16 %v1676
    %v1813 = vunpack.c.l.b16 %v1677
    %v1814 = vunpack.c.l.b16 %v1678
    %v1815 = vunpack.c.l.b16 %v1679
    %v1816 = vunpack.c.l.b16 %v1680
    %v1817 = vunpack.c.l.b16 %v1681
    %v1818 = vunpack.c.l.b16 %v1682
    %v1819 = vunpack.c.l.b16 %v1683
    %v1820 = vunpack.c.l.b16 %v1684
    %v1821 = vunpack.c.l.b16 %v1685
    %v1822 = vunpack.c.l.b16 %v1686
    %v1823 = vunpack.c.l.b16 %v1687
    %v1824 = vunpack.c.l.b16 %v1688
    %v1825 = vunpack.c.l.b16 %v1689
    %v1826 = vunpack.c.l.b16 %v1690
    %v1827 = vunpack.c.l.b16 %v1691
    %v1828 = vunpack.c.l.b16 %v1692
    %v1829 = vunpack.c.l.b16 %v1693
    %v1830 = vunpack.c.l.b16 %v1694
    %v1831 = vunpack.c.l.b16 %v1695
    %v1832 = vunpack.c.l.b16 %v1696
    %v1833 = vunpack.c.l.b16 %v1697
    %v1834 = vunpack.c.l.b16 %v1698
    %v1835 = vunpack.c.l.b16 %v1699
    %v1836 = vunpack.c.l.b16 %v1700
    %v1837 = vunpack.c.l.b16 %v1701
    %v1838 = vunpack.c.l.b16 %v1702
    %v1839 = vpack.c.b16 %v1776, %v1775
    %v1840 = vpack.c.b16 %v1778, %v1777
    %v1841 = vpack.c.b16 %v1780, %v1779
    %v1842 = vpack.c.b16 %v1782, %v1781
    %v1843 = vpack.c.b16 %v1784, %v1783
    %v1844 = vpack.c.b16 %v1786, %v1785
    %v1845 = vpack.c.b16 %v1788, %v1787
    %v1846 = vpack.c.b16 %v1790, %v1789
    %v1847 = vpack.c.b16 %v1792, %v1791
    %v1848 = vpack.c.b16 %v1794, %v1793
    %v1849 = vpack.c.b16 %v1796, %v1795
    %v1850 = vpack.c.b16 %v1798, %v1797
    %v1851 = vpack.c.b16 %v1800, %v1799
    %v1852 = vpack.c.b16 %v1802, %v1801
    %v1853 = vpack.c.b16 %v1804, %v1803
    %v1854 = vpack.c.b16 %v1806, %v1805
    %v1855 = vpack.c.b16 %v1808, %v1807
    %v1856 = vpack.c.b16 %v1810, %v1809
    %v1857 = vpack.c.b16 %v1812, %v1811
    %v1858 = vpack.c.b16 %v1814, %v1813
    %v1859 = vpack.c.b16 %v1816, %v1815
    %v1860 = vpack.c.b16 %v1818, %v1817
    %v1861 = vpack.c.b16 %v1820, %v1819
    %v1862 = vpack.c.b16 %v1822, %v1821
    %v1863 = vpack.c.b16 %v1824, %v1823
    %v1864 = vpack.c.b16 %v1826, %v1825
    %v1865 = vpack.c.b16 %v1828, %v1827
    %v1866 = vpack.c.b16 %v1830, %v1829
    %v1867 = vpack.c.b16 %v1832, %v1831
    %v1868 = vpack.c.b16 %v1834, %v1833
    %v1869 = vpack.c.b16 %v1836, %v1835
    %v1870 = vpack.c.b16 %v1838, %v1837
    %1903 = vmatprep.subr.bf16.mxu0 0
    %1904 = vmatpush1.bf16.msra.mxu0 %v1839
    %1905 = vmatprep.subr.bf16.mxu0 0
    %1906 = vmatpush1.bf16.msra.mxu0 %v1840
    %1907 = vmatprep.subr.bf16.mxu0 0
    %1908 = vmatpush1.bf16.msra.mxu0 %v1841
    %1909 = vmatprep.subr.bf16.mxu0 0
    %1910 = vmatpush1.bf16.msra.mxu0 %v1842
    %1911 = vmatprep.subr.bf16.mxu0 0
    %1912 = vmatpush1.bf16.msra.mxu0 %v1843
    %1913 = vmatprep.subr.bf16.mxu0 0
    %1914 = vmatpush1.bf16.msra.mxu0 %v1844
    %1915 = vmatprep.subr.bf16.mxu0 0
    %1916 = vmatpush1.bf16.msra.mxu0 %v1845
    %1917 = vmatprep.subr.bf16.mxu0 0
    %1918 = vmatpush1.bf16.msra.mxu0 %v1846
    %1919 = vmatprep.subr.bf16.mxu0 0
    %1920 = vmatpush1.bf16.msra.mxu0 %v1847
    %1921 = vmatprep.subr.bf16.mxu0 0
    %1922 = vmatpush1.bf16.msra.mxu0 %v1848
    %1923 = vmatprep.subr.bf16.mxu0 0
    %1924 = vmatpush1.bf16.msra.mxu0 %v1849
    %1925 = vmatprep.subr.bf16.mxu0 0
    %1926 = vmatpush1.bf16.msra.mxu0 %v1850
    %1927 = vmatprep.subr.bf16.mxu0 0
    %1928 = vmatpush1.bf16.msra.mxu0 %v1851
    %1929 = vmatprep.subr.bf16.mxu0 0
    %1930 = vmatpush1.bf16.msra.mxu0 %v1852
    %1931 = vmatprep.subr.bf16.mxu0 0
    %1932 = vmatpush1.bf16.msra.mxu0 %v1853
    %1933 = vmatprep.subr.bf16.mxu0 0
    %1934 = vmatpush1.bf16.msra.mxu0 %v1854
    %1935 = vmatprep.mubr.bf16.mxu0 %v1492
    %1936 = vmatmul.mubr.bf16.gmra.mrb[0].mxu0 %v1420
    %v1937 = vpop.f32.mrb[0].mxu0
    %v1938 = vadd.f32 %v1709, %v1937
    %v1939 = vpop.f32.mrb[0].mxu0
    %v1940 = vpop.f32.mrb[0].mxu0
    %v1941 = vadd.f32 %v1709, %v1940
    %v1942 = vpop.f32.mrb[0].mxu0
    %1943 = vmatprep.mubr.bf16.mxu0 %v1493
    %1944 = vmatmul.mubr.bf16.gmra.mrb[0].mxu0 %v1421
    %v1945 = vpop.f32.mrb[0].mxu0
    %v1946 = vadd.f32 %v1709, %v1945
    %v1947 = vpop.f32.mrb[0].mxu0
    %v1948 = vpop.f32.mrb[0].mxu0
    %v1949 = vadd.f32 %v1709, %v1948
    %v1950 = vpop.f32.mrb[0].mxu0
    %1951 = vdwg.mxu0
    %1952 = vmatprep.subr.bf16.mxu0 0
    %1953 = vmatpush1.bf16.msra.mxu0 %v1855
    %1954 = vmatprep.subr.bf16.mxu0 0
    %1955 = vmatpush1.bf16.msra.mxu0 %v1856
    %1956 = vmatprep.subr.bf16.mxu0 0
    %1957 = vmatpush1.bf16.msra.mxu0 %v1857
    %1958 = vmatprep.subr.bf16.mxu0 0
    %1959 = vmatpush1.bf16.msra.mxu0 %v1858
    %1960 = vmatprep.subr.bf16.mxu0 0
    %1961 = vmatpush1.bf16.msra.mxu0 %v1859
    %1962 = vmatprep.subr.bf16.mxu0 0
    %1963 = vmatpush1.bf16.msra.mxu0 %v1860
    %1964 = vmatprep.subr.bf16.mxu0 0
    %1965 = vmatpush1.bf16.msra.mxu0 %v1861
    %1966 = vmatprep.subr.bf16.mxu0 0
    %1967 = vmatpush1.bf16.msra.mxu0 %v1862
    %1968 = vmatprep.subr.bf16.mxu0 0
    %1969 = vmatpush1.bf16.msra.mxu0 %v1863
    %1970 = vmatprep.subr.bf16.mxu0 0
    %1971 = vmatpush1.bf16.msra.mxu0 %v1864
    %1972 = vmatprep.subr.bf16.mxu0 0
    %1973 = vmatpush1.bf16.msra.mxu0 %v1865
    %1974 = vmatprep.subr.bf16.mxu0 0
    %1975 = vmatpush1.bf16.msra.mxu0 %v1866
    %1976 = vmatprep.subr.bf16.mxu0 0
    %1977 = vmatpush1.bf16.msra.mxu0 %v1867
    %1978 = vmatprep.subr.bf16.mxu0 0
    %1979 = vmatpush1.bf16.msra.mxu0 %v1868
    %1980 = vmatprep.subr.bf16.mxu0 0
    %1981 = vmatpush1.bf16.msra.mxu0 %v1869
    %1982 = vmatprep.subr.bf16.mxu0 0
    %1983 = vmatpush1.bf16.msra.mxu0 %v1870
    %1984 = vmatprep.mubr.bf16.mxu0 %v1636
    %1985 = vmatmul.mubr.bf16.gmra.mrb[0].mxu0 %v1564
    %v1986 = vpop.f32.mrb[0].mxu0
    %v1987 = vadd.f32 %v1938, %v1986
    %v1988 = vpop.f32.mrb[0].mxu0
    %v1989 = vpop.f32.mrb[0].mxu0
    %v1990 = vadd.f32 %v1941, %v1989
    %v1991 = vpop.f32.mrb[0].mxu0
    %1992 = vmatprep.mubr.bf16.mxu0 %v1637
    %1993 = vmatmul.mubr.bf16.gmra.mrb[0].mxu0 %v1565
    %v1994 = vpop.f32.mrb[0].mxu0
    %v1995 = vadd.f32 %v1946, %v1994
    %v1996 = vpop.f32.mrb[0].mxu0
    %v1997 = vpop.f32.mrb[0].mxu0
    %v1998 = vadd.f32 %v1949, %v1997
    %v1999 = vpop.f32.mrb[0].mxu0
    %2000 = vdwg.mxu0
    %v2001 = vmax.f32 %v1987, 0.0
    %v2002 = vmax.f32 %v1990, 0.0
    %v2003 = vmax.f32 %v1995, 0.0
    %v2004 = vmax.f32 %v1998, 0.0
    %v2005 = vpack.c.bf16 %v2002, %v2001
    %v2006 = vpack.c.bf16 %v2004, %v2003
    %s2007 = scalar_lea.vmem %s2, 192
    %v2008 = vld [vmem:[%s2007] sm:$0xf]
    %v2009 = vld [vmem:[%s2007 + $0x4] sm:$0xf]
    %v2010 = vld [vmem:[%s2007 + $0x8] sm:$0xf]
    %v2011 = vld [vmem:[%s2007 + $0xc] sm:$0xf]
    %v2016 = vunpack.c.l.b16 %v2008
    %v2017 = vunpack.c.l.b16 %v2009
    %v2018 = vunpack.c.l.b16 %v2010
    %v2019 = vunpack.c.l.b16 %v2011
    %v2020 = vpack.c.b16 %v2017, %v2016
    %v2021 = vpack.c.b16 %v2019, %v2018
    %v2023 = vsel %vm52, %v2020, 0
    %v2026 = vsel %vm52, %v2021, 0
    %2028 = vmatprep.subr.bf16.mxu0 0
    %2029 = vmatpush1.bf16.msra.mxu0 %v2005
    %2030 = vmatprep.subr.bf16.mxu0 0
    %2031 = vmatpush1.bf16.msra.mxu0 %v2006
    %2032 = vmatprep.subr.bf16.mxu0 0
    %2033 = vmatpush1.bf16.msra.mxu0 0
    %2034 = vmatprep.subr.bf16.mxu0 0
    %2035 = vmatpush1.bf16.msra.mxu0 0
    %2036 = vmatprep.subr.bf16.mxu0 0
    %2037 = vmatpush1.bf16.msra.mxu0 0
    %2038 = vmatprep.subr.bf16.mxu0 0
    %2039 = vmatpush1.bf16.msra.mxu0 0
    %2040 = vmatprep.subr.bf16.mxu0 0
    %2041 = vmatpush1.bf16.msra.mxu0 0
    %2042 = vmatprep.subr.bf16.mxu0 0
    %2043 = vmatpush1.bf16.msra.mxu0 0
    %2044 = vmatprep.subr.bf16.mxu0 0
    %2045 = vmatpush1.bf16.msra.mxu0 0
    %2046 = vmatprep.subr.bf16.mxu0 0
    %2047 = vmatpush1.bf16.msra.mxu0 0
    %2048 = vmatprep.subr.bf16.mxu0 0
    %2049 = vmatpush1.bf16.msra.mxu0 0
    %2050 = vmatprep.subr.bf16.mxu0 0
    %2051 = vmatpush1.bf16.msra.mxu0 0
    %2052 = vmatprep.subr.bf16.mxu0 0
    %2053 = vmatpush1.bf16.msra.mxu0 0
    %2054 = vmatprep.subr.bf16.mxu0 0
    %2055 = vmatpush1.bf16.msra.mxu0 0
    %2056 = vmatprep.subr.bf16.mxu0 0
    %2057 = vmatpush1.bf16.msra.mxu0 0
    %2058 = vmatprep.subr.bf16.mxu0 0
    %2059 = vmatpush1.bf16.msra.mxu0 0
    %2060 = vmatprep.mubr.bf16.mxu0 0
    %2061 = vmatmul.mubr.bf16.gmra.mrb[0].mxu0 %v2023
    %v2062 = vpop.f32.mrb[0].mxu0
    %v2063 = vadd.f32 0.0, %v2062
    %v2064 = vpop.f32.mrb[0].mxu0
    %v2065 = vpop.f32.mrb[0].mxu0
    %v2066 = vadd.f32 0.0, %v2065
    %v2067 = vpop.f32.mrb[0].mxu0
    %2068 = vmatprep.mubr.bf16.mxu0 0
    %2069 = vmatmul.mubr.bf16.gmra.mrb[0].mxu0 %v2026
    %v2070 = vpop.f32.mrb[0].mxu0
    %v2071 = vadd.f32 0.0, %v2070
    %v2072 = vpop.f32.mrb[0].mxu0
    %v2073 = vpop.f32.mrb[0].mxu0
    %v2074 = vadd.f32 0.0, %v2073
    %v2075 = vpop.f32.mrb[0].mxu0
    %2076 = vdwg.mxu0
    %v2077 = vpack.c.bf16 %v2066, %v2063
    %v2078 = vpack.c.bf16 %v2074, %v2071
    %s2079 = scalar_lea.vmem %s2, 208
    %v2080 = vld [vmem:[%s2079] sm:$0xf]
    %v2081 = vld [vmem:[%s2079 + $0x4] sm:$0xf]
    %v2082 = vld [vmem:[%s2079 + $0x8] sm:$0xf]
    %v2083 = vld [vmem:[%s2079 + $0xc] sm:$0xf]
    %v2088 = vunpack.c.l.b16 %v2080
    %v2089 = vunpack.c.l.b16 %v2081
    %v2090 = vunpack.c.l.b16 %v2082
    %v2091 = vunpack.c.l.b16 %v2083
    %v2092 = vpack.c.b16 %v2089, %v2088
    %v2093 = vpack.c.b16 %v2091, %v2090
    %v2095 = vsel %vm52, %v2092, 0
    %v2098 = vsel %vm52, %v2093, 0
    %2100 = vmatprep.subr.bf16.mxu0 0
    %2101 = vmatpush1.bf16.msra.mxu0 %v2005
    %2102 = vmatprep.subr.bf16.mxu0 0
    %2103 = vmatpush1.bf16.msra.mxu0 %v2006
    %2104 = vmatprep.subr.bf16.mxu0 0
    %2105 = vmatpush1.bf16.msra.mxu0 0
    %2106 = vmatprep.subr.bf16.mxu0 0
    %2107 = vmatpush1.bf16.msra.mxu0 0
    %2108 = vmatprep.subr.bf16.mxu0 0
    %2109 = vmatpush1.bf16.msra.mxu0 0
    %2110 = vmatprep.subr.bf16.mxu0 0
    %2111 = vmatpush1.bf16.msra.mxu0 0
    %2112 = vmatprep.subr.bf16.mxu0 0
    %2113 = vmatpush1.bf16.msra.mxu0 0
    %2114 = vmatprep.subr.bf16.mxu0 0
    %2115 = vmatpush1.bf16.msra.mxu0 0
    %2116 = vmatprep.subr.bf16.mxu0 0
    %2117 = vmatpush1.bf16.msra.mxu0 0
    %2118 = vmatprep.subr.bf16.mxu0 0
    %2119 = vmatpush1.bf16.msra.mxu0 0
    %2120 = vmatprep.subr.bf16.mxu0 0
    %2121 = vmatpush1.bf16.msra.mxu0 0
    %2122 = vmatprep.subr.bf16.mxu0 0
    %2123 = vmatpush1.bf16.msra.mxu0 0
    %2124 = vmatprep.subr.bf16.mxu0 0
    %2125 = vmatpush1.bf16.msra.mxu0 0
    %2126 = vmatprep.subr.bf16.mxu0 0
    %2127 = vmatpush1.bf16.msra.mxu0 0
    %2128 = vmatprep.subr.bf16.mxu0 0
    %2129 = vmatpush1.bf16.msra.mxu0 0
    %2130 = vmatprep.subr.bf16.mxu0 0
    %2131 = vmatpush1.bf16.msra.mxu0 0
    %2132 = vmatprep.mubr.bf16.mxu0 0
    %2133 = vmatmul.mubr.bf16.gmra.mrb[0].mxu0 %v2095
    %v2134 = vpop.f32.mrb[0].mxu0
    %v2135 = vadd.f32 0.0, %v2134
    %v2136 = vpop.f32.mrb[0].mxu0
    %v2137 = vpop.f32.mrb[0].mxu0
    %v2138 = vadd.f32 0.0, %v2137
    %v2139 = vpop.f32.mrb[0].mxu0
    %2140 = vmatprep.mubr.bf16.mxu0 0
    %2141 = vmatmul.mubr.bf16.gmra.mrb[0].mxu0 %v2098
    %v2142 = vpop.f32.mrb[0].mxu0
    %v2143 = vadd.f32 0.0, %v2142
    %v2144 = vpop.f32.mrb[0].mxu0
    %v2145 = vpop.f32.mrb[0].mxu0
    %v2146 = vadd.f32 0.0, %v2145
    %v2147 = vpop.f32.mrb[0].mxu0
    %2148 = vdwg.mxu0
    %v2149 = vpack.c.bf16 %v2138, %v2135
    %v2150 = vpack.c.bf16 %v2146, %v2143
    %s2151 = scalar_lea.vmem %s2, 224
    %v2152 = vld [vmem:[%s2151] sm:$0xf]
    %v2153 = vld [vmem:[%s2151 + $0x4] sm:$0xf]
    %v2154 = vld [vmem:[%s2151 + $0x8] sm:$0xf]
    %v2155 = vld [vmem:[%s2151 + $0xc] sm:$0xf]
    %v2160 = vunpack.c.l.b16 %v2152
    %v2161 = vunpack.c.l.b16 %v2153
    %v2162 = vunpack.c.l.b16 %v2154
    %v2163 = vunpack.c.l.b16 %v2155
    %v2164 = vpack.c.b16 %v2161, %v2160
    %v2165 = vpack.c.b16 %v2163, %v2162
    %v2167 = vsel %vm52, %v2164, 0
    %v2170 = vsel %vm52, %v2165, 0
    %2172 = vmatprep.subr.bf16.mxu0 0
    %2173 = vmatpush1.bf16.msra.mxu0 %v2005
    %2174 = vmatprep.subr.bf16.mxu0 0
    %2175 = vmatpush1.bf16.msra.mxu0 %v2006
    %2176 = vmatprep.subr.bf16.mxu0 0
    %2177 = vmatpush1.bf16.msra.mxu0 0
    %2178 = vmatprep.subr.bf16.mxu0 0
    %2179 = vmatpush1.bf16.msra.mxu0 0
    %2180 = vmatprep.subr.bf16.mxu0 0
    %2181 = vmatpush1.bf16.msra.mxu0 0
    %2182 = vmatprep.subr.bf16.mxu0 0
    %2183 = vmatpush1.bf16.msra.mxu0 0
    %2184 = vmatprep.subr.bf16.mxu0 0
    %2185 = vmatpush1.bf16.msra.mxu0 0
    %2186 = vmatprep.subr.bf16.mxu0 0
    %2187 = vmatpush1.bf16.msra.mxu0 0
    %2188 = vmatprep.subr.bf16.mxu0 0
    %2189 = vmatpush1.bf16.msra.mxu0 0
    %2190 = vmatprep.subr.bf16.mxu0 0
    %2191 = vmatpush1.bf16.msra.mxu0 0
    %2192 = vmatprep.subr.bf16.mxu0 0
    %2193 = vmatpush1.bf16.msra.mxu0 0
    %2194 = vmatprep.subr.bf16.mxu0 0
    %2195 = vmatpush1.bf16.msra.mxu0 0
    %2196 = vmatprep.subr.bf16.mxu0 0
    %2197 = vmatpush1.bf16.msra.mxu0 0
    %2198 = vmatprep.subr.bf16.mxu0 0
    %2199 = vmatpush1.bf16.msra.mxu0 0
    %2200 = vmatprep.subr.bf16.mxu0 0
    %2201 = vmatpush1.bf16.msra.mxu0 0
    %2202 = vmatprep.subr.bf16.mxu0 0
    %2203 = vmatpush1.bf16.msra.mxu0 0
    %2204 = vmatprep.mubr.bf16.mxu0 0
    %2205 = vmatmul.mubr.bf16.gmra.mrb[0].mxu0 %v2167
    %v2206 = vpop.f32.mrb[0].mxu0
    %v2207 = vadd.f32 0.0, %v2206
    %v2208 = vpop.f32.mrb[0].mxu0
    %v2209 = vpop.f32.mrb[0].mxu0
    %v2210 = vadd.f32 0.0, %v2209
    %v2211 = vpop.f32.mrb[0].mxu0
    %2212 = vmatprep.mubr.bf16.mxu0 0
    %2213 = vmatmul.mubr.bf16.gmra.mrb[0].mxu0 %v2170
    %v2214 = vpop.f32.mrb[0].mxu0
    %v2215 = vadd.f32 0.0, %v2214
    %v2216 = vpop.f32.mrb[0].mxu0
    %v2217 = vpop.f32.mrb[0].mxu0
    %v2218 = vadd.f32 0.0, %v2217
    %v2219 = vpop.f32.mrb[0].mxu0
    %2220 = vdwg.mxu0
    %v2221 = vpack.c.bf16 %v2210, %v2207
    %v2222 = vpack.c.bf16 %v2218, %v2215
    %s2223 = scalar_lea.vmem %s2, 240
    %v2224 = vld [vmem:[%s2223] sm:$0xf]
    %v2225 = vld [vmem:[%s2223 + $0x4] sm:$0xf]
    %v2226 = vld [vmem:[%s2223 + $0x8] sm:$0xf]
    %v2227 = vld [vmem:[%s2223 + $0xc] sm:$0xf]
    %v2232 = vunpack.c.l.b16 %v2224
    %v2233 = vunpack.c.l.b16 %v2225
    %v2234 = vunpack.c.l.b16 %v2226
    %v2235 = vunpack.c.l.b16 %v2227
    %v2236 = vpack.c.b16 %v2233, %v2232
    %v2237 = vpack.c.b16 %v2235, %v2234
    %v2239 = vsel %vm52, %v2236, 0
    %v2242 = vsel %vm52, %v2237, 0
    %2244 = vmatprep.subr.bf16.mxu0 0
    %2245 = vmatpush1.bf16.msra.mxu0 %v2005
    %2246 = vmatprep.subr.bf16.mxu0 0
    %2247 = vmatpush1.bf16.msra.mxu0 %v2006
    %2248 = vmatprep.subr.bf16.mxu0 0
    %2249 = vmatpush1.bf16.msra.mxu0 0
    %2250 = vmatprep.subr.bf16.mxu0 0
    %2251 = vmatpush1.bf16.msra.mxu0 0
    %2252 = vmatprep.subr.bf16.mxu0 0
    %2253 = vmatpush1.bf16.msra.mxu0 0
    %2254 = vmatprep.subr.bf16.mxu0 0
    %2255 = vmatpush1.bf16.msra.mxu0 0
    %2256 = vmatprep.subr.bf16.mxu0 0
    %2257 = vmatpush1.bf16.msra.mxu0 0
    %2258 = vmatprep.subr.bf16.mxu0 0
    %2259 = vmatpush1.bf16.msra.mxu0 0
    %2260 = vmatprep.subr.bf16.mxu0 0
    %2261 = vmatpush1.bf16.msra.mxu0 0
    %2262 = vmatprep.subr.bf16.mxu0 0
    %2263 = vmatpush1.bf16.msra.mxu0 0
    %2264 = vmatprep.subr.bf16.mxu0 0
    %2265 = vmatpush1.bf16.msra.mxu0 0
    %2266 = vmatprep.subr.bf16.mxu0 0
    %2267 = vmatpush1.bf16.msra.mxu0 0
    %2268 = vmatprep.subr.bf16.mxu0 0
    %2269 = vmatpush1.bf16.msra.mxu0 0
    %2270 = vmatprep.subr.bf16.mxu0 0
    %2271 = vmatpush1.bf16.msra.mxu0 0
    %2272 = vmatprep.subr.bf16.mxu0 0
    %2273 = vmatpush1.bf16.msra.mxu0 0
    %2274 = vmatprep.subr.bf16.mxu0 0
    %2275 = vmatpush1.bf16.msra.mxu0 0
    %2276 = vmatprep.mubr.bf16.mxu0 0
    %2277 = vmatmul.mubr.bf16.gmra.mrb[0].mxu0 %v2239
    %v2278 = vpop.f32.mrb[0].mxu0
    %v2279 = vadd.f32 0.0, %v2278
    %v2280 = vpop.f32.mrb[0].mxu0
    %v2281 = vpop.f32.mrb[0].mxu0
    %v2282 = vadd.f32 0.0, %v2281
    %v2283 = vpop.f32.mrb[0].mxu0
    %2284 = vmatprep.mubr.bf16.mxu0 0
    %2285 = vmatmul.mubr.bf16.gmra.mrb[0].mxu0 %v2242
    %v2286 = vpop.f32.mrb[0].mxu0
    %v2287 = vadd.f32 0.0, %v2286
    %v2288 = vpop.f32.mrb[0].mxu0
    %v2289 = vpop.f32.mrb[0].mxu0
    %v2290 = vadd.f32 0.0, %v2289
    %v2291 = vpop.f32.mrb[0].mxu0
    %2292 = vdwg.mxu0
    %v2293 = vpack.c.bf16 %v2282, %v2279
    %v2294 = vpack.c.bf16 %v2290, %v2287
    %s2295 = scalar_lea.vmem [#allocation2], 768
    %v2296 = vld [vmem:[%s2295] sm:$0xf]
    %v2297 = vld [vmem:[%s2295 + $0x4] sm:$0xf]
    %v2298 = vld [vmem:[%s2295 + $0x8] sm:$0xf]
    %v2299 = vld [vmem:[%s2295 + $0xc] sm:$0xf]
    %v2300 = vld [vmem:[%s2295 + $0x10] sm:$0xf]
    %v2301 = vld [vmem:[%s2295 + $0x14] sm:$0xf]
    %v2302 = vld [vmem:[%s2295 + $0x18] sm:$0xf]
    %v2303 = vld [vmem:[%s2295 + $0x1c] sm:$0xf]
    %v2304 = vld [vmem:[%s2295 + $0x20] sm:$0xf]
    %v2305 = vld [vmem:[%s2295 + $0x24] sm:$0xf]
    %v2306 = vld [vmem:[%s2295 + $0x28] sm:$0xf]
    %v2307 = vld [vmem:[%s2295 + $0x2c] sm:$0xf]
    %v2308 = vld [vmem:[%s2295 + $0x30] sm:$0xf]
    %v2309 = vld [vmem:[%s2295 + $0x34] sm:$0xf]
    %v2310 = vld [vmem:[%s2295 + $0x38] sm:$0xf]
    %v2311 = vld [vmem:[%s2295 + $0x3c] sm:$0xf]
    %v2312 = vld [vmem:[%s2295 + $0x40] sm:$0xf]
    %v2313 = vld [vmem:[%s2295 + $0x44] sm:$0xf]
    %v2314 = vld [vmem:[%s2295 + $0x48] sm:$0xf]
    %v2315 = vld [vmem:[%s2295 + $0x4c] sm:$0xf]
    %v2316 = vld [vmem:[%s2295 + $0x50] sm:$0xf]
    %v2317 = vld [vmem:[%s2295 + $0x54] sm:$0xf]
    %v2318 = vld [vmem:[%s2295 + $0x58] sm:$0xf]
    %v2319 = vld [vmem:[%s2295 + $0x5c] sm:$0xf]
    %v2320 = vld [vmem:[%s2295 + $0x60] sm:$0xf]
    %v2321 = vld [vmem:[%s2295 + $0x64] sm:$0xf]
    %v2322 = vld [vmem:[%s2295 + $0x68] sm:$0xf]
    %v2323 = vld [vmem:[%s2295 + $0x6c] sm:$0xf]
    %v2324 = vld [vmem:[%s2295 + $0x70] sm:$0xf]
    %v2325 = vld [vmem:[%s2295 + $0x74] sm:$0xf]
    %v2326 = vld [vmem:[%s2295 + $0x78] sm:$0xf]
    %v2327 = vld [vmem:[%s2295 + $0x7c] sm:$0xf]
    %v2328 = vld [vmem:[%s2295 + $0x80] sm:$0xf]
    %v2329 = vld [vmem:[%s2295 + $0x84] sm:$0xf]
    %v2330 = vld [vmem:[%s2295 + $0x88] sm:$0xf]
    %v2331 = vld [vmem:[%s2295 + $0x8c] sm:$0xf]
    %v2332 = vld [vmem:[%s2295 + $0x90] sm:$0xf]
    %v2333 = vld [vmem:[%s2295 + $0x94] sm:$0xf]
    %v2334 = vld [vmem:[%s2295 + $0x98] sm:$0xf]
    %v2335 = vld [vmem:[%s2295 + $0x9c] sm:$0xf]
    %v2336 = vld [vmem:[%s2295 + $0xa0] sm:$0xf]
    %v2337 = vld [vmem:[%s2295 + $0xa4] sm:$0xf]
    %v2338 = vld [vmem:[%s2295 + $0xa8] sm:$0xf]
    %v2339 = vld [vmem:[%s2295 + $0xac] sm:$0xf]
    %v2340 = vld [vmem:[%s2295 + $0xb0] sm:$0xf]
    %v2341 = vld [vmem:[%s2295 + $0xb4] sm:$0xf]
    %v2342 = vld [vmem:[%s2295 + $0xb8] sm:$0xf]
    %v2343 = vld [vmem:[%s2295 + $0xbc] sm:$0xf]
    %v2344 = vld [vmem:[%s2295 + $0xc0] sm:$0xf]
    %v2345 = vld [vmem:[%s2295 + $0xc4] sm:$0xf]
    %v2346 = vld [vmem:[%s2295 + $0xc8] sm:$0xf]
    %v2347 = vld [vmem:[%s2295 + $0xcc] sm:$0xf]
    %v2348 = vld [vmem:[%s2295 + $0xd0] sm:$0xf]
    %v2349 = vld [vmem:[%s2295 + $0xd4] sm:$0xf]
    %v2350 = vld [vmem:[%s2295 + $0xd8] sm:$0xf]
    %v2351 = vld [vmem:[%s2295 + $0xdc] sm:$0xf]
    %v2352 = vld [vmem:[%s2295 + $0xe0] sm:$0xf]
    %v2353 = vld [vmem:[%s2295 + $0xe4] sm:$0xf]
    %v2354 = vld [vmem:[%s2295 + $0xe8] sm:$0xf]
    %v2355 = vld [vmem:[%s2295 + $0xec] sm:$0xf]
    %v2356 = vld [vmem:[%s2295 + $0xf0] sm:$0xf]
    %v2357 = vld [vmem:[%s2295 + $0xf4] sm:$0xf]
    %v2358 = vld [vmem:[%s2295 + $0xf8] sm:$0xf]
    %v2359 = vld [vmem:[%s2295 + $0xfc] sm:$0xf]
    %s2360 = scalar_lea.vmem %s3, 3
    %v2361 = vld [vmem:[%s2360] sm:$0x1]
    %v2363 = vlaneseq
    %v2364 = vshrl.u32 %v2363, 7
    %v2365 = vsub.s32 0, %v2364
    %v2366 = vrot.slane %v2361, %v2365
    %v2432 = vunpack.c.l.b16 %v2296
    %v2433 = vunpack.c.l.b16 %v2297
    %v2434 = vunpack.c.l.b16 %v2298
    %v2435 = vunpack.c.l.b16 %v2299
    %v2436 = vunpack.c.l.b16 %v2300
    %v2437 = vunpack.c.l.b16 %v2301
    %v2438 = vunpack.c.l.b16 %v2302
    %v2439 = vunpack.c.l.b16 %v2303
    %v2440 = vunpack.c.l.b16 %v2304
    %v2441 = vunpack.c.l.b16 %v2305
    %v2442 = vunpack.c.l.b16 %v2306
    %v2443 = vunpack.c.l.b16 %v2307
    %v2444 = vunpack.c.l.b16 %v2308
    %v2445 = vunpack.c.l.b16 %v2309
    %v2446 = vunpack.c.l.b16 %v2310
    %v2447 = vunpack.c.l.b16 %v2311
    %v2448 = vunpack.c.l.b16 %v2312
    %v2449 = vunpack.c.l.b16 %v2313
    %v2450 = vunpack.c.l.b16 %v2314
    %v2451 = vunpack.c.l.b16 %v2315
    %v2452 = vunpack.c.l.b16 %v2316
    %v2453 = vunpack.c.l.b16 %v2317
    %v2454 = vunpack.c.l.b16 %v2318
    %v2455 = vunpack.c.l.b16 %v2319
    %v2456 = vunpack.c.l.b16 %v2320
    %v2457 = vunpack.c.l.b16 %v2321
    %v2458 = vunpack.c.l.b16 %v2322
    %v2459 = vunpack.c.l.b16 %v2323
    %v2460 = vunpack.c.l.b16 %v2324
    %v2461 = vunpack.c.l.b16 %v2325
    %v2462 = vunpack.c.l.b16 %v2326
    %v2463 = vunpack.c.l.b16 %v2327
    %v2464 = vunpack.c.l.b16 %v2328
    %v2465 = vunpack.c.l.b16 %v2329
    %v2466 = vunpack.c.l.b16 %v2330
    %v2467 = vunpack.c.l.b16 %v2331
    %v2468 = vunpack.c.l.b16 %v2332
    %v2469 = vunpack.c.l.b16 %v2333
    %v2470 = vunpack.c.l.b16 %v2334
    %v2471 = vunpack.c.l.b16 %v2335
    %v2472 = vunpack.c.l.b16 %v2336
    %v2473 = vunpack.c.l.b16 %v2337
    %v2474 = vunpack.c.l.b16 %v2338
    %v2475 = vunpack.c.l.b16 %v2339
    %v2476 = vunpack.c.l.b16 %v2340
    %v2477 = vunpack.c.l.b16 %v2341
    %v2478 = vunpack.c.l.b16 %v2342
    %v2479 = vunpack.c.l.b16 %v2343
    %v2480 = vunpack.c.l.b16 %v2344
    %v2481 = vunpack.c.l.b16 %v2345
    %v2482 = vunpack.c.l.b16 %v2346
    %v2483 = vunpack.c.l.b16 %v2347
    %v2484 = vunpack.c.l.b16 %v2348
    %v2485 = vunpack.c.l.b16 %v2349
    %v2486 = vunpack.c.l.b16 %v2350
    %v2487 = vunpack.c.l.b16 %v2351
    %v2488 = vunpack.c.l.b16 %v2352
    %v2489 = vunpack.c.l.b16 %v2353
    %v2490 = vunpack.c.l.b16 %v2354
    %v2491 = vunpack.c.l.b16 %v2355
    %v2492 = vunpack.c.l.b16 %v2356
    %v2493 = vunpack.c.l.b16 %v2357
    %v2494 = vunpack.c.l.b16 %v2358
    %v2495 = vunpack.c.l.b16 %v2359
    %v2496 = vpack.c.b16 %v2433, %v2432
    %v2497 = vpack.c.b16 %v2435, %v2434
    %v2498 = vpack.c.b16 %v2437, %v2436
    %v2499 = vpack.c.b16 %v2439, %v2438
    %v2500 = vpack.c.b16 %v2441, %v2440
    %v2501 = vpack.c.b16 %v2443, %v2442
    %v2502 = vpack.c.b16 %v2445, %v2444
    %v2503 = vpack.c.b16 %v2447, %v2446
    %v2504 = vpack.c.b16 %v2449, %v2448
    %v2505 = vpack.c.b16 %v2451, %v2450
    %v2506 = vpack.c.b16 %v2453, %v2452
    %v2507 = vpack.c.b16 %v2455, %v2454
    %v2508 = vpack.c.b16 %v2457, %v2456
    %v2509 = vpack.c.b16 %v2459, %v2458
    %v2510 = vpack.c.b16 %v2461, %v2460
    %v2511 = vpack.c.b16 %v2463, %v2462
    %v2512 = vpack.c.b16 %v2465, %v2464
    %v2513 = vpack.c.b16 %v2467, %v2466
    %v2514 = vpack.c.b16 %v2469, %v2468
    %v2515 = vpack.c.b16 %v2471, %v2470
    %v2516 = vpack.c.b16 %v2473, %v2472
    %v2517 = vpack.c.b16 %v2475, %v2474
    %v2518 = vpack.c.b16 %v2477, %v2476
    %v2519 = vpack.c.b16 %v2479, %v2478
    %v2520 = vpack.c.b16 %v2481, %v2480
    %v2521 = vpack.c.b16 %v2483, %v2482
    %v2522 = vpack.c.b16 %v2485, %v2484
    %v2523 = vpack.c.b16 %v2487, %v2486
    %v2524 = vpack.c.b16 %v2489, %v2488
    %v2525 = vpack.c.b16 %v2491, %v2490
    %v2526 = vpack.c.b16 %v2493, %v2492
    %v2527 = vpack.c.b16 %v2495, %v2494
    %2560 = vmatprep.subr.bf16.mxu0 0
    %2561 = vmatpush1.bf16.msra.mxu0 %v2496
    %2562 = vmatprep.subr.bf16.mxu0 0
    %2563 = vmatpush1.bf16.msra.mxu0 %v2497
    %2564 = vmatprep.subr.bf16.mxu0 0
    %2565 = vmatpush1.bf16.msra.mxu0 %v2498
    %2566 = vmatprep.subr.bf16.mxu0 0
    %2567 = vmatpush1.bf16.msra.mxu0 %v2499
    %2568 = vmatprep.subr.bf16.mxu0 0
    %2569 = vmatpush1.bf16.msra.mxu0 %v2500
    %2570 = vmatprep.subr.bf16.mxu0 0
    %2571 = vmatpush1.bf16.msra.mxu0 %v2501
    %2572 = vmatprep.subr.bf16.mxu0 0
    %2573 = vmatpush1.bf16.msra.mxu0 %v2502
    %2574 = vmatprep.subr.bf16.mxu0 0
    %2575 = vmatpush1.bf16.msra.mxu0 %v2503
    %2576 = vmatprep.subr.bf16.mxu0 0
    %2577 = vmatpush1.bf16.msra.mxu0 %v2504
    %2578 = vmatprep.subr.bf16.mxu0 0
    %2579 = vmatpush1.bf16.msra.mxu0 %v2505
    %2580 = vmatprep.subr.bf16.mxu0 0
    %2581 = vmatpush1.bf16.msra.mxu0 %v2506
    %2582 = vmatprep.subr.bf16.mxu0 0
    %2583 = vmatpush1.bf16.msra.mxu0 %v2507
    %2584 = vmatprep.subr.bf16.mxu0 0
    %2585 = vmatpush1.bf16.msra.mxu0 %v2508
    %2586 = vmatprep.subr.bf16.mxu0 0
    %2587 = vmatpush1.bf16.msra.mxu0 %v2509
    %2588 = vmatprep.subr.bf16.mxu0 0
    %2589 = vmatpush1.bf16.msra.mxu0 %v2510
    %2590 = vmatprep.subr.bf16.mxu0 0
    %2591 = vmatpush1.bf16.msra.mxu0 %v2511
    %2592 = vmatprep.mubr.bf16.mxu0 %v2149
    %2593 = vmatmul.mubr.bf16.gmra.mrb[0].mxu0 %v2077
    %v2594 = vpop.f32.mrb[0].mxu0
    %v2595 = vadd.f32 %v2366, %v2594
    %v2596 = vpop.f32.mrb[0].mxu0
    %v2597 = vpop.f32.mrb[0].mxu0
    %v2598 = vadd.f32 %v2366, %v2597
    %v2599 = vpop.f32.mrb[0].mxu0
    %2600 = vmatprep.mubr.bf16.mxu0 %v2150
    %2601 = vmatmul.mubr.bf16.gmra.mrb[0].mxu0 %v2078
    %v2602 = vpop.f32.mrb[0].mxu0
    %v2603 = vadd.f32 %v2366, %v2602
    %v2604 = vpop.f32.mrb[0].mxu0
    %v2605 = vpop.f32.mrb[0].mxu0
    %v2606 = vadd.f32 %v2366, %v2605
    %v2607 = vpop.f32.mrb[0].mxu0
    %2608 = vdwg.mxu0
    %2609 = vmatprep.subr.bf16.mxu0 0
    %2610 = vmatpush1.bf16.msra.mxu0 %v2512
    %2611 = vmatprep.subr.bf16.mxu0 0
    %2612 = vmatpush1.bf16.msra.mxu0 %v2513
    %2613 = vmatprep.subr.bf16.mxu0 0
    %2614 = vmatpush1.bf16.msra.mxu0 %v2514
    %2615 = vmatprep.subr.bf16.mxu0 0
    %2616 = vmatpush1.bf16.msra.mxu0 %v2515
    %2617 = vmatprep.subr.bf16.mxu0 0
    %2618 = vmatpush1.bf16.msra.mxu0 %v2516
    %2619 = vmatprep.subr.bf16.mxu0 0
    %2620 = vmatpush1.bf16.msra.mxu0 %v2517
    %2621 = vmatprep.subr.bf16.mxu0 0
    %2622 = vmatpush1.bf16.msra.mxu0 %v2518
    %2623 = vmatprep.subr.bf16.mxu0 0
    %2624 = vmatpush1.bf16.msra.mxu0 %v2519
    %2625 = vmatprep.subr.bf16.mxu0 0
    %2626 = vmatpush1.bf16.msra.mxu0 %v2520
    %2627 = vmatprep.subr.bf16.mxu0 0
    %2628 = vmatpush1.bf16.msra.mxu0 %v2521
    %2629 = vmatprep.subr.bf16.mxu0 0
    %2630 = vmatpush1.bf16.msra.mxu0 %v2522
    %2631 = vmatprep.subr.bf16.mxu0 0
    %2632 = vmatpush1.bf16.msra.mxu0 %v2523
    %2633 = vmatprep.subr.bf16.mxu0 0
    %2634 = vmatpush1.bf16.msra.mxu0 %v2524
    %2635 = vmatprep.subr.bf16.mxu0 0
    %2636 = vmatpush1.bf16.msra.mxu0 %v2525
    %2637 = vmatprep.subr.bf16.mxu0 0
    %2638 = vmatpush1.bf16.msra.mxu0 %v2526
    %2639 = vmatprep.subr.bf16.mxu0 0
    %2640 = vmatpush1.bf16.msra.mxu0 %v2527
    %2641 = vmatprep.mubr.bf16.mxu0 %v2293
    %2642 = vmatmul.mubr.bf16.gmra.mrb[0].mxu0 %v2221
    %v2643 = vpop.f32.mrb[0].mxu0
    %v2644 = vadd.f32 %v2595, %v2643
    %v2645 = vpop.f32.mrb[0].mxu0
    %v2646 = vpop.f32.mrb[0].mxu0
    %v2647 = vadd.f32 %v2598, %v2646
    %v2648 = vpop.f32.mrb[0].mxu0
    %2649 = vmatprep.mubr.bf16.mxu0 %v2294
    %2650 = vmatmul.mubr.bf16.gmra.mrb[0].mxu0 %v2222
    %v2651 = vpop.f32.mrb[0].mxu0
    %v2652 = vadd.f32 %v2603, %v2651
    %v2653 = vpop.f32.mrb[0].mxu0
    %v2654 = vpop.f32.mrb[0].mxu0
    %v2655 = vadd.f32 %v2606, %v2654
    %v2656 = vpop.f32.mrb[0].mxu0
    %2657 = vdwg.mxu0
    %v2658 = vmax.f32 %v2644, 0.0
    %v2659 = vmax.f32 %v2647, 0.0
    %v2660 = vmax.f32 %v2652, 0.0
    %v2661 = vmax.f32 %v2655, 0.0
    %v2662 = vpack.c.bf16 %v2659, %v2658
    %v2663 = vpack.c.bf16 %v2661, %v2660
    %s2664 = scalar_lea.vmem %s2, 256
    %v2665 = vld [vmem:[%s2664] sm:$0xf]
    %v2666 = vld [vmem:[%s2664 + $0x4] sm:$0xf]
    %v2667 = vld [vmem:[%s2664 + $0x8] sm:$0xf]
    %v2668 = vld [vmem:[%s2664 + $0xc] sm:$0xf]
    %v2673 = vunpack.c.l.b16 %v2665
    %v2674 = vunpack.c.l.b16 %v2666
    %v2675 = vunpack.c.l.b16 %v2667
    %v2676 = vunpack.c.l.b16 %v2668
    %v2677 = vpack.c.b16 %v2674, %v2673
    %v2678 = vpack.c.b16 %v2676, %v2675
    %v2680 = vsel %vm52, %v2677, 0
    %v2683 = vsel %vm52, %v2678, 0
    %2685 = vmatprep.subr.bf16.mxu0 0
    %2686 = vmatpush1.bf16.msra.mxu0 %v2662
    %2687 = vmatprep.subr.bf16.mxu0 0
    %2688 = vmatpush1.bf16.msra.mxu0 %v2663
    %2689 = vmatprep.subr.bf16.mxu0 0
    %2690 = vmatpush1.bf16.msra.mxu0 0
    %2691 = vmatprep.subr.bf16.mxu0 0
    %2692 = vmatpush1.bf16.msra.mxu0 0
    %2693 = vmatprep.subr.bf16.mxu0 0
    %2694 = vmatpush1.bf16.msra.mxu0 0
    %2695 = vmatprep.subr.bf16.mxu0 0
    %2696 = vmatpush1.bf16.msra.mxu0 0
    %2697 = vmatprep.subr.bf16.mxu0 0
    %2698 = vmatpush1.bf16.msra.mxu0 0
    %2699 = vmatprep.subr.bf16.mxu0 0
    %2700 = vmatpush1.bf16.msra.mxu0 0
    %2701 = vmatprep.subr.bf16.mxu0 0
    %2702 = vmatpush1.bf16.msra.mxu0 0
    %2703 = vmatprep.subr.bf16.mxu0 0
    %2704 = vmatpush1.bf16.msra.mxu0 0
    %2705 = vmatprep.subr.bf16.mxu0 0
    %2706 = vmatpush1.bf16.msra.mxu0 0
    %2707 = vmatprep.subr.bf16.mxu0 0
    %2708 = vmatpush1.bf16.msra.mxu0 0
    %2709 = vmatprep.subr.bf16.mxu0 0
    %2710 = vmatpush1.bf16.msra.mxu0 0
    %2711 = vmatprep.subr.bf16.mxu0 0
    %2712 = vmatpush1.bf16.msra.mxu0 0
    %2713 = vmatprep.subr.bf16.mxu0 0
    %2714 = vmatpush1.bf16.msra.mxu0 0
    %2715 = vmatprep.subr.bf16.mxu0 0
    %2716 = vmatpush1.bf16.msra.mxu0 0
    %2717 = vmatprep.mubr.bf16.mxu0 0
    %2718 = vmatmul.mubr.bf16.gmra.mrb[0].mxu0 %v2680
    %v2719 = vpop.f32.mrb[0].mxu0
    %v2720 = vadd.f32 0.0, %v2719
    %v2721 = vpop.f32.mrb[0].mxu0
    %v2722 = vpop.f32.mrb[0].mxu0
    %v2723 = vadd.f32 0.0, %v2722
    %v2724 = vpop.f32.mrb[0].mxu0
    %2725 = vmatprep.mubr.bf16.mxu0 0
    %2726 = vmatmul.mubr.bf16.gmra.mrb[0].mxu0 %v2683
    %v2727 = vpop.f32.mrb[0].mxu0
    %v2728 = vadd.f32 0.0, %v2727
    %v2729 = vpop.f32.mrb[0].mxu0
    %v2730 = vpop.f32.mrb[0].mxu0
    %v2731 = vadd.f32 0.0, %v2730
    %v2732 = vpop.f32.mrb[0].mxu0
    %2733 = vdwg.mxu0
    %v2734 = vpack.c.bf16 %v2723, %v2720
    %v2735 = vpack.c.bf16 %v2731, %v2728
    %s2736 = scalar_lea.vmem %s2, 272
    %v2737 = vld [vmem:[%s2736] sm:$0xf]
    %v2738 = vld [vmem:[%s2736 + $0x4] sm:$0xf]
    %v2739 = vld [vmem:[%s2736 + $0x8] sm:$0xf]
    %v2740 = vld [vmem:[%s2736 + $0xc] sm:$0xf]
    %v2745 = vunpack.c.l.b16 %v2737
    %v2746 = vunpack.c.l.b16 %v2738
    %v2747 = vunpack.c.l.b16 %v2739
    %v2748 = vunpack.c.l.b16 %v2740
    %v2749 = vpack.c.b16 %v2746, %v2745
    %v2750 = vpack.c.b16 %v2748, %v2747
    %v2752 = vsel %vm52, %v2749, 0
    %v2755 = vsel %vm52, %v2750, 0
    %2757 = vmatprep.subr.bf16.mxu0 0
    %2758 = vmatpush1.bf16.msra.mxu0 %v2662
    %2759 = vmatprep.subr.bf16.mxu0 0
    %2760 = vmatpush1.bf16.msra.mxu0 %v2663
    %2761 = vmatprep.subr.bf16.mxu0 0
    %2762 = vmatpush1.bf16.msra.mxu0 0
    %2763 = vmatprep.subr.bf16.mxu0 0
    %2764 = vmatpush1.bf16.msra.mxu0 0
    %2765 = vmatprep.subr.bf16.mxu0 0
    %2766 = vmatpush1.bf16.msra.mxu0 0
    %2767 = vmatprep.subr.bf16.mxu0 0
    %2768 = vmatpush1.bf16.msra.mxu0 0
    %2769 = vmatprep.subr.bf16.mxu0 0
    %2770 = vmatpush1.bf16.msra.mxu0 0
    %2771 = vmatprep.subr.bf16.mxu0 0
    %2772 = vmatpush1.bf16.msra.mxu0 0
    %2773 = vmatprep.subr.bf16.mxu0 0
    %2774 = vmatpush1.bf16.msra.mxu0 0
    %2775 = vmatprep.subr.bf16.mxu0 0
    %2776 = vmatpush1.bf16.msra.mxu0 0
    %2777 = vmatprep.subr.bf16.mxu0 0
    %2778 = vmatpush1.bf16.msra.mxu0 0
    %2779 = vmatprep.subr.bf16.mxu0 0
    %2780 = vmatpush1.bf16.msra.mxu0 0
    %2781 = vmatprep.subr.bf16.mxu0 0
    %2782 = vmatpush1.bf16.msra.mxu0 0
    %2783 = vmatprep.subr.bf16.mxu0 0
    %2784 = vmatpush1.bf16.msra.mxu0 0
    %2785 = vmatprep.subr.bf16.mxu0 0
    %2786 = vmatpush1.bf16.msra.mxu0 0
    %2787 = vmatprep.subr.bf16.mxu0 0
    %2788 = vmatpush1.bf16.msra.mxu0 0
    %2789 = vmatprep.mubr.bf16.mxu0 0
    %2790 = vmatmul.mubr.bf16.gmra.mrb[0].mxu0 %v2752
    %v2791 = vpop.f32.mrb[0].mxu0
    %v2792 = vadd.f32 0.0, %v2791
    %v2793 = vpop.f32.mrb[0].mxu0
    %v2794 = vpop.f32.mrb[0].mxu0
    %v2795 = vadd.f32 0.0, %v2794
    %v2796 = vpop.f32.mrb[0].mxu0
    %2797 = vmatprep.mubr.bf16.mxu0 0
    %2798 = vmatmul.mubr.bf16.gmra.mrb[0].mxu0 %v2755
    %v2799 = vpop.f32.mrb[0].mxu0
    %v2800 = vadd.f32 0.0, %v2799
    %v2801 = vpop.f32.mrb[0].mxu0
    %v2802 = vpop.f32.mrb[0].mxu0
    %v2803 = vadd.f32 0.0, %v2802
    %v2804 = vpop.f32.mrb[0].mxu0
    %2805 = vdwg.mxu0
    %v2806 = vpack.c.bf16 %v2795, %v2792
    %v2807 = vpack.c.bf16 %v2803, %v2800
    %s2808 = scalar_lea.vmem %s2, 288
    %v2809 = vld [vmem:[%s2808] sm:$0xf]
    %v2810 = vld [vmem:[%s2808 + $0x4] sm:$0xf]
    %v2811 = vld [vmem:[%s2808 + $0x8] sm:$0xf]
    %v2812 = vld [vmem:[%s2808 + $0xc] sm:$0xf]
    %v2817 = vunpack.c.l.b16 %v2809
    %v2818 = vunpack.c.l.b16 %v2810
    %v2819 = vunpack.c.l.b16 %v2811
    %v2820 = vunpack.c.l.b16 %v2812
    %v2821 = vpack.c.b16 %v2818, %v2817
    %v2822 = vpack.c.b16 %v2820, %v2819
    %v2824 = vsel %vm52, %v2821, 0
    %v2827 = vsel %vm52, %v2822, 0
    %2829 = vmatprep.subr.bf16.mxu0 0
    %2830 = vmatpush1.bf16.msra.mxu0 %v2662
    %2831 = vmatprep.subr.bf16.mxu0 0
    %2832 = vmatpush1.bf16.msra.mxu0 %v2663
    %2833 = vmatprep.subr.bf16.mxu0 0
    %2834 = vmatpush1.bf16.msra.mxu0 0
    %2835 = vmatprep.subr.bf16.mxu0 0
    %2836 = vmatpush1.bf16.msra.mxu0 0
    %2837 = vmatprep.subr.bf16.mxu0 0
    %2838 = vmatpush1.bf16.msra.mxu0 0
    %2839 = vmatprep.subr.bf16.mxu0 0
    %2840 = vmatpush1.bf16.msra.mxu0 0
    %2841 = vmatprep.subr.bf16.mxu0 0
    %2842 = vmatpush1.bf16.msra.mxu0 0
    %2843 = vmatprep.subr.bf16.mxu0 0
    %2844 = vmatpush1.bf16.msra.mxu0 0
    %2845 = vmatprep.subr.bf16.mxu0 0
    %2846 = vmatpush1.bf16.msra.mxu0 0
    %2847 = vmatprep.subr.bf16.mxu0 0
    %2848 = vmatpush1.bf16.msra.mxu0 0
    %2849 = vmatprep.subr.bf16.mxu0 0
    %2850 = vmatpush1.bf16.msra.mxu0 0
    %2851 = vmatprep.subr.bf16.mxu0 0
    %2852 = vmatpush1.bf16.msra.mxu0 0
    %2853 = vmatprep.subr.bf16.mxu0 0
    %2854 = vmatpush1.bf16.msra.mxu0 0
    %2855 = vmatprep.subr.bf16.mxu0 0
    %2856 = vmatpush1.bf16.msra.mxu0 0
    %2857 = vmatprep.subr.bf16.mxu0 0
    %2858 = vmatpush1.bf16.msra.mxu0 0
    %2859 = vmatprep.subr.bf16.mxu0 0
    %2860 = vmatpush1.bf16.msra.mxu0 0
    %2861 = vmatprep.mubr.bf16.mxu0 0
    %2862 = vmatmul.mubr.bf16.gmra.mrb[0].mxu0 %v2824
    %v2863 = vpop.f32.mrb[0].mxu0
    %v2864 = vadd.f32 0.0, %v2863
    %v2865 = vpop.f32.mrb[0].mxu0
    %v2866 = vpop.f32.mrb[0].mxu0
    %v2867 = vadd.f32 0.0, %v2866
    %v2868 = vpop.f32.mrb[0].mxu0
    %2869 = vmatprep.mubr.bf16.mxu0 0
    %2870 = vmatmul.mubr.bf16.gmra.mrb[0].mxu0 %v2827
    %v2871 = vpop.f32.mrb[0].mxu0
    %v2872 = vadd.f32 0.0, %v2871
    %v2873 = vpop.f32.mrb[0].mxu0
    %v2874 = vpop.f32.mrb[0].mxu0
    %v2875 = vadd.f32 0.0, %v2874
    %v2876 = vpop.f32.mrb[0].mxu0
    %2877 = vdwg.mxu0
    %v2878 = vpack.c.bf16 %v2867, %v2864
    %v2879 = vpack.c.bf16 %v2875, %v2872
    %s2880 = scalar_lea.vmem %s2, 304
    %v2881 = vld [vmem:[%s2880] sm:$0xf]
    %v2882 = vld [vmem:[%s2880 + $0x4] sm:$0xf]
    %v2883 = vld [vmem:[%s2880 + $0x8] sm:$0xf]
    %v2884 = vld [vmem:[%s2880 + $0xc] sm:$0xf]
    %v2889 = vunpack.c.l.b16 %v2881
    %v2890 = vunpack.c.l.b16 %v2882
    %v2891 = vunpack.c.l.b16 %v2883
    %v2892 = vunpack.c.l.b16 %v2884
    %v2893 = vpack.c.b16 %v2890, %v2889
    %v2894 = vpack.c.b16 %v2892, %v2891
    %v2896 = vsel %vm52, %v2893, 0
    %v2899 = vsel %vm52, %v2894, 0
    %2901 = vmatprep.subr.bf16.mxu0 0
    %2902 = vmatpush1.bf16.msra.mxu0 %v2662
    %2903 = vmatprep.subr.bf16.mxu0 0
    %2904 = vmatpush1.bf16.msra.mxu0 %v2663
    %2905 = vmatprep.subr.bf16.mxu0 0
    %2906 = vmatpush1.bf16.msra.mxu0 0
    %2907 = vmatprep.subr.bf16.mxu0 0
    %2908 = vmatpush1.bf16.msra.mxu0 0
    %2909 = vmatprep.subr.bf16.mxu0 0
    %2910 = vmatpush1.bf16.msra.mxu0 0
    %2911 = vmatprep.subr.bf16.mxu0 0
    %2912 = vmatpush1.bf16.msra.mxu0 0
    %2913 = vmatprep.subr.bf16.mxu0 0
    %2914 = vmatpush1.bf16.msra.mxu0 0
    %2915 = vmatprep.subr.bf16.mxu0 0
    %2916 = vmatpush1.bf16.msra.mxu0 0
    %2917 = vmatprep.subr.bf16.mxu0 0
    %2918 = vmatpush1.bf16.msra.mxu0 0
    %2919 = vmatprep.subr.bf16.mxu0 0
    %2920 = vmatpush1.bf16.msra.mxu0 0
    %2921 = vmatprep.subr.bf16.mxu0 0
    %2922 = vmatpush1.bf16.msra.mxu0 0
    %2923 = vmatprep.subr.bf16.mxu0 0
    %2924 = vmatpush1.bf16.msra.mxu0 0
    %2925 = vmatprep.subr.bf16.mxu0 0
    %2926 = vmatpush1.bf16.msra.mxu0 0
    %2927 = vmatprep.subr.bf16.mxu0 0
    %2928 = vmatpush1.bf16.msra.mxu0 0
    %2929 = vmatprep.subr.bf16.mxu0 0
    %2930 = vmatpush1.bf16.msra.mxu0 0
    %2931 = vmatprep.subr.bf16.mxu0 0
    %2932 = vmatpush1.bf16.msra.mxu0 0
    %2933 = vmatprep.mubr.bf16.mxu0 0
    %2934 = vmatmul.mubr.bf16.gmra.mrb[0].mxu0 %v2896
    %v2935 = vpop.f32.mrb[0].mxu0
    %v2936 = vadd.f32 0.0, %v2935
    %v2937 = vpop.f32.mrb[0].mxu0
    %v2938 = vpop.f32.mrb[0].mxu0
    %v2939 = vadd.f32 0.0, %v2938
    %v2940 = vpop.f32.mrb[0].mxu0
    %2941 = vmatprep.mubr.bf16.mxu0 0
    %2942 = vmatmul.mubr.bf16.gmra.mrb[0].mxu0 %v2899
    %v2943 = vpop.f32.mrb[0].mxu0
    %v2944 = vadd.f32 0.0, %v2943
    %v2945 = vpop.f32.mrb[0].mxu0
    %v2946 = vpop.f32.mrb[0].mxu0
    %v2947 = vadd.f32 0.0, %v2946
    %v2948 = vpop.f32.mrb[0].mxu0
    %2949 = vdwg.mxu0
    %v2950 = vpack.c.bf16 %v2939, %v2936
    %v2951 = vpack.c.bf16 %v2947, %v2944
    %s2952 = scalar_lea.vmem [#allocation2], 1024
    %v2953 = vld [vmem:[%s2952] sm:$0xf]
    %v2954 = vld [vmem:[%s2952 + $0x4] sm:$0xf]
    %v2955 = vld [vmem:[%s2952 + $0x8] sm:$0xf]
    %v2956 = vld [vmem:[%s2952 + $0xc] sm:$0xf]
    %v2957 = vld [vmem:[%s2952 + $0x10] sm:$0xf]
    %v2958 = vld [vmem:[%s2952 + $0x14] sm:$0xf]
    %v2959 = vld [vmem:[%s2952 + $0x18] sm:$0xf]
    %v2960 = vld [vmem:[%s2952 + $0x1c] sm:$0xf]
    %v2961 = vld [vmem:[%s2952 + $0x20] sm:$0xf]
    %v2962 = vld [vmem:[%s2952 + $0x24] sm:$0xf]
    %v2963 = vld [vmem:[%s2952 + $0x28] sm:$0xf]
    %v2964 = vld [vmem:[%s2952 + $0x2c] sm:$0xf]
    %v2965 = vld [vmem:[%s2952 + $0x30] sm:$0xf]
    %v2966 = vld [vmem:[%s2952 + $0x34] sm:$0xf]
    %v2967 = vld [vmem:[%s2952 + $0x38] sm:$0xf]
    %v2968 = vld [vmem:[%s2952 + $0x3c] sm:$0xf]
    %v2969 = vld [vmem:[%s2952 + $0x40] sm:$0xf]
    %v2970 = vld [vmem:[%s2952 + $0x44] sm:$0xf]
    %v2971 = vld [vmem:[%s2952 + $0x48] sm:$0xf]
    %v2972 = vld [vmem:[%s2952 + $0x4c] sm:$0xf]
    %v2973 = vld [vmem:[%s2952 + $0x50] sm:$0xf]
    %v2974 = vld [vmem:[%s2952 + $0x54] sm:$0xf]
    %v2975 = vld [vmem:[%s2952 + $0x58] sm:$0xf]
    %v2976 = vld [vmem:[%s2952 + $0x5c] sm:$0xf]
    %v2977 = vld [vmem:[%s2952 + $0x60] sm:$0xf]
    %v2978 = vld [vmem:[%s2952 + $0x64] sm:$0xf]
    %v2979 = vld [vmem:[%s2952 + $0x68] sm:$0xf]
    %v2980 = vld [vmem:[%s2952 + $0x6c] sm:$0xf]
    %v2981 = vld [vmem:[%s2952 + $0x70] sm:$0xf]
    %v2982 = vld [vmem:[%s2952 + $0x74] sm:$0xf]
    %v2983 = vld [vmem:[%s2952 + $0x78] sm:$0xf]
    %v2984 = vld [vmem:[%s2952 + $0x7c] sm:$0xf]
    %v2985 = vld [vmem:[%s2952 + $0x80] sm:$0xf]
    %v2986 = vld [vmem:[%s2952 + $0x84] sm:$0xf]
    %v2987 = vld [vmem:[%s2952 + $0x88] sm:$0xf]
    %v2988 = vld [vmem:[%s2952 + $0x8c] sm:$0xf]
    %v2989 = vld [vmem:[%s2952 + $0x90] sm:$0xf]
    %v2990 = vld [vmem:[%s2952 + $0x94] sm:$0xf]
    %v2991 = vld [vmem:[%s2952 + $0x98] sm:$0xf]
    %v2992 = vld [vmem:[%s2952 + $0x9c] sm:$0xf]
    %v2993 = vld [vmem:[%s2952 + $0xa0] sm:$0xf]
    %v2994 = vld [vmem:[%s2952 + $0xa4] sm:$0xf]
    %v2995 = vld [vmem:[%s2952 + $0xa8] sm:$0xf]
    %v2996 = vld [vmem:[%s2952 + $0xac] sm:$0xf]
    %v2997 = vld [vmem:[%s2952 + $0xb0] sm:$0xf]
    %v2998 = vld [vmem:[%s2952 + $0xb4] sm:$0xf]
    %v2999 = vld [vmem:[%s2952 + $0xb8] sm:$0xf]
    %v3000 = vld [vmem:[%s2952 + $0xbc] sm:$0xf]
    %v3001 = vld [vmem:[%s2952 + $0xc0] sm:$0xf]
    %v3002 = vld [vmem:[%s2952 + $0xc4] sm:$0xf]
    %v3003 = vld [vmem:[%s2952 + $0xc8] sm:$0xf]
    %v3004 = vld [vmem:[%s2952 + $0xcc] sm:$0xf]
    %v3005 = vld [vmem:[%s2952 + $0xd0] sm:$0xf]
    %v3006 = vld [vmem:[%s2952 + $0xd4] sm:$0xf]
    %v3007 = vld [vmem:[%s2952 + $0xd8] sm:$0xf]
    %v3008 = vld [vmem:[%s2952 + $0xdc] sm:$0xf]
    %v3009 = vld [vmem:[%s2952 + $0xe0] sm:$0xf]
    %v3010 = vld [vmem:[%s2952 + $0xe4] sm:$0xf]
    %v3011 = vld [vmem:[%s2952 + $0xe8] sm:$0xf]
    %v3012 = vld [vmem:[%s2952 + $0xec] sm:$0xf]
    %v3013 = vld [vmem:[%s2952 + $0xf0] sm:$0xf]
    %v3014 = vld [vmem:[%s2952 + $0xf4] sm:$0xf]
    %v3015 = vld [vmem:[%s2952 + $0xf8] sm:$0xf]
    %v3016 = vld [vmem:[%s2952 + $0xfc] sm:$0xf]
    %s3017 = scalar_lea.vmem %s3, 4
    %v3018 = vld [vmem:[%s3017] sm:$0x1]
    %v3020 = vlaneseq
    %v3021 = vshrl.u32 %v3020, 7
    %v3022 = vsub.s32 0, %v3021
    %v3023 = vrot.slane %v3018, %v3022
    %v3089 = vunpack.c.l.b16 %v2953
    %v3090 = vunpack.c.l.b16 %v2954
    %v3091 = vunpack.c.l.b16 %v2955
    %v3092 = vunpack.c.l.b16 %v2956
    %v3093 = vunpack.c.l.b16 %v2957
    %v3094 = vunpack.c.l.b16 %v2958
    %v3095 = vunpack.c.l.b16 %v2959
    %v3096 = vunpack.c.l.b16 %v2960
    %v3097 = vunpack.c.l.b16 %v2961
    %v3098 = vunpack.c.l.b16 %v2962
    %v3099 = vunpack.c.l.b16 %v2963
    %v3100 = vunpack.c.l.b16 %v2964
    %v3101 = vunpack.c.l.b16 %v2965
    %v3102 = vunpack.c.l.b16 %v2966
    %v3103 = vunpack.c.l.b16 %v2967
    %v3104 = vunpack.c.l.b16 %v2968
    %v3105 = vunpack.c.l.b16 %v2969
    %v3106 = vunpack.c.l.b16 %v2970
    %v3107 = vunpack.c.l.b16 %v2971
    %v3108 = vunpack.c.l.b16 %v2972
    %v3109 = vunpack.c.l.b16 %v2973
    %v3110 = vunpack.c.l.b16 %v2974
    %v3111 = vunpack.c.l.b16 %v2975
    %v3112 = vunpack.c.l.b16 %v2976
    %v3113 = vunpack.c.l.b16 %v2977
    %v3114 = vunpack.c.l.b16 %v2978
    %v3115 = vunpack.c.l.b16 %v2979
    %v3116 = vunpack.c.l.b16 %v2980
    %v3117 = vunpack.c.l.b16 %v2981
    %v3118 = vunpack.c.l.b16 %v2982
    %v3119 = vunpack.c.l.b16 %v2983
    %v3120 = vunpack.c.l.b16 %v2984
    %v3121 = vunpack.c.l.b16 %v2985
    %v3122 = vunpack.c.l.b16 %v2986
    %v3123 = vunpack.c.l.b16 %v2987
    %v3124 = vunpack.c.l.b16 %v2988
    %v3125 = vunpack.c.l.b16 %v2989
    %v3126 = vunpack.c.l.b16 %v2990
    %v3127 = vunpack.c.l.b16 %v2991
    %v3128 = vunpack.c.l.b16 %v2992
    %v3129 = vunpack.c.l.b16 %v2993
    %v3130 = vunpack.c.l.b16 %v2994
    %v3131 = vunpack.c.l.b16 %v2995
    %v3132 = vunpack.c.l.b16 %v2996
    %v3133 = vunpack.c.l.b16 %v2997
    %v3134 = vunpack.c.l.b16 %v2998
    %v3135 = vunpack.c.l.b16 %v2999
    %v3136 = vunpack.c.l.b16 %v3000
    %v3137 = vunpack.c.l.b16 %v3001
    %v3138 = vunpack.c.l.b16 %v3002
    %v3139 = vunpack.c.l.b16 %v3003
    %v3140 = vunpack.c.l.b16 %v3004
    %v3141 = vunpack.c.l.b16 %v3005
    %v3142 = vunpack.c.l.b16 %v3006
    %v3143 = vunpack.c.l.b16 %v3007
    %v3144 = vunpack.c.l.b16 %v3008
    %v3145 = vunpack.c.l.b16 %v3009
    %v3146 = vunpack.c.l.b16 %v3010
    %v3147 = vunpack.c.l.b16 %v3011
    %v3148 = vunpack.c.l.b16 %v3012
    %v3149 = vunpack.c.l.b16 %v3013
    %v3150 = vunpack.c.l.b16 %v3014
    %v3151 = vunpack.c.l.b16 %v3015
    %v3152 = vunpack.c.l.b16 %v3016
    %v3153 = vpack.c.b16 %v3090, %v3089
    %v3154 = vpack.c.b16 %v3092, %v3091
    %v3155 = vpack.c.b16 %v3094, %v3093
    %v3156 = vpack.c.b16 %v3096, %v3095
    %v3157 = vpack.c.b16 %v3098, %v3097
    %v3158 = vpack.c.b16 %v3100, %v3099
    %v3159 = vpack.c.b16 %v3102, %v3101
    %v3160 = vpack.c.b16 %v3104, %v3103
    %v3161 = vpack.c.b16 %v3106, %v3105
    %v3162 = vpack.c.b16 %v3108, %v3107
    %v3163 = vpack.c.b16 %v3110, %v3109
    %v3164 = vpack.c.b16 %v3112, %v3111
    %v3165 = vpack.c.b16 %v3114, %v3113
    %v3166 = vpack.c.b16 %v3116, %v3115
    %v3167 = vpack.c.b16 %v3118, %v3117
    %v3168 = vpack.c.b16 %v3120, %v3119
    %v3169 = vpack.c.b16 %v3122, %v3121
    %v3170 = vpack.c.b16 %v3124, %v3123
    %v3171 = vpack.c.b16 %v3126, %v3125
    %v3172 = vpack.c.b16 %v3128, %v3127
    %v3173 = vpack.c.b16 %v3130, %v3129
    %v3174 = vpack.c.b16 %v3132, %v3131
    %v3175 = vpack.c.b16 %v3134, %v3133
    %v3176 = vpack.c.b16 %v3136, %v3135
    %v3177 = vpack.c.b16 %v3138, %v3137
    %v3178 = vpack.c.b16 %v3140, %v3139
    %v3179 = vpack.c.b16 %v3142, %v3141
    %v3180 = vpack.c.b16 %v3144, %v3143
    %v3181 = vpack.c.b16 %v3146, %v3145
    %v3182 = vpack.c.b16 %v3148, %v3147
    %v3183 = vpack.c.b16 %v3150, %v3149
    %v3184 = vpack.c.b16 %v3152, %v3151
    %3217 = vmatprep.subr.bf16.mxu0 0
    %3218 = vmatpush1.bf16.msra.mxu0 %v3153
    %3219 = vmatprep.subr.bf16.mxu0 0
    %3220 = vmatpush1.bf16.msra.mxu0 %v3154
    %3221 = vmatprep.subr.bf16.mxu0 0
    %3222 = vmatpush1.bf16.msra.mxu0 %v3155
    %3223 = vmatprep.subr.bf16.mxu0 0
    %3224 = vmatpush1.bf16.msra.mxu0 %v3156
    %3225 = vmatprep.subr.bf16.mxu0 0
    %3226 = vmatpush1.bf16.msra.mxu0 %v3157
    %3227 = vmatprep.subr.bf16.mxu0 0
    %3228 = vmatpush1.bf16.msra.mxu0 %v3158
    %3229 = vmatprep.subr.bf16.mxu0 0
    %3230 = vmatpush1.bf16.msra.mxu0 %v3159
    %3231 = vmatprep.subr.bf16.mxu0 0
    %3232 = vmatpush1.bf16.msra.mxu0 %v3160
    %3233 = vmatprep.subr.bf16.mxu0 0
    %3234 = vmatpush1.bf16.msra.mxu0 %v3161
    %3235 = vmatprep.subr.bf16.mxu0 0
    %3236 = vmatpush1.bf16.msra.mxu0 %v3162
    %3237 = vmatprep.subr.bf16.mxu0 0
    %3238 = vmatpush1.bf16.msra.mxu0 %v3163
    %3239 = vmatprep.subr.bf16.mxu0 0
    %3240 = vmatpush1.bf16.msra.mxu0 %v3164
    %3241 = vmatprep.subr.bf16.mxu0 0
    %3242 = vmatpush1.bf16.msra.mxu0 %v3165
    %3243 = vmatprep.subr.bf16.mxu0 0
    %3244 = vmatpush1.bf16.msra.mxu0 %v3166
    %3245 = vmatprep.subr.bf16.mxu0 0
    %3246 = vmatpush1.bf16.msra.mxu0 %v3167
    %3247 = vmatprep.subr.bf16.mxu0 0
    %3248 = vmatpush1.bf16.msra.mxu0 %v3168
    %3249 = vmatprep.mubr.bf16.mxu0 %v2806
    %3250 = vmatmul.mubr.bf16.gmra.mrb[0].mxu0 %v2734
    %v3251 = vpop.f32.mrb[0].mxu0
    %v3252 = vadd.f32 %v3023, %v3251
    %v3253 = vpop.f32.mrb[0].mxu0
    %v3254 = vpop.f32.mrb[0].mxu0
    %v3255 = vadd.f32 %v3023, %v3254
    %v3256 = vpop.f32.mrb[0].mxu0
    %3257 = vmatprep.mubr.bf16.mxu0 %v2807
    %3258 = vmatmul.mubr.bf16.gmra.mrb[0].mxu0 %v2735
    %v3259 = vpop.f32.mrb[0].mxu0
    %v3260 = vadd.f32 %v3023, %v3259
    %v3261 = vpop.f32.mrb[0].mxu0
    %v3262 = vpop.f32.mrb[0].mxu0
    %v3263 = vadd.f32 %v3023, %v3262
    %v3264 = vpop.f32.mrb[0].mxu0
    %3265 = vdwg.mxu0
    %3266 = vmatprep.subr.bf16.mxu0 0
    %3267 = vmatpush1.bf16.msra.mxu0 %v3169
    %3268 = vmatprep.subr.bf16.mxu0 0
    %3269 = vmatpush1.bf16.msra.mxu0 %v3170
    %3270 = vmatprep.subr.bf16.mxu0 0
    %3271 = vmatpush1.bf16.msra.mxu0 %v3171
    %3272 = vmatprep.subr.bf16.mxu0 0
    %3273 = vmatpush1.bf16.msra.mxu0 %v3172
    %3274 = vmatprep.subr.bf16.mxu0 0
    %3275 = vmatpush1.bf16.msra.mxu0 %v3173
    %3276 = vmatprep.subr.bf16.mxu0 0
    %3277 = vmatpush1.bf16.msra.mxu0 %v3174
    %3278 = vmatprep.subr.bf16.mxu0 0
    %3279 = vmatpush1.bf16.msra.mxu0 %v3175
    %3280 = vmatprep.subr.bf16.mxu0 0
    %3281 = vmatpush1.bf16.msra.mxu0 %v3176
    %3282 = vmatprep.subr.bf16.mxu0 0
    %3283 = vmatpush1.bf16.msra.mxu0 %v3177
    %3284 = vmatprep.subr.bf16.mxu0 0
    %3285 = vmatpush1.bf16.msra.mxu0 %v3178
    %3286 = vmatprep.subr.bf16.mxu0 0
    %3287 = vmatpush1.bf16.msra.mxu0 %v3179
    %3288 = vmatprep.subr.bf16.mxu0 0
    %3289 = vmatpush1.bf16.msra.mxu0 %v3180
    %3290 = vmatprep.subr.bf16.mxu0 0
    %3291 = vmatpush1.bf16.msra.mxu0 %v3181
    %3292 = vmatprep.subr.bf16.mxu0 0
    %3293 = vmatpush1.bf16.msra.mxu0 %v3182
    %3294 = vmatprep.subr.bf16.mxu0 0
    %3295 = vmatpush1.bf16.msra.mxu0 %v3183
    %3296 = vmatprep.subr.bf16.mxu0 0
    %3297 = vmatpush1.bf16.msra.mxu0 %v3184
    %3298 = vmatprep.mubr.bf16.mxu0 %v2950
    %3299 = vmatmul.mubr.bf16.gmra.mrb[0].mxu0 %v2878
    %v3300 = vpop.f32.mrb[0].mxu0
    %v3301 = vadd.f32 %v3252, %v3300
    %v3302 = vpop.f32.mrb[0].mxu0
    %v3303 = vpop.f32.mrb[0].mxu0
    %v3304 = vadd.f32 %v3255, %v3303
    %v3305 = vpop.f32.mrb[0].mxu0
    %3306 = vmatprep.mubr.bf16.mxu0 %v2951
    %3307 = vmatmul.mubr.bf16.gmra.mrb[0].mxu0 %v2879
    %v3308 = vpop.f32.mrb[0].mxu0
    %v3309 = vadd.f32 %v3260, %v3308
    %v3310 = vpop.f32.mrb[0].mxu0
    %v3311 = vpop.f32.mrb[0].mxu0
    %v3312 = vadd.f32 %v3263, %v3311
    %v3313 = vpop.f32.mrb[0].mxu0
    %3314 = vdwg.mxu0
    %v3315 = vmax.f32 %v3301, 0.0
    %v3316 = vmax.f32 %v3304, 0.0
    %v3317 = vmax.f32 %v3309, 0.0
    %v3318 = vmax.f32 %v3312, 0.0
    %v3319 = vpack.c.bf16 %v3316, %v3315
    %v3320 = vpack.c.bf16 %v3318, %v3317
    %s3321 = scalar_lea.vmem %s2, 320
    %v3322 = vld [vmem:[%s3321] sm:$0xf]
    %v3323 = vld [vmem:[%s3321 + $0x4] sm:$0xf]
    %v3324 = vld [vmem:[%s3321 + $0x8] sm:$0xf]
    %v3325 = vld [vmem:[%s3321 + $0xc] sm:$0xf]
    %v3330 = vunpack.c.l.b16 %v3322
    %v3331 = vunpack.c.l.b16 %v3323
    %v3332 = vunpack.c.l.b16 %v3324
    %v3333 = vunpack.c.l.b16 %v3325
    %v3334 = vpack.c.b16 %v3331, %v3330
    %v3335 = vpack.c.b16 %v3333, %v3332
    %v3337 = vsel %vm52, %v3334, 0
    %v3340 = vsel %vm52, %v3335, 0
    %3342 = vmatprep.subr.bf16.mxu0 0
    %3343 = vmatpush1.bf16.msra.mxu0 %v3319
    %3344 = vmatprep.subr.bf16.mxu0 0
    %3345 = vmatpush1.bf16.msra.mxu0 %v3320
    %3346 = vmatprep.subr.bf16.mxu0 0
    %3347 = vmatpush1.bf16.msra.mxu0 0
    %3348 = vmatprep.subr.bf16.mxu0 0
    %3349 = vmatpush1.bf16.msra.mxu0 0
    %3350 = vmatprep.subr.bf16.mxu0 0
    %3351 = vmatpush1.bf16.msra.mxu0 0
    %3352 = vmatprep.subr.bf16.mxu0 0
    %3353 = vmatpush1.bf16.msra.mxu0 0
    %3354 = vmatprep.subr.bf16.mxu0 0
    %3355 = vmatpush1.bf16.msra.mxu0 0
    %3356 = vmatprep.subr.bf16.mxu0 0
    %3357 = vmatpush1.bf16.msra.mxu0 0
    %3358 = vmatprep.subr.bf16.mxu0 0
    %3359 = vmatpush1.bf16.msra.mxu0 0
    %3360 = vmatprep.subr.bf16.mxu0 0
    %3361 = vmatpush1.bf16.msra.mxu0 0
    %3362 = vmatprep.subr.bf16.mxu0 0
    %3363 = vmatpush1.bf16.msra.mxu0 0
    %3364 = vmatprep.subr.bf16.mxu0 0
    %3365 = vmatpush1.bf16.msra.mxu0 0
    %3366 = vmatprep.subr.bf16.mxu0 0
    %3367 = vmatpush1.bf16.msra.mxu0 0
    %3368 = vmatprep.subr.bf16.mxu0 0
    %3369 = vmatpush1.bf16.msra.mxu0 0
    %3370 = vmatprep.subr.bf16.mxu0 0
    %3371 = vmatpush1.bf16.msra.mxu0 0
    %3372 = vmatprep.subr.bf16.mxu0 0
    %3373 = vmatpush1.bf16.msra.mxu0 0
    %3374 = vmatprep.mubr.bf16.mxu0 0
    %3375 = vmatmul.mubr.bf16.gmra.mrb[0].mxu0 %v3337
    %v3376 = vpop.f32.mrb[0].mxu0
    %v3377 = vadd.f32 0.0, %v3376
    %v3378 = vpop.f32.mrb[0].mxu0
    %v3379 = vpop.f32.mrb[0].mxu0
    %v3380 = vadd.f32 0.0, %v3379
    %v3381 = vpop.f32.mrb[0].mxu0
    %3382 = vmatprep.mubr.bf16.mxu0 0
    %3383 = vmatmul.mubr.bf16.gmra.mrb[0].mxu0 %v3340
    %v3384 = vpop.f32.mrb[0].mxu0
    %v3385 = vadd.f32 0.0, %v3384
    %v3386 = vpop.f32.mrb[0].mxu0
    %v3387 = vpop.f32.mrb[0].mxu0
    %v3388 = vadd.f32 0.0, %v3387
    %v3389 = vpop.f32.mrb[0].mxu0
    %3390 = vdwg.mxu0
    %v3391 = vpack.c.bf16 %v3380, %v3377
    %v3392 = vpack.c.bf16 %v3388, %v3385
    %s3393 = scalar_lea.vmem %s2, 336
    %v3394 = vld [vmem:[%s3393] sm:$0xf]
    %v3395 = vld [vmem:[%s3393 + $0x4] sm:$0xf]
    %v3396 = vld [vmem:[%s3393 + $0x8] sm:$0xf]
    %v3397 = vld [vmem:[%s3393 + $0xc] sm:$0xf]
    %v3402 = vunpack.c.l.b16 %v3394
    %v3403 = vunpack.c.l.b16 %v3395
    %v3404 = vunpack.c.l.b16 %v3396
    %v3405 = vunpack.c.l.b16 %v3397
    %v3406 = vpack.c.b16 %v3403, %v3402
    %v3407 = vpack.c.b16 %v3405, %v3404
    %v3409 = vsel %vm52, %v3406, 0
    %v3412 = vsel %vm52, %v3407, 0
    %3414 = vmatprep.subr.bf16.mxu0 0
    %3415 = vmatpush1.bf16.msra.mxu0 %v3319
    %3416 = vmatprep.subr.bf16.mxu0 0
    %3417 = vmatpush1.bf16.msra.mxu0 %v3320
    %3418 = vmatprep.subr.bf16.mxu0 0
    %3419 = vmatpush1.bf16.msra.mxu0 0
    %3420 = vmatprep.subr.bf16.mxu0 0
    %3421 = vmatpush1.bf16.msra.mxu0 0
    %3422 = vmatprep.subr.bf16.mxu0 0
    %3423 = vmatpush1.bf16.msra.mxu0 0
    %3424 = vmatprep.subr.bf16.mxu0 0
    %3425 = vmatpush1.bf16.msra.mxu0 0
    %3426 = vmatprep.subr.bf16.mxu0 0
    %3427 = vmatpush1.bf16.msra.mxu0 0
    %3428 = vmatprep.subr.bf16.mxu0 0
    %3429 = vmatpush1.bf16.msra.mxu0 0
    %3430 = vmatprep.subr.bf16.mxu0 0
    %3431 = vmatpush1.bf16.msra.mxu0 0
    %3432 = vmatprep.subr.bf16.mxu0 0
    %3433 = vmatpush1.bf16.msra.mxu0 0
    %3434 = vmatprep.subr.bf16.mxu0 0
    %3435 = vmatpush1.bf16.msra.mxu0 0
    %3436 = vmatprep.subr.bf16.mxu0 0
    %3437 = vmatpush1.bf16.msra.mxu0 0
    %3438 = vmatprep.subr.bf16.mxu0 0
    %3439 = vmatpush1.bf16.msra.mxu0 0
    %3440 = vmatprep.subr.bf16.mxu0 0
    %3441 = vmatpush1.bf16.msra.mxu0 0
    %3442 = vmatprep.subr.bf16.mxu0 0
    %3443 = vmatpush1.bf16.msra.mxu0 0
    %3444 = vmatprep.subr.bf16.mxu0 0
    %3445 = vmatpush1.bf16.msra.mxu0 0
    %3446 = vmatprep.mubr.bf16.mxu0 0
    %3447 = vmatmul.mubr.bf16.gmra.mrb[0].mxu0 %v3409
    %v3448 = vpop.f32.mrb[0].mxu0
    %v3449 = vadd.f32 0.0, %v3448
    %v3450 = vpop.f32.mrb[0].mxu0
    %v3451 = vpop.f32.mrb[0].mxu0
    %v3452 = vadd.f32 0.0, %v3451
    %v3453 = vpop.f32.mrb[0].mxu0
    %3454 = vmatprep.mubr.bf16.mxu0 0
    %3455 = vmatmul.mubr.bf16.gmra.mrb[0].mxu0 %v3412
    %v3456 = vpop.f32.mrb[0].mxu0
    %v3457 = vadd.f32 0.0, %v3456
    %v3458 = vpop.f32.mrb[0].mxu0
    %v3459 = vpop.f32.mrb[0].mxu0
    %v3460 = vadd.f32 0.0, %v3459
    %v3461 = vpop.f32.mrb[0].mxu0
    %3462 = vdwg.mxu0
    %v3463 = vpack.c.bf16 %v3452, %v3449
    %v3464 = vpack.c.bf16 %v3460, %v3457
    %s3465 = scalar_lea.vmem %s2, 352
    %v3466 = vld [vmem:[%s3465] sm:$0xf]
    %v3467 = vld [vmem:[%s3465 + $0x4] sm:$0xf]
    %v3468 = vld [vmem:[%s3465 + $0x8] sm:$0xf]
    %v3469 = vld [vmem:[%s3465 + $0xc] sm:$0xf]
    %v3474 = vunpack.c.l.b16 %v3466
    %v3475 = vunpack.c.l.b16 %v3467
    %v3476 = vunpack.c.l.b16 %v3468
    %v3477 = vunpack.c.l.b16 %v3469
    %v3478 = vpack.c.b16 %v3475, %v3474
    %v3479 = vpack.c.b16 %v3477, %v3476
    %v3481 = vsel %vm52, %v3478, 0
    %v3484 = vsel %vm52, %v3479, 0
    %3486 = vmatprep.subr.bf16.mxu0 0
    %3487 = vmatpush1.bf16.msra.mxu0 %v3319
    %3488 = vmatprep.subr.bf16.mxu0 0
    %3489 = vmatpush1.bf16.msra.mxu0 %v3320
    %3490 = vmatprep.subr.bf16.mxu0 0
    %3491 = vmatpush1.bf16.msra.mxu0 0
    %3492 = vmatprep.subr.bf16.mxu0 0
    %3493 = vmatpush1.bf16.msra.mxu0 0
    %3494 = vmatprep.subr.bf16.mxu0 0
    %3495 = vmatpush1.bf16.msra.mxu0 0
    %3496 = vmatprep.subr.bf16.mxu0 0
    %3497 = vmatpush1.bf16.msra.mxu0 0
    %3498 = vmatprep.subr.bf16.mxu0 0
    %3499 = vmatpush1.bf16.msra.mxu0 0
    %3500 = vmatprep.subr.bf16.mxu0 0
    %3501 = vmatpush1.bf16.msra.mxu0 0
    %3502 = vmatprep.subr.bf16.mxu0 0
    %3503 = vmatpush1.bf16.msra.mxu0 0
    %3504 = vmatprep.subr.bf16.mxu0 0
    %3505 = vmatpush1.bf16.msra.mxu0 0
    %3506 = vmatprep.subr.bf16.mxu0 0
    %3507 = vmatpush1.bf16.msra.mxu0 0
    %3508 = vmatprep.subr.bf16.mxu0 0
    %3509 = vmatpush1.bf16.msra.mxu0 0
    %3510 = vmatprep.subr.bf16.mxu0 0
    %3511 = vmatpush1.bf16.msra.mxu0 0
    %3512 = vmatprep.subr.bf16.mxu0 0
    %3513 = vmatpush1.bf16.msra.mxu0 0
    %3514 = vmatprep.subr.bf16.mxu0 0
    %3515 = vmatpush1.bf16.msra.mxu0 0
    %3516 = vmatprep.subr.bf16.mxu0 0
    %3517 = vmatpush1.bf16.msra.mxu0 0
    %3518 = vmatprep.mubr.bf16.mxu0 0
    %3519 = vmatmul.mubr.bf16.gmra.mrb[0].mxu0 %v3481
    %v3520 = vpop.f32.mrb[0].mxu0
    %v3521 = vadd.f32 0.0, %v3520
    %v3522 = vpop.f32.mrb[0].mxu0
    %v3523 = vpop.f32.mrb[0].mxu0
    %v3524 = vadd.f32 0.0, %v3523
    %v3525 = vpop.f32.mrb[0].mxu0
    %3526 = vmatprep.mubr.bf16.mxu0 0
    %3527 = vmatmul.mubr.bf16.gmra.mrb[0].mxu0 %v3484
    %v3528 = vpop.f32.mrb[0].mxu0
    %v3529 = vadd.f32 0.0, %v3528
    %v3530 = vpop.f32.mrb[0].mxu0
    %v3531 = vpop.f32.mrb[0].mxu0
    %v3532 = vadd.f32 0.0, %v3531
    %v3533 = vpop.f32.mrb[0].mxu0
    %3534 = vdwg.mxu0
    %v3535 = vpack.c.bf16 %v3524, %v3521
    %v3536 = vpack.c.bf16 %v3532, %v3529
    %s3537 = scalar_lea.vmem %s2, 368
    %v3538 = vld [vmem:[%s3537] sm:$0xf]
    %v3539 = vld [vmem:[%s3537 + $0x4] sm:$0xf]
    %v3540 = vld [vmem:[%s3537 + $0x8] sm:$0xf]
    %v3541 = vld [vmem:[%s3537 + $0xc] sm:$0xf]
    %v3546 = vunpack.c.l.b16 %v3538
    %v3547 = vunpack.c.l.b16 %v3539
    %v3548 = vunpack.c.l.b16 %v3540
    %v3549 = vunpack.c.l.b16 %v3541
    %v3550 = vpack.c.b16 %v3547, %v3546
    %v3551 = vpack.c.b16 %v3549, %v3548
    %v3553 = vsel %vm52, %v3550, 0
    %v3556 = vsel %vm52, %v3551, 0
    %3558 = vmatprep.subr.bf16.mxu0 0
    %3559 = vmatpush1.bf16.msra.mxu0 %v3319
    %3560 = vmatprep.subr.bf16.mxu0 0
    %3561 = vmatpush1.bf16.msra.mxu0 %v3320
    %3562 = vmatprep.subr.bf16.mxu0 0
    %3563 = vmatpush1.bf16.msra.mxu0 0
    %3564 = vmatprep.subr.bf16.mxu0 0
    %3565 = vmatpush1.bf16.msra.mxu0 0
    %3566 = vmatprep.subr.bf16.mxu0 0
    %3567 = vmatpush1.bf16.msra.mxu0 0
    %3568 = vmatprep.subr.bf16.mxu0 0
    %3569 = vmatpush1.bf16.msra.mxu0 0
    %3570 = vmatprep.subr.bf16.mxu0 0
    %3571 = vmatpush1.bf16.msra.mxu0 0
    %3572 = vmatprep.subr.bf16.mxu0 0
    %3573 = vmatpush1.bf16.msra.mxu0 0
    %3574 = vmatprep.subr.bf16.mxu0 0
    %3575 = vmatpush1.bf16.msra.mxu0 0
    %3576 = vmatprep.subr.bf16.mxu0 0
    %3577 = vmatpush1.bf16.msra.mxu0 0
    %3578 = vmatprep.subr.bf16.mxu0 0
    %3579 = vmatpush1.bf16.msra.mxu0 0
    %3580 = vmatprep.subr.bf16.mxu0 0
    %3581 = vmatpush1.bf16.msra.mxu0 0
    %3582 = vmatprep.subr.bf16.mxu0 0
    %3583 = vmatpush1.bf16.msra.mxu0 0
    %3584 = vmatprep.subr.bf16.mxu0 0
    %3585 = vmatpush1.bf16.msra.mxu0 0
    %3586 = vmatprep.subr.bf16.mxu0 0
    %3587 = vmatpush1.bf16.msra.mxu0 0
    %3588 = vmatprep.subr.bf16.mxu0 0
    %3589 = vmatpush1.bf16.msra.mxu0 0
    %3590 = vmatprep.mubr.bf16.mxu0 0
    %3591 = vmatmul.mubr.bf16.gmra.mrb[0].mxu0 %v3553
    %v3592 = vpop.f32.mrb[0].mxu0
    %v3593 = vadd.f32 0.0, %v3592
    %v3594 = vpop.f32.mrb[0].mxu0
    %v3595 = vpop.f32.mrb[0].mxu0
    %v3596 = vadd.f32 0.0, %v3595
    %v3597 = vpop.f32.mrb[0].mxu0
    %3598 = vmatprep.mubr.bf16.mxu0 0
    %3599 = vmatmul.mubr.bf16.gmra.mrb[0].mxu0 %v3556
    %v3600 = vpop.f32.mrb[0].mxu0
    %v3601 = vadd.f32 0.0, %v3600
    %v3602 = vpop.f32.mrb[0].mxu0
    %v3603 = vpop.f32.mrb[0].mxu0
    %v3604 = vadd.f32 0.0, %v3603
    %v3605 = vpop.f32.mrb[0].mxu0
    %3606 = vdwg.mxu0
    %v3607 = vpack.c.bf16 %v3596, %v3593
    %v3608 = vpack.c.bf16 %v3604, %v3601
    %s3609 = scalar_lea.vmem [#allocation2], 1280
    %v3610 = vld [vmem:[%s3609] sm:$0xf]
    %v3611 = vld [vmem:[%s3609 + $0x4] sm:$0xf]
    %v3612 = vld [vmem:[%s3609 + $0x8] sm:$0xf]
    %v3613 = vld [vmem:[%s3609 + $0xc] sm:$0xf]
    %v3614 = vld [vmem:[%s3609 + $0x10] sm:$0xf]
    %v3615 = vld [vmem:[%s3609 + $0x14] sm:$0xf]
    %v3616 = vld [vmem:[%s3609 + $0x18] sm:$0xf]
    %v3617 = vld [vmem:[%s3609 + $0x1c] sm:$0xf]
    %v3618 = vld [vmem:[%s3609 + $0x20] sm:$0xf]
    %v3619 = vld [vmem:[%s3609 + $0x24] sm:$0xf]
    %v3620 = vld [vmem:[%s3609 + $0x28] sm:$0xf]
    %v3621 = vld [vmem:[%s3609 + $0x2c] sm:$0xf]
    %v3622 = vld [vmem:[%s3609 + $0x30] sm:$0xf]
    %v3623 = vld [vmem:[%s3609 + $0x34] sm:$0xf]
    %v3624 = vld [vmem:[%s3609 + $0x38] sm:$0xf]
    %v3625 = vld [vmem:[%s3609 + $0x3c] sm:$0xf]
    %v3626 = vld [vmem:[%s3609 + $0x40] sm:$0xf]
    %v3627 = vld [vmem:[%s3609 + $0x44] sm:$0xf]
    %v3628 = vld [vmem:[%s3609 + $0x48] sm:$0xf]
    %v3629 = vld [vmem:[%s3609 + $0x4c] sm:$0xf]
    %v3630 = vld [vmem:[%s3609 + $0x50] sm:$0xf]
    %v3631 = vld [vmem:[%s3609 + $0x54] sm:$0xf]
    %v3632 = vld [vmem:[%s3609 + $0x58] sm:$0xf]
    %v3633 = vld [vmem:[%s3609 + $0x5c] sm:$0xf]
    %v3634 = vld [vmem:[%s3609 + $0x60] sm:$0xf]
    %v3635 = vld [vmem:[%s3609 + $0x64] sm:$0xf]
    %v3636 = vld [vmem:[%s3609 + $0x68] sm:$0xf]
    %v3637 = vld [vmem:[%s3609 + $0x6c] sm:$0xf]
    %v3638 = vld [vmem:[%s3609 + $0x70] sm:$0xf]
    %v3639 = vld [vmem:[%s3609 + $0x74] sm:$0xf]
    %v3640 = vld [vmem:[%s3609 + $0x78] sm:$0xf]
    %v3641 = vld [vmem:[%s3609 + $0x7c] sm:$0xf]
    %v3642 = vld [vmem:[%s3609 + $0x80] sm:$0xf]
    %v3643 = vld [vmem:[%s3609 + $0x84] sm:$0xf]
    %v3644 = vld [vmem:[%s3609 + $0x88] sm:$0xf]
    %v3645 = vld [vmem:[%s3609 + $0x8c] sm:$0xf]
    %v3646 = vld [vmem:[%s3609 + $0x90] sm:$0xf]
    %v3647 = vld [vmem:[%s3609 + $0x94] sm:$0xf]
    %v3648 = vld [vmem:[%s3609 + $0x98] sm:$0xf]
    %v3649 = vld [vmem:[%s3609 + $0x9c] sm:$0xf]
    %v3650 = vld [vmem:[%s3609 + $0xa0] sm:$0xf]
    %v3651 = vld [vmem:[%s3609 + $0xa4] sm:$0xf]
    %v3652 = vld [vmem:[%s3609 + $0xa8] sm:$0xf]
    %v3653 = vld [vmem:[%s3609 + $0xac] sm:$0xf]
    %v3654 = vld [vmem:[%s3609 + $0xb0] sm:$0xf]
    %v3655 = vld [vmem:[%s3609 + $0xb4] sm:$0xf]
    %v3656 = vld [vmem:[%s3609 + $0xb8] sm:$0xf]
    %v3657 = vld [vmem:[%s3609 + $0xbc] sm:$0xf]
    %v3658 = vld [vmem:[%s3609 + $0xc0] sm:$0xf]
    %v3659 = vld [vmem:[%s3609 + $0xc4] sm:$0xf]
    %v3660 = vld [vmem:[%s3609 + $0xc8] sm:$0xf]
    %v3661 = vld [vmem:[%s3609 + $0xcc] sm:$0xf]
    %v3662 = vld [vmem:[%s3609 + $0xd0] sm:$0xf]
    %v3663 = vld [vmem:[%s3609 + $0xd4] sm:$0xf]
    %v3664 = vld [vmem:[%s3609 + $0xd8] sm:$0xf]
    %v3665 = vld [vmem:[%s3609 + $0xdc] sm:$0xf]
    %v3666 = vld [vmem:[%s3609 + $0xe0] sm:$0xf]
    %v3667 = vld [vmem:[%s3609 + $0xe4] sm:$0xf]
    %v3668 = vld [vmem:[%s3609 + $0xe8] sm:$0xf]
    %v3669 = vld [vmem:[%s3609 + $0xec] sm:$0xf]
    %v3670 = vld [vmem:[%s3609 + $0xf0] sm:$0xf]
    %v3671 = vld [vmem:[%s3609 + $0xf4] sm:$0xf]
    %v3672 = vld [vmem:[%s3609 + $0xf8] sm:$0xf]
    %v3673 = vld [vmem:[%s3609 + $0xfc] sm:$0xf]
    %s3674 = scalar_lea.vmem %s3, 5
    %v3675 = vld [vmem:[%s3674] sm:$0x1]
    %v3677 = vlaneseq
    %v3678 = vshrl.u32 %v3677, 7
    %v3679 = vsub.s32 0, %v3678
    %v3680 = vrot.slane %v3675, %v3679
    %v3746 = vunpack.c.l.b16 %v3610
    %v3747 = vunpack.c.l.b16 %v3611
    %v3748 = vunpack.c.l.b16 %v3612
    %v3749 = vunpack.c.l.b16 %v3613
    %v3750 = vunpack.c.l.b16 %v3614
    %v3751 = vunpack.c.l.b16 %v3615
    %v3752 = vunpack.c.l.b16 %v3616
    %v3753 = vunpack.c.l.b16 %v3617
    %v3754 = vunpack.c.l.b16 %v3618
    %v3755 = vunpack.c.l.b16 %v3619
    %v3756 = vunpack.c.l.b16 %v3620
    %v3757 = vunpack.c.l.b16 %v3621
    %v3758 = vunpack.c.l.b16 %v3622
    %v3759 = vunpack.c.l.b16 %v3623
    %v3760 = vunpack.c.l.b16 %v3624
    %v3761 = vunpack.c.l.b16 %v3625
    %v3762 = vunpack.c.l.b16 %v3626
    %v3763 = vunpack.c.l.b16 %v3627
    %v3764 = vunpack.c.l.b16 %v3628
    %v3765 = vunpack.c.l.b16 %v3629
    %v3766 = vunpack.c.l.b16 %v3630
    %v3767 = vunpack.c.l.b16 %v3631
    %v3768 = vunpack.c.l.b16 %v3632
    %v3769 = vunpack.c.l.b16 %v3633
    %v3770 = vunpack.c.l.b16 %v3634
    %v3771 = vunpack.c.l.b16 %v3635
    %v3772 = vunpack.c.l.b16 %v3636
    %v3773 = vunpack.c.l.b16 %v3637
    %v3774 = vunpack.c.l.b16 %v3638
    %v3775 = vunpack.c.l.b16 %v3639
    %v3776 = vunpack.c.l.b16 %v3640
    %v3777 = vunpack.c.l.b16 %v3641
    %v3778 = vunpack.c.l.b16 %v3642
    %v3779 = vunpack.c.l.b16 %v3643
    %v3780 = vunpack.c.l.b16 %v3644
    %v3781 = vunpack.c.l.b16 %v3645
    %v3782 = vunpack.c.l.b16 %v3646
    %v3783 = vunpack.c.l.b16 %v3647
    %v3784 = vunpack.c.l.b16 %v3648
    %v3785 = vunpack.c.l.b16 %v3649
    %v3786 = vunpack.c.l.b16 %v3650
    %v3787 = vunpack.c.l.b16 %v3651
    %v3788 = vunpack.c.l.b16 %v3652
    %v3789 = vunpack.c.l.b16 %v3653
    %v3790 = vunpack.c.l.b16 %v3654
    %v3791 = vunpack.c.l.b16 %v3655
    %v3792 = vunpack.c.l.b16 %v3656
    %v3793 = vunpack.c.l.b16 %v3657
    %v3794 = vunpack.c.l.b16 %v3658
    %v3795 = vunpack.c.l.b16 %v3659
    %v3796 = vunpack.c.l.b16 %v3660
    %v3797 = vunpack.c.l.b16 %v3661
    %v3798 = vunpack.c.l.b16 %v3662
    %v3799 = vunpack.c.l.b16 %v3663
    %v3800 = vunpack.c.l.b16 %v3664
    %v3801 = vunpack.c.l.b16 %v3665
    %v3802 = vunpack.c.l.b16 %v3666
    %v3803 = vunpack.c.l.b16 %v3667
    %v3804 = vunpack.c.l.b16 %v3668
    %v3805 = vunpack.c.l.b16 %v3669
    %v3806 = vunpack.c.l.b16 %v3670
    %v3807 = vunpack.c.l.b16 %v3671
    %v3808 = vunpack.c.l.b16 %v3672
    %v3809 = vunpack.c.l.b16 %v3673
    %v3810 = vpack.c.b16 %v3747, %v3746
    %v3811 = vpack.c.b16 %v3749, %v3748
    %v3812 = vpack.c.b16 %v3751, %v3750
    %v3813 = vpack.c.b16 %v3753, %v3752
    %v3814 = vpack.c.b16 %v3755, %v3754
    %v3815 = vpack.c.b16 %v3757, %v3756
    %v3816 = vpack.c.b16 %v3759, %v3758
    %v3817 = vpack.c.b16 %v3761, %v3760
    %v3818 = vpack.c.b16 %v3763, %v3762
    %v3819 = vpack.c.b16 %v3765, %v3764
    %v3820 = vpack.c.b16 %v3767, %v3766
    %v3821 = vpack.c.b16 %v3769, %v3768
    %v3822 = vpack.c.b16 %v3771, %v3770
    %v3823 = vpack.c.b16 %v3773, %v3772
    %v3824 = vpack.c.b16 %v3775, %v3774
    %v3825 = vpack.c.b16 %v3777, %v3776
    %v3826 = vpack.c.b16 %v3779, %v3778
    %v3827 = vpack.c.b16 %v3781, %v3780
    %v3828 = vpack.c.b16 %v3783, %v3782
    %v3829 = vpack.c.b16 %v3785, %v3784
    %v3830 = vpack.c.b16 %v3787, %v3786
    %v3831 = vpack.c.b16 %v3789, %v3788
    %v3832 = vpack.c.b16 %v3791, %v3790
    %v3833 = vpack.c.b16 %v3793, %v3792
    %v3834 = vpack.c.b16 %v3795, %v3794
    %v3835 = vpack.c.b16 %v3797, %v3796
    %v3836 = vpack.c.b16 %v3799, %v3798
    %v3837 = vpack.c.b16 %v3801, %v3800
    %v3838 = vpack.c.b16 %v3803, %v3802
    %v3839 = vpack.c.b16 %v3805, %v3804
    %v3840 = vpack.c.b16 %v3807, %v3806
    %v3841 = vpack.c.b16 %v3809, %v3808
    %3874 = vmatprep.subr.bf16.mxu0 0
    %3875 = vmatpush1.bf16.msra.mxu0 %v3810
    %3876 = vmatprep.subr.bf16.mxu0 0
    %3877 = vmatpush1.bf16.msra.mxu0 %v3811
    %3878 = vmatprep.subr.bf16.mxu0 0
    %3879 = vmatpush1.bf16.msra.mxu0 %v3812
    %3880 = vmatprep.subr.bf16.mxu0 0
    %3881 = vmatpush1.bf16.msra.mxu0 %v3813
    %3882 = vmatprep.subr.bf16.mxu0 0
    %3883 = vmatpush1.bf16.msra.mxu0 %v3814
    %3884 = vmatprep.subr.bf16.mxu0 0
    %3885 = vmatpush1.bf16.msra.mxu0 %v3815
    %3886 = vmatprep.subr.bf16.mxu0 0
    %3887 = vmatpush1.bf16.msra.mxu0 %v3816
    %3888 = vmatprep.subr.bf16.mxu0 0
    %3889 = vmatpush1.bf16.msra.mxu0 %v3817
    %3890 = vmatprep.subr.bf16.mxu0 0
    %3891 = vmatpush1.bf16.msra.mxu0 %v3818
    %3892 = vmatprep.subr.bf16.mxu0 0
    %3893 = vmatpush1.bf16.msra.mxu0 %v3819
    %3894 = vmatprep.subr.bf16.mxu0 0
    %3895 = vmatpush1.bf16.msra.mxu0 %v3820
    %3896 = vmatprep.subr.bf16.mxu0 0
    %3897 = vmatpush1.bf16.msra.mxu0 %v3821
    %3898 = vmatprep.subr.bf16.mxu0 0
    %3899 = vmatpush1.bf16.msra.mxu0 %v3822
    %3900 = vmatprep.subr.bf16.mxu0 0
    %3901 = vmatpush1.bf16.msra.mxu0 %v3823
    %3902 = vmatprep.subr.bf16.mxu0 0
    %3903 = vmatpush1.bf16.msra.mxu0 %v3824
    %3904 = vmatprep.subr.bf16.mxu0 0
    %3905 = vmatpush1.bf16.msra.mxu0 %v3825
    %3906 = vmatprep.mubr.bf16.mxu0 %v3463
    %3907 = vmatmul.mubr.bf16.gmra.mrb[0].mxu0 %v3391
    %v3908 = vpop.f32.mrb[0].mxu0
    %v3909 = vadd.f32 %v3680, %v3908
    %v3910 = vpop.f32.mrb[0].mxu0
    %v3911 = vpop.f32.mrb[0].mxu0
    %v3912 = vadd.f32 %v3680, %v3911
    %v3913 = vpop.f32.mrb[0].mxu0
    %3914 = vmatprep.mubr.bf16.mxu0 %v3464
    %3915 = vmatmul.mubr.bf16.gmra.mrb[0].mxu0 %v3392
    %v3916 = vpop.f32.mrb[0].mxu0
    %v3917 = vadd.f32 %v3680, %v3916
    %v3918 = vpop.f32.mrb[0].mxu0
    %v3919 = vpop.f32.mrb[0].mxu0
    %v3920 = vadd.f32 %v3680, %v3919
    %v3921 = vpop.f32.mrb[0].mxu0
    %3922 = vdwg.mxu0
    %3923 = vmatprep.subr.bf16.mxu0 0
    %3924 = vmatpush1.bf16.msra.mxu0 %v3826
    %3925 = vmatprep.subr.bf16.mxu0 0
    %3926 = vmatpush1.bf16.msra.mxu0 %v3827
    %3927 = vmatprep.subr.bf16.mxu0 0
    %3928 = vmatpush1.bf16.msra.mxu0 %v3828
    %3929 = vmatprep.subr.bf16.mxu0 0
    %3930 = vmatpush1.bf16.msra.mxu0 %v3829
    %3931 = vmatprep.subr.bf16.mxu0 0
    %3932 = vmatpush1.bf16.msra.mxu0 %v3830
    %3933 = vmatprep.subr.bf16.mxu0 0
    %3934 = vmatpush1.bf16.msra.mxu0 %v3831
    %3935 = vmatprep.subr.bf16.mxu0 0
    %3936 = vmatpush1.bf16.msra.mxu0 %v3832
    %3937 = vmatprep.subr.bf16.mxu0 0
    %3938 = vmatpush1.bf16.msra.mxu0 %v3833
    %3939 = vmatprep.subr.bf16.mxu0 0
    %3940 = vmatpush1.bf16.msra.mxu0 %v3834
    %3941 = vmatprep.subr.bf16.mxu0 0
    %3942 = vmatpush1.bf16.msra.mxu0 %v3835
    %3943 = vmatprep.subr.bf16.mxu0 0
    %3944 = vmatpush1.bf16.msra.mxu0 %v3836
    %3945 = vmatprep.subr.bf16.mxu0 0
    %3946 = vmatpush1.bf16.msra.mxu0 %v3837
    %3947 = vmatprep.subr.bf16.mxu0 0
    %3948 = vmatpush1.bf16.msra.mxu0 %v3838
    %3949 = vmatprep.subr.bf16.mxu0 0
    %3950 = vmatpush1.bf16.msra.mxu0 %v3839
    %3951 = vmatprep.subr.bf16.mxu0 0
    %3952 = vmatpush1.bf16.msra.mxu0 %v3840
    %3953 = vmatprep.subr.bf16.mxu0 0
    %3954 = vmatpush1.bf16.msra.mxu0 %v3841
    %3955 = vmatprep.mubr.bf16.mxu0 %v3607
    %3956 = vmatmul.mubr.bf16.gmra.mrb[0].mxu0 %v3535
    %v3957 = vpop.f32.mrb[0].mxu0
    %v3958 = vadd.f32 %v3909, %v3957
    %v3959 = vpop.f32.mrb[0].mxu0
    %v3960 = vpop.f32.mrb[0].mxu0
    %v3961 = vadd.f32 %v3912, %v3960
    %v3962 = vpop.f32.mrb[0].mxu0
    %3963 = vmatprep.mubr.bf16.mxu0 %v3608
    %3964 = vmatmul.mubr.bf16.gmra.mrb[0].mxu0 %v3536
    %v3965 = vpop.f32.mrb[0].mxu0
    %v3966 = vadd.f32 %v3917, %v3965
    %v3967 = vpop.f32.mrb[0].mxu0
    %v3968 = vpop.f32.mrb[0].mxu0
    %v3969 = vadd.f32 %v3920, %v3968
    %v3970 = vpop.f32.mrb[0].mxu0
    %3971 = vdwg.mxu0
    %v3972 = vtanh.pop %v3958
    %v3973 = vtanh.pop %v3961
    %v3974 = vtanh.pop %v3966
    %v3975 = vtanh.pop %v3969
    %3976 = vst [vmem:[%s4] sm:$0xff] %v3972
    %3977 = vst [vmem:[%s4 + $0x8] sm:$0xff] %v3973
    %3978 = vst [vmem:[%s4 + $0x10] sm:$0xff] %v3974
    %3979 = vst [vmem:[%s4 + $0x18] sm:$0xff] %v3975
    // Predicated region
    $region22: #{conv_autoencoder_forward.1} parent=1 // pred_check
      _
    $region23: #{conv_autoencoder_forward.1} parent=1 // pred_check_branch
      %3981 = sbr.rel (0) target = $region25
    $region24: #{conv_autoencoder_forward.1} parent=1 // pred_region
      _
    $region25: #{conv_autoencoder_forward.1} parent=1 // pred_fallthru
      _
    // Predicated region
    $region26: #{conv_autoencoder_forward.1} parent=1 // pred_check
      _
    $region27: #{conv_autoencoder_forward.1} parent=1 // pred_check_branch
      %3983 = sbr.rel (0) target = $region29
    $region28: #{conv_autoencoder_forward.1} parent=1 // pred_region
      _
    $region29: #{conv_autoencoder_forward.1} parent=1 // pred_fallthru
      _
    %3984 = vsyncpa [#allocation3], 1

</llo_original>
